<compile_context>
chip_gen: v7x
topology: tpu7x:2x2x1
jax: 0.10.0
libtpu: 0.0.40
codegen_flags: <defaults>
</compile_context>

<pallas_src>
import functools

import jax
import jax.numpy as jnp
from jax import lax
from jax.experimental import pallas as pl
from jax.experimental.pallas import tpu as pltpu


def _her_kernel(a_idx_ref,                        # (T,) int32, SMEM
                s_ref, o_ref, u_ref,              # (T,1,N) f32, resident VMEM
                W_in, X_in, Wr_ref, wm_in, tr_in,  # initial state / params
                er_ref, probs_ref,                # (T,2,N) / (T,1,R) per-step outputs
                W_out, X_out, wm_out, tr_out,     # final state outputs
                *, beta, bias, alpha_gate, alpha_layer, lam, gamma):
    T = s_ref.shape[0]
    N = W_in.shape[0]

    # Single resident copy of the learned state: seed the output refs once, then
    # read/update them in place for the whole episode (no scratch duplication).
    W_out[...] = W_in[...]
    X_out[...] = X_in[...]
    Wr = Wr_ref[...]                               # (N, n_resp), loop-invariant

    def step(t, carry):
        wm_prev, tr_prev = carry                   # (1, N) each

        s = s_ref[t]                               # (1, N)
        o = o_ref[t]                               # (1, N)
        u = u_ref[t]                               # (1, N) uniforms for bernoulli
        W = W_out[...]                             # (N, N) current weights
        X = X_out[...]                             # (N, N) current gate weights

        # --- WM gate: one fused (2,N)@(N,N) matmul gives v and v_prev ------------
        sv = jnp.concatenate([s, wm_prev], axis=0)                  # (2, N)
        vv = jnp.dot(sv, X, preferred_element_type=jnp.float32)     # (2, N)
        bv = beta * vv[0:1, :]
        bvp = beta * vv[1:2, :]
        # numerically stable prob_store = (e^{bv}+bias)/(e^{bv}+bias+e^{bvp})
        m = jnp.maximum(jnp.maximum(bv, bvp), 0.0)
        ev = jnp.exp(bv - m)
        evp = jnp.exp(bvp - m)
        bb = bias * jnp.exp(-m)
        prob_store = (ev + bb) * pl.reciprocal(ev + bb + evp, approx=True)

        # elementwise bernoulli(prob_store) via precomputed uniforms
        store = (u < prob_store).astype(jnp.float32)
        r = store * s                                               # (1, N)

        # eligibility trace update (reference updates trace BEFORE the X update)
        tr_new = lam * tr_prev + (1.0 - lam) * s

        # --- HER layer prediction p = r @ W and layer-0 error --------------------
        p = jnp.dot(r, W, preferred_element_type=jnp.float32)       # (1, N)
        a_idx = a_idx_ref[t]
        lane_ids = lax.broadcasted_iota(jnp.int32, (1, N), 1)
        a1h = (lane_ids == a_idx).astype(jnp.float32)               # one-hot action
        e = a1h * (o - p)                                           # single nonzero
        e_val = jnp.sum(e, axis=1, keepdims=True)                   # (1,1) = o[a]-p[a]

        # --- O(N) weight updates: dynamic single-row read-modify-write -----------
        # outer(e, x) has exactly one nonzero row (a_idx), so only that row changes.
        w_row = W_out[pl.ds(a_idx, 1), :]
        W_out[pl.ds(a_idx, 1), :] = w_row + (alpha_layer * e_val) * r
        x_row = X_out[pl.ds(a_idx, 1), :]
        X_out[pl.ds(a_idx, 1), :] = x_row + (alpha_gate * e_val) * tr_new

        # --- response head on the UPDATED W via the rank-1 identity --------------
        # r @ (W + a*outer(e,r)) = p + a*(e.r)*r   (exact: r @ outer(e,r) = (e.r) r)
        er_dot = jnp.sum(e * r, axis=1, keepdims=True)              # (1,1)
        p_lowest = p + alpha_layer * er_dot * r                     # (1, N)
        logits = jnp.dot(p_lowest, Wr, preferred_element_type=jnp.float32)
        z = gamma * logits
        z = z - jnp.max(z, axis=-1, keepdims=True)
        ez = jnp.exp(z)
        probs = ez * pl.reciprocal(jnp.sum(ez, axis=-1, keepdims=True), approx=True)

        # --- per-step outputs: one packed store for [e; r], one for probs --------
        er_ref[t] = jnp.concatenate([e, r], axis=0)                 # (2, N)
        probs_ref[t] = probs                                        # (1, n_resp)

        return r, tr_new

    wm_fin, tr_fin = lax.fori_loop(0, T, step, (wm_in[...], tr_in[...]), unroll=True)

    wm_out[...] = wm_fin
    tr_out[...] = tr_fin


def her_forward_episode(s_seq, a_idx_seq, o_seq, u_seq, *, W, X, W_response, WM, trace,
                        beta, bias, alpha_gate, alpha_layer, lam, gamma):
    """Run T sequential HER forward steps (n_layers == 1) in one fused kernel.

    Returns (response_probs (T, n_resp), errors (T, N), rs (T, N), new_state dict).
    """
    T, N = s_seq.shape
    n_resp = W_response.shape[1]

    kernel = functools.partial(
        _her_kernel,
        beta=float(beta), bias=float(bias),
        alpha_gate=float(alpha_gate), alpha_layer=float(alpha_layer),
        lam=float(lam), gamma=float(gamma))

    vmem = pl.BlockSpec(memory_space=pltpu.MemorySpace.VMEM)
    smem = pl.BlockSpec(memory_space=pltpu.MemorySpace.SMEM)

    out_shape = (
        jax.ShapeDtypeStruct((T, 2, N), jnp.float32),        # packed [e; r] per step
        jax.ShapeDtypeStruct((T, 1, n_resp), jnp.float32),   # response probs per step
        jax.ShapeDtypeStruct((N, N), jnp.float32),           # final W
        jax.ShapeDtypeStruct((N, N), jnp.float32),           # final X
        jax.ShapeDtypeStruct((1, N), jnp.float32),           # final WM
        jax.ShapeDtypeStruct((1, N), jnp.float32),           # final trace
    )

    # Tiny advisory cost estimate so XLA does not over-schedule around this call.
    flops = T * (6 * N * N + 2 * N * n_resp + 24 * N)
    transcendentals = T * (4 * N + 2 * n_resp)
    bytes_accessed = 4 * (T * (5 * N + 3 * n_resp) + 4 * N * N + N * n_resp + 4 * N)
    cost = pl.CostEstimate(flops=flops, transcendentals=transcendentals,
                           bytes_accessed=bytes_accessed)

    er, probs, W_new, X_new, WM_new, trace_new = pl.pallas_call(
        kernel,
        out_shape=out_shape,
        in_specs=[smem, vmem, vmem, vmem, vmem, vmem, vmem, vmem, vmem],
        out_specs=(vmem, vmem, vmem, vmem, vmem, vmem),
        cost_estimate=cost,
    )(a_idx_seq.astype(jnp.int32),
      s_seq.reshape(T, 1, N).astype(jnp.float32),
      o_seq.reshape(T, 1, N).astype(jnp.float32),
      u_seq.reshape(T, 1, N).astype(jnp.float32),
      W.astype(jnp.float32), X.astype(jnp.float32), W_response.astype(jnp.float32),
      WM.reshape(1, N).astype(jnp.float32), trace.reshape(1, N).astype(jnp.float32))

    errors = er[:, 0, :]
    rs = er[:, 1, :]
    probs = probs[:, 0, :]
    new_state = dict(W=W_new, X=X_new, WM=WM_new, trace=trace_new)
    return probs, errors, rs, new_state


if __name__ == "__main__":
    key = jax.random.PRNGKey(0)
    # n_stimuli == n_representations == n_outcomes is required by the reference shapes.
    N = 32          # n_stimuli / n_representations / n_outcomes
    n_resp = 8      # n_responses
    T = 8           # number of sequential HER forward steps in the episode

    k_w, k_wr, k_s, k_o, k_a, k_u = jax.random.split(key, 6)
    W0 = jax.random.normal(k_w, (N, N), jnp.float32)             # HERLayer.W ~ randn
    Wr = jax.random.normal(k_wr, (N, n_resp), jnp.float32)       # W_response ~ randn
    X0 = jnp.zeros((N, N), jnp.float32)                          # WM_Gate.X = zeros
    WM0 = jnp.zeros((1, N), jnp.float32)                         # WM buffer (layer 0)
    tr0 = jnp.zeros((1, N), jnp.float32)                         # eligibility trace

    s_seq = jax.random.normal(k_s, (T, N), jnp.float32)
    o_seq = jax.random.normal(k_o, (T, N), jnp.float32)
    a_idx_seq = jax.random.randint(k_a, (T,), 0, N, dtype=jnp.int32)
    u_seq = jax.random.uniform(k_u, (T, N), jnp.float32)         # Bernoulli uniforms

    probs, errors, rs, new_state = her_forward_episode(
        s_seq, a_idx_seq, o_seq, u_seq,
        W=W0, X=X0, W_response=Wr, WM=WM0, trace=tr0,
        beta=15.0, bias=0.1, alpha_gate=0.075, alpha_layer=0.075,
        lam=0.1, gamma=10.0)

    jax.block_until_ready((probs, errors, rs, new_state))

    assert probs.shape == (T, n_resp)
    assert errors.shape == (T, N) and rs.shape == (T, N)
    assert new_state["W"].shape == (N, N) and new_state["X"].shape == (N, N)
    assert new_state["WM"].shape == (1, N) and new_state["trace"].shape == (1, N)
    assert bool(jnp.isfinite(probs).all())
    assert bool(jnp.isfinite(new_state["W"]).all())
    assert bool(jnp.isfinite(new_state["X"]).all())
    # softmax rows must sum to ~1 (approx-reciprocal normalization -> loose tolerance)
    assert bool(jnp.allclose(jnp.sum(probs, axis=-1), 1.0, atol=1e-2))
    print("KERNEL_OK")
</pallas_src>

<mosaic_0001>
module attributes {stable_mosaic.version = 11 : i64} {
  func.func @_her_kernel(%arg0: memref<8xi32, #tpu.memory_space<smem>>, %arg1: memref<8x1x32xf32, #tpu.memory_space<vmem>>, %arg2: memref<8x1x32xf32, #tpu.memory_space<vmem>>, %arg3: memref<8x1x32xf32, #tpu.memory_space<vmem>>, %arg4: memref<32x32xf32, #tpu.memory_space<vmem>>, %arg5: memref<32x32xf32, #tpu.memory_space<vmem>>, %arg6: memref<32x8xf32, #tpu.memory_space<vmem>>, %arg7: memref<1x32xf32, #tpu.memory_space<vmem>>, %arg8: memref<1x32xf32, #tpu.memory_space<vmem>>, %arg9: memref<8x2x32xf32, #tpu.memory_space<vmem>>, %arg10: memref<8x1x8xf32, #tpu.memory_space<vmem>>, %arg11: memref<32x32xf32, #tpu.memory_space<vmem>>, %arg12: memref<32x32xf32, #tpu.memory_space<vmem>>, %arg13: memref<1x32xf32, #tpu.memory_space<vmem>>, %arg14: memref<1x32xf32, #tpu.memory_space<vmem>>) attributes {dimension_semantics = [], scalar_prefetch = 0 : i64, scratch_operands = 0 : i64, tpu.core_type = #tpu.core_type<tc>} {
    %c0 = arith.constant 0 : index
    %c0_0 = arith.constant 0 : index
    %0 = vector.load %arg4[%c0, %c0_0] : memref<32x32xf32, #tpu.memory_space<vmem>>, vector<32x32xf32>
    %c0_1 = arith.constant 0 : index
    %c0_2 = arith.constant 0 : index
    %1 = vector.load %arg11[%c0_1, %c0_2] : memref<32x32xf32, #tpu.memory_space<vmem>>, vector<32x32xf32>
    tpu.vector_store %arg11[%c0_1, %c0_2], %0 {strides = array<i32>} : memref<32x32xf32, #tpu.memory_space<vmem>>, vector<32x32xf32>,
    %c0_3 = arith.constant 0 : index
    %c0_4 = arith.constant 0 : index
    %2 = vector.load %arg5[%c0_3, %c0_4] : memref<32x32xf32, #tpu.memory_space<vmem>>, vector<32x32xf32>
    %c0_5 = arith.constant 0 : index
    %c0_6 = arith.constant 0 : index
    %3 = vector.load %arg12[%c0_5, %c0_6] : memref<32x32xf32, #tpu.memory_space<vmem>>, vector<32x32xf32>
    tpu.vector_store %arg12[%c0_5, %c0_6], %2 {strides = array<i32>} : memref<32x32xf32, #tpu.memory_space<vmem>>, vector<32x32xf32>,
    %c0_7 = arith.constant 0 : index
    %c0_8 = arith.constant 0 : index
    %4 = vector.load %arg6[%c0_7, %c0_8] : memref<32x8xf32, #tpu.memory_space<vmem>>, vector<32x8xf32>
    %c0_9 = arith.constant 0 : index
    %c0_10 = arith.constant 0 : index
    %5 = vector.load %arg7[%c0_9, %c0_10] : memref<1x32xf32, #tpu.memory_space<vmem>>, vector<1x32xf32>
    %c0_11 = arith.constant 0 : index
    %c0_12 = arith.constant 0 : index
    %6 = vector.load %arg8[%c0_11, %c0_12] : memref<1x32xf32, #tpu.memory_space<vmem>>, vector<1x32xf32>
    %c0_i32 = arith.constant 0 : i32
    %7 = arith.index_cast %c0_i32 : i32 to index
    %c0_13 = arith.constant 0 : index
    %c0_14 = arith.constant 0 : index
    %8 = vector.load %arg1[%7, %c0_13, %c0_14] : memref<8x1x32xf32, #tpu.memory_space<vmem>>, vector<1x1x32xf32>
    %9 = vector.shape_cast %8 : vector<1x1x32xf32> to vector<1x32xf32>
    %10 = arith.index_cast %c0_i32 : i32 to index
    %c0_15 = arith.constant 0 : index
    %c0_16 = arith.constant 0 : index
    %11 = vector.load %arg2[%10, %c0_15, %c0_16] : memref<8x1x32xf32, #tpu.memory_space<vmem>>, vector<1x1x32xf32>
    %12 = vector.shape_cast %11 : vector<1x1x32xf32> to vector<1x32xf32>
    %13 = arith.index_cast %c0_i32 : i32 to index
    %c0_17 = arith.constant 0 : index
    %c0_18 = arith.constant 0 : index
    %14 = vector.load %arg3[%13, %c0_17, %c0_18] : memref<8x1x32xf32, #tpu.memory_space<vmem>>, vector<1x1x32xf32>
    %15 = vector.shape_cast %14 : vector<1x1x32xf32> to vector<1x32xf32>
    %c0_19 = arith.constant 0 : index
    %c0_20 = arith.constant 0 : index
    %16 = vector.load %arg11[%c0_19, %c0_20] : memref<32x32xf32, #tpu.memory_space<vmem>>, vector<32x32xf32>
    %c0_21 = arith.constant 0 : index
    %c0_22 = arith.constant 0 : index
    %17 = vector.load %arg12[%c0_21, %c0_22] : memref<32x32xf32, #tpu.memory_space<vmem>>, vector<32x32xf32>
    %18 = tpu.concatenate %9, %5 in 0 : vector<1x32xf32>, vector<1x32xf32> -> vector<2x32xf32>
    %cst = arith.constant dense<0.000000e+00> : vector<2x32xf32>
    %19 = tpu.matmul %18, %17, %cst {dimension_numbers = #tpu.dot_dimension_numbers<[1], [0], [0], [1], [0, 0, 1, 1], [], []>} : vector<2x32xf32>, vector<32x32xf32>, vector<2x32xf32> -> vector<2x32xf32>
    %20 = vector.extract_strided_slice %19 {offsets = [0, 0], sizes = [1, 32], strides = [1, 1]} : vector<2x32xf32> to vector<1x32xf32>
    %cst_23 = arith.constant 1.500000e+01 : f32
    %21 = vector.broadcast %cst_23 : f32 to vector<1x32xf32>
    %22 = arith.mulf %21, %20 : vector<1x32xf32>
    %23 = vector.extract_strided_slice %19 {offsets = [1, 0], sizes = [1, 32], strides = [1, 1]} : vector<2x32xf32> to vector<1x32xf32>
    %cst_24 = arith.constant 1.500000e+01 : f32
    %24 = vector.broadcast %cst_24 : f32 to vector<1x32xf32>
    %25 = arith.mulf %24, %23 : vector<1x32xf32>
    %26 = arith.maximumf %22, %25 : vector<1x32xf32>
    %cst_25 = arith.constant 0.000000e+00 : f32
    %27 = vector.broadcast %cst_25 : f32 to vector<1x32xf32>
    %28 = arith.maximumf %26, %27 : vector<1x32xf32>
    %29 = arith.subf %22, %28 : vector<1x32xf32>
    %30 = math.exp %29 : vector<1x32xf32>
    %31 = arith.subf %25, %28 : vector<1x32xf32>
    %32 = math.exp %31 : vector<1x32xf32>
    %cst_26 = arith.constant 0.000000e+00 : f32
    %33 = vector.broadcast %cst_26 : f32 to vector<1x32xf32>
    %34 = arith.subf %33, %28 : vector<1x32xf32>
    %35 = math.exp %34 : vector<1x32xf32>
    %cst_27 = arith.constant 1.000000e-01 : f32
    %36 = vector.broadcast %cst_27 : f32 to vector<1x32xf32>
    %37 = arith.mulf %36, %35 : vector<1x32xf32>
    %38 = arith.addf %30, %37 : vector<1x32xf32>
    %39 = arith.addf %30, %37 : vector<1x32xf32>
    %40 = arith.addf %39, %32 : vector<1x32xf32>
    %41 = tpu.reciprocal %40 {approx = true} : vector<1x32xf32> -> vector<1x32xf32>
    %42 = arith.mulf %38, %41 : vector<1x32xf32>
    %43 = arith.cmpf olt, %15, %42 : vector<1x32xf32>
    %44 = arith.extui %43 : vector<1x32xi1> to vector<1x32xi32>
    %45 = arith.sitofp %44 : vector<1x32xi32> to vector<1x32xf32>
    %46 = arith.mulf %45, %9 : vector<1x32xf32>
    %cst_28 = arith.constant 1.000000e-01 : f32
    %47 = vector.broadcast %cst_28 : f32 to vector<1x32xf32>
    %48 = arith.mulf %47, %6 : vector<1x32xf32>
    %cst_29 = arith.constant 0.899999976 : f32
    %49 = vector.broadcast %cst_29 : f32 to vector<1x32xf32>
    %50 = arith.mulf %49, %9 : vector<1x32xf32>
    %51 = arith.addf %48, %50 : vector<1x32xf32>
    %cst_30 = arith.constant dense<0.000000e+00> : vector<1x32xf32>
    %52 = tpu.matmul %46, %16, %cst_30 {dimension_numbers = #tpu.dot_dimension_numbers<[1], [0], [0], [1], [0, 0, 1, 1], [], []>} : vector<1x32xf32>, vector<32x32xf32>, vector<1x32xf32> -> vector<1x32xf32>
    %53 = arith.index_cast %c0_i32 : i32 to index
    %54 = memref.load %arg0[%53] : memref<8xi32, #tpu.memory_space<smem>>
    %55 = tpu.iota {dimensions = array<i32: 1>} : vector<1x32xi32>
    %56 = vector.broadcast %54 : i32 to vector<1x32xi32>
    %57 = arith.cmpi eq, %55, %56 : vector<1x32xi32>
    %58 = arith.extui %57 : vector<1x32xi1> to vector<1x32xi32>
    %59 = arith.sitofp %58 : vector<1x32xi32> to vector<1x32xf32>
    %60 = arith.subf %12, %52 : vector<1x32xf32>
    %61 = arith.mulf %59, %60 : vector<1x32xf32>
    %cst_31 = arith.constant dense<0.000000e+00> : vector<1xf32>
    %62 = vector.multi_reduction <add>, %61, %cst_31 [1] : vector<1x32xf32> to vector<1xf32>
    %63 = vector.shape_cast %62 : vector<1xf32> to vector<1x1xf32>
    %64 = arith.index_cast %54 : i32 to index
    %c0_32 = arith.constant 0 : index
    %65 = vector.load %arg11[%64, %c0_32] : memref<32x32xf32, #tpu.memory_space<vmem>>, vector<1x32xf32>
    %cst_33 = arith.constant 7.500000e-02 : f32
    %66 = vector.broadcast %cst_33 : f32 to vector<1x1xf32>
    %67 = arith.mulf %66, %63 : vector<1x1xf32>
    %68 = vector.broadcast %67 : vector<1x1xf32> to vector<1x32xf32>
    %69 = arith.mulf %68, %46 : vector<1x32xf32>
    %70 = arith.addf %65, %69 : vector<1x32xf32>
    %71 = arith.index_cast %54 : i32 to index
    %c0_34 = arith.constant 0 : index
    %72 = vector.load %arg11[%71, %c0_34] : memref<32x32xf32, #tpu.memory_space<vmem>>, vector<1x32xf32>
    tpu.vector_store %arg11[%71, %c0_34], %70 {strides = array<i32>} : memref<32x32xf32, #tpu.memory_space<vmem>>, vector<1x32xf32>,
    %73 = arith.index_cast %54 : i32 to index
    %c0_35 = arith.constant 0 : index
    %74 = vector.load %arg12[%73, %c0_35] : memref<32x32xf32, #tpu.memory_space<vmem>>, vector<1x32xf32>
    %cst_36 = arith.constant 7.500000e-02 : f32
    %75 = vector.broadcast %cst_36 : f32 to vector<1x1xf32>
    %76 = arith.mulf %75, %63 : vector<1x1xf32>
    %77 = vector.broadcast %76 : vector<1x1xf32> to vector<1x32xf32>
    %78 = arith.mulf %77, %51 : vector<1x32xf32>
    %79 = arith.addf %74, %78 : vector<1x32xf32>
    %80 = arith.index_cast %54 : i32 to index
    %c0_37 = arith.constant 0 : index
    %81 = vector.load %arg12[%80, %c0_37] : memref<32x32xf32, #tpu.memory_space<vmem>>, vector<1x32xf32>
    tpu.vector_store %arg12[%80, %c0_37], %79 {strides = array<i32>} : memref<32x32xf32, #tpu.memory_space<vmem>>, vector<1x32xf32>,
    %82 = arith.mulf %61, %46 : vector<1x32xf32>
    %cst_38 = arith.constant dense<0.000000e+00> : vector<1xf32>
    %83 = vector.multi_reduction <add>, %82, %cst_38 [1] : vector<1x32xf32> to vector<1xf32>
    %84 = vector.shape_cast %83 : vector<1xf32> to vector<1x1xf32>
    %cst_39 = arith.constant 7.500000e-02 : f32
    %85 = vector.broadcast %cst_39 : f32 to vector<1x1xf32>
    %86 = arith.mulf %85, %84 : vector<1x1xf32>
    %87 = vector.broadcast %86 : vector<1x1xf32> to vector<1x32xf32>
    %88 = arith.mulf %87, %46 : vector<1x32xf32>
    %89 = arith.addf %52, %88 : vector<1x32xf32>
    %cst_40 = arith.constant dense<0.000000e+00> : vector<1x8xf32>
    %90 = tpu.matmul %89, %4, %cst_40 {dimension_numbers = #tpu.dot_dimension_numbers<[1], [0], [0], [1], [0, 0, 1, 1], [], []>} : vector<1x32xf32>, vector<32x8xf32>, vector<1x8xf32> -> vector<1x8xf32>
    %cst_41 = arith.constant 1.000000e+01 : f32
    %91 = vector.broadcast %cst_41 : f32 to vector<1x8xf32>
    %92 = arith.mulf %91, %90 : vector<1x8xf32>
    %cst_42 = arith.constant dense<0xFF800000> : vector<1xf32>
    %93 = vector.multi_reduction <maximumf>, %92, %cst_42 [1] : vector<1x8xf32> to vector<1xf32>
    %94 = vector.shape_cast %93 : vector<1xf32> to vector<1x1xf32>
    %95 = vector.broadcast %94 : vector<1x1xf32> to vector<1x8xf32>
    %96 = arith.subf %92, %95 : vector<1x8xf32>
    %97 = math.exp %96 : vector<1x8xf32>
    %cst_43 = arith.constant dense<0.000000e+00> : vector<1xf32>
    %98 = vector.multi_reduction <add>, %97, %cst_43 [1] : vector<1x8xf32> to vector<1xf32>
    %99 = vector.shape_cast %98 : vector<1xf32> to vector<1x1xf32>
    %100 = tpu.reciprocal %99 {approx = true} : vector<1x1xf32> -> vector<1x1xf32>
    %101 = vector.broadcast %100 : vector<1x1xf32> to vector<1x8xf32>
    %102 = arith.mulf %97, %101 : vector<1x8xf32>
    %103 = tpu.concatenate %61, %46 in 0 : vector<1x32xf32>, vector<1x32xf32> -> vector<2x32xf32>
    %104 = arith.index_cast %c0_i32 : i32 to index
    %c0_44 = arith.constant 0 : index
    %c0_45 = arith.constant 0 : index
    %105 = vector.load %arg9[%104, %c0_44, %c0_45] : memref<8x2x32xf32, #tpu.memory_space<vmem>>, vector<1x2x32xf32>
    %106 = vector.shape_cast %105 : vector<1x2x32xf32> to vector<2x32xf32>
    %107 = vector.shape_cast %103 : vector<2x32xf32> to vector<1x2x32xf32>
    tpu.vector_store %arg9[%104, %c0_44, %c0_45], %107 {strides = array<i32>} : memref<8x2x32xf32, #tpu.memory_space<vmem>>, vector<1x2x32xf32>,
    %108 = arith.index_cast %c0_i32 : i32 to index
    %c0_46 = arith.constant 0 : index
    %c0_47 = arith.constant 0 : index
    %109 = vector.load %arg10[%108, %c0_46, %c0_47] : memref<8x1x8xf32, #tpu.memory_space<vmem>>, vector<1x1x8xf32>
    %110 = vector.shape_cast %109 : vector<1x1x8xf32> to vector<1x8xf32>
    %111 = vector.shape_cast %102 : vector<1x8xf32> to vector<1x1x8xf32>
    tpu.vector_store %arg10[%108, %c0_46, %c0_47], %111 {strides = array<i32>} : memref<8x1x8xf32, #tpu.memory_space<vmem>>, vector<1x1x8xf32>,
    %c1_i32 = arith.constant 1 : i32
    %112 = arith.index_cast %c1_i32 : i32 to index
    %c0_48 = arith.constant 0 : index
    %c0_49 = arith.constant 0 : index
    %113 = vector.load %arg1[%112, %c0_48, %c0_49] : memref<8x1x32xf32, #tpu.memory_space<vmem>>, vector<1x1x32xf32>
    %114 = vector.shape_cast %113 : vector<1x1x32xf32> to vector<1x32xf32>
    %115 = arith.index_cast %c1_i32 : i32 to index
    %c0_50 = arith.constant 0 : index
    %c0_51 = arith.constant 0 : index
    %116 = vector.load %arg2[%115, %c0_50, %c0_51] : memref<8x1x32xf32, #tpu.memory_space<vmem>>, vector<1x1x32xf32>
    %117 = vector.shape_cast %116 : vector<1x1x32xf32> to vector<1x32xf32>
    %118 = arith.index_cast %c1_i32 : i32 to index
    %c0_52 = arith.constant 0 : index
    %c0_53 = arith.constant 0 : index
    %119 = vector.load %arg3[%118, %c0_52, %c0_53] : memref<8x1x32xf32, #tpu.memory_space<vmem>>, vector<1x1x32xf32>
    %120 = vector.shape_cast %119 : vector<1x1x32xf32> to vector<1x32xf32>
    %c0_54 = arith.constant 0 : index
    %c0_55 = arith.constant 0 : index
    %121 = vector.load %arg11[%c0_54, %c0_55] : memref<32x32xf32, #tpu.memory_space<vmem>>, vector<32x32xf32>
    %c0_56 = arith.constant 0 : index
    %c0_57 = arith.constant 0 : index
    %122 = vector.load %arg12[%c0_56, %c0_57] : memref<32x32xf32, #tpu.memory_space<vmem>>, vector<32x32xf32>
    %123 = tpu.concatenate %114, %46 in 0 : vector<1x32xf32>, vector<1x32xf32> -> vector<2x32xf32>
    %cst_58 = arith.constant dense<0.000000e+00> : vector<2x32xf32>
    %124 = tpu.matmul %123, %122, %cst_58 {dimension_numbers = #tpu.dot_dimension_numbers<[1], [0], [0], [1], [0, 0, 1, 1], [], []>} : vector<2x32xf32>, vector<32x32xf32>, vector<2x32xf32> -> vector<2x32xf32>
    %125 = vector.extract_strided_slice %124 {offsets = [0, 0], sizes = [1, 32], strides = [1, 1]} : vector<2x32xf32> to vector<1x32xf32>
    %cst_59 = arith.constant 1.500000e+01 : f32
    %126 = vector.broadcast %cst_59 : f32 to vector<1x32xf32>
    %127 = arith.mulf %126, %125 : vector<1x32xf32>
    %128 = vector.extract_strided_slice %124 {offsets = [1, 0], sizes = [1, 32], strides = [1, 1]} : vector<2x32xf32> to vector<1x32xf32>
    %cst_60 = arith.constant 1.500000e+01 : f32
    %129 = vector.broadcast %cst_60 : f32 to vector<1x32xf32>
    %130 = arith.mulf %129, %128 : vector<1x32xf32>
    %131 = arith.maximumf %127, %130 : vector<1x32xf32>
    %cst_61 = arith.constant 0.000000e+00 : f32
    %132 = vector.broadcast %cst_61 : f32 to vector<1x32xf32>
    %133 = arith.maximumf %131, %132 : vector<1x32xf32>
    %134 = arith.subf %127, %133 : vector<1x32xf32>
    %135 = math.exp %134 : vector<1x32xf32>
    %136 = arith.subf %130, %133 : vector<1x32xf32>
    %137 = math.exp %136 : vector<1x32xf32>
    %cst_62 = arith.constant 0.000000e+00 : f32
    %138 = vector.broadcast %cst_62 : f32 to vector<1x32xf32>
    %139 = arith.subf %138, %133 : vector<1x32xf32>
    %140 = math.exp %139 : vector<1x32xf32>
    %cst_63 = arith.constant 1.000000e-01 : f32
    %141 = vector.broadcast %cst_63 : f32 to vector<1x32xf32>
    %142 = arith.mulf %141, %140 : vector<1x32xf32>
    %143 = arith.addf %135, %142 : vector<1x32xf32>
    %144 = arith.addf %135, %142 : vector<1x32xf32>
    %145 = arith.addf %144, %137 : vector<1x32xf32>
    %146 = tpu.reciprocal %145 {approx = true} : vector<1x32xf32> -> vector<1x32xf32>
    %147 = arith.mulf %143, %146 : vector<1x32xf32>
    %148 = arith.cmpf olt, %120, %147 : vector<1x32xf32>
    %149 = arith.extui %148 : vector<1x32xi1> to vector<1x32xi32>
    %150 = arith.sitofp %149 : vector<1x32xi32> to vector<1x32xf32>
    %151 = arith.mulf %150, %114 : vector<1x32xf32>
    %cst_64 = arith.constant 1.000000e-01 : f32
    %152 = vector.broadcast %cst_64 : f32 to vector<1x32xf32>
    %153 = arith.mulf %152, %51 : vector<1x32xf32>
    %cst_65 = arith.constant 0.899999976 : f32
    %154 = vector.broadcast %cst_65 : f32 to vector<1x32xf32>
    %155 = arith.mulf %154, %114 : vector<1x32xf32>
    %156 = arith.addf %153, %155 : vector<1x32xf32>
    %cst_66 = arith.constant dense<0.000000e+00> : vector<1x32xf32>
    %157 = tpu.matmul %151, %121, %cst_66 {dimension_numbers = #tpu.dot_dimension_numbers<[1], [0], [0], [1], [0, 0, 1, 1], [], []>} : vector<1x32xf32>, vector<32x32xf32>, vector<1x32xf32> -> vector<1x32xf32>
    %158 = arith.index_cast %c1_i32 : i32 to index
    %159 = memref.load %arg0[%158] : memref<8xi32, #tpu.memory_space<smem>>
    %160 = tpu.iota {dimensions = array<i32: 1>} : vector<1x32xi32>
    %161 = vector.broadcast %159 : i32 to vector<1x32xi32>
    %162 = arith.cmpi eq, %160, %161 : vector<1x32xi32>
    %163 = arith.extui %162 : vector<1x32xi1> to vector<1x32xi32>
    %164 = arith.sitofp %163 : vector<1x32xi32> to vector<1x32xf32>
    %165 = arith.subf %117, %157 : vector<1x32xf32>
    %166 = arith.mulf %164, %165 : vector<1x32xf32>
    %cst_67 = arith.constant dense<0.000000e+00> : vector<1xf32>
    %167 = vector.multi_reduction <add>, %166, %cst_67 [1] : vector<1x32xf32> to vector<1xf32>
    %168 = vector.shape_cast %167 : vector<1xf32> to vector<1x1xf32>
    %169 = arith.index_cast %159 : i32 to index
    %c0_68 = arith.constant 0 : index
    %170 = vector.load %arg11[%169, %c0_68] : memref<32x32xf32, #tpu.memory_space<vmem>>, vector<1x32xf32>
    %cst_69 = arith.constant 7.500000e-02 : f32
    %171 = vector.broadcast %cst_69 : f32 to vector<1x1xf32>
    %172 = arith.mulf %171, %168 : vector<1x1xf32>
    %173 = vector.broadcast %172 : vector<1x1xf32> to vector<1x32xf32>
    %174 = arith.mulf %173, %151 : vector<1x32xf32>
    %175 = arith.addf %170, %174 : vector<1x32xf32>
    %176 = arith.index_cast %159 : i32 to index
    %c0_70 = arith.constant 0 : index
    %177 = vector.load %arg11[%176, %c0_70] : memref<32x32xf32, #tpu.memory_space<vmem>>, vector<1x32xf32>
    tpu.vector_store %arg11[%176, %c0_70], %175 {strides = array<i32>} : memref<32x32xf32, #tpu.memory_space<vmem>>, vector<1x32xf32>,
    %178 = arith.index_cast %159 : i32 to index
    %c0_71 = arith.constant 0 : index
    %179 = vector.load %arg12[%178, %c0_71] : memref<32x32xf32, #tpu.memory_space<vmem>>, vector<1x32xf32>
    %cst_72 = arith.constant 7.500000e-02 : f32
    %180 = vector.broadcast %cst_72 : f32 to vector<1x1xf32>
    %181 = arith.mulf %180, %168 : vector<1x1xf32>
    %182 = vector.broadcast %181 : vector<1x1xf32> to vector<1x32xf32>
    %183 = arith.mulf %182, %156 : vector<1x32xf32>
    %184 = arith.addf %179, %183 : vector<1x32xf32>
    %185 = arith.index_cast %159 : i32 to index
    %c0_73 = arith.constant 0 : index
    %186 = vector.load %arg12[%185, %c0_73] : memref<32x32xf32, #tpu.memory_space<vmem>>, vector<1x32xf32>
    tpu.vector_store %arg12[%185, %c0_73], %184 {strides = array<i32>} : memref<32x32xf32, #tpu.memory_space<vmem>>, vector<1x32xf32>,
    %187 = arith.mulf %166, %151 : vector<1x32xf32>
    %cst_74 = arith.constant dense<0.000000e+00> : vector<1xf32>
    %188 = vector.multi_reduction <add>, %187, %cst_74 [1] : vector<1x32xf32> to vector<1xf32>
    %189 = vector.shape_cast %188 : vector<1xf32> to vector<1x1xf32>
    %cst_75 = arith.constant 7.500000e-02 : f32
    %190 = vector.broadcast %cst_75 : f32 to vector<1x1xf32>
    %191 = arith.mulf %190, %189 : vector<1x1xf32>
    %192 = vector.broadcast %191 : vector<1x1xf32> to vector<1x32xf32>
    %193 = arith.mulf %192, %151 : vector<1x32xf32>
    %194 = arith.addf %157, %193 : vector<1x32xf32>
    %cst_76 = arith.constant dense<0.000000e+00> : vector<1x8xf32>
    %195 = tpu.matmul %194, %4, %cst_76 {dimension_numbers = #tpu.dot_dimension_numbers<[1], [0], [0], [1], [0, 0, 1, 1], [], []>} : vector<1x32xf32>, vector<32x8xf32>, vector<1x8xf32> -> vector<1x8xf32>
    %cst_77 = arith.constant 1.000000e+01 : f32
    %196 = vector.broadcast %cst_77 : f32 to vector<1x8xf32>
    %197 = arith.mulf %196, %195 : vector<1x8xf32>
    %cst_78 = arith.constant dense<0xFF800000> : vector<1xf32>
    %198 = vector.multi_reduction <maximumf>, %197, %cst_78 [1] : vector<1x8xf32> to vector<1xf32>
    %199 = vector.shape_cast %198 : vector<1xf32> to vector<1x1xf32>
    %200 = vector.broadcast %199 : vector<1x1xf32> to vector<1x8xf32>
    %201 = arith.subf %197, %200 : vector<1x8xf32>
    %202 = math.exp %201 : vector<1x8xf32>
    %cst_79 = arith.constant dense<0.000000e+00> : vector<1xf32>
    %203 = vector.multi_reduction <add>, %202, %cst_79 [1] : vector<1x8xf32> to vector<1xf32>
    %204 = vector.shape_cast %203 : vector<1xf32> to vector<1x1xf32>
    %205 = tpu.reciprocal %204 {approx = true} : vector<1x1xf32> -> vector<1x1xf32>
    %206 = vector.broadcast %205 : vector<1x1xf32> to vector<1x8xf32>
    %207 = arith.mulf %202, %206 : vector<1x8xf32>
    %208 = tpu.concatenate %166, %151 in 0 : vector<1x32xf32>, vector<1x32xf32> -> vector<2x32xf32>
    %209 = arith.index_cast %c1_i32 : i32 to index
    %c0_80 = arith.constant 0 : index
    %c0_81 = arith.constant 0 : index
    %210 = vector.load %arg9[%209, %c0_80, %c0_81] : memref<8x2x32xf32, #tpu.memory_space<vmem>>, vector<1x2x32xf32>
    %211 = vector.shape_cast %210 : vector<1x2x32xf32> to vector<2x32xf32>
    %212 = vector.shape_cast %208 : vector<2x32xf32> to vector<1x2x32xf32>
    tpu.vector_store %arg9[%209, %c0_80, %c0_81], %212 {strides = array<i32>} : memref<8x2x32xf32, #tpu.memory_space<vmem>>, vector<1x2x32xf32>,
    %213 = arith.index_cast %c1_i32 : i32 to index
    %c0_82 = arith.constant 0 : index
    %c0_83 = arith.constant 0 : index
    %214 = vector.load %arg10[%213, %c0_82, %c0_83] : memref<8x1x8xf32, #tpu.memory_space<vmem>>, vector<1x1x8xf32>
    %215 = vector.shape_cast %214 : vector<1x1x8xf32> to vector<1x8xf32>
    %216 = vector.shape_cast %207 : vector<1x8xf32> to vector<1x1x8xf32>
    tpu.vector_store %arg10[%213, %c0_82, %c0_83], %216 {strides = array<i32>} : memref<8x1x8xf32, #tpu.memory_space<vmem>>, vector<1x1x8xf32>,
    %c2_i32 = arith.constant 2 : i32
    %217 = arith.index_cast %c2_i32 : i32 to index
    %c0_84 = arith.constant 0 : index
    %c0_85 = arith.constant 0 : index
    %218 = vector.load %arg1[%217, %c0_84, %c0_85] : memref<8x1x32xf32, #tpu.memory_space<vmem>>, vector<1x1x32xf32>
    %219 = vector.shape_cast %218 : vector<1x1x32xf32> to vector<1x32xf32>
    %220 = arith.index_cast %c2_i32 : i32 to index
    %c0_86 = arith.constant 0 : index
    %c0_87 = arith.constant 0 : index
    %221 = vector.load %arg2[%220, %c0_86, %c0_87] : memref<8x1x32xf32, #tpu.memory_space<vmem>>, vector<1x1x32xf32>
    %222 = vector.shape_cast %221 : vector<1x1x32xf32> to vector<1x32xf32>
    %223 = arith.index_cast %c2_i32 : i32 to index
    %c0_88 = arith.constant 0 : index
    %c0_89 = arith.constant 0 : index
    %224 = vector.load %arg3[%223, %c0_88, %c0_89] : memref<8x1x32xf32, #tpu.memory_space<vmem>>, vector<1x1x32xf32>
    %225 = vector.shape_cast %224 : vector<1x1x32xf32> to vector<1x32xf32>
    %c0_90 = arith.constant 0 : index
    %c0_91 = arith.constant 0 : index
    %226 = vector.load %arg11[%c0_90, %c0_91] : memref<32x32xf32, #tpu.memory_space<vmem>>, vector<32x32xf32>
    %c0_92 = arith.constant 0 : index
    %c0_93 = arith.constant 0 : index
    %227 = vector.load %arg12[%c0_92, %c0_93] : memref<32x32xf32, #tpu.memory_space<vmem>>, vector<32x32xf32>
    %228 = tpu.concatenate %219, %151 in 0 : vector<1x32xf32>, vector<1x32xf32> -> vector<2x32xf32>
    %cst_94 = arith.constant dense<0.000000e+00> : vector<2x32xf32>
    %229 = tpu.matmul %228, %227, %cst_94 {dimension_numbers = #tpu.dot_dimension_numbers<[1], [0], [0], [1], [0, 0, 1, 1], [], []>} : vector<2x32xf32>, vector<32x32xf32>, vector<2x32xf32> -> vector<2x32xf32>
    %230 = vector.extract_strided_slice %229 {offsets = [0, 0], sizes = [1, 32], strides = [1, 1]} : vector<2x32xf32> to vector<1x32xf32>
    %cst_95 = arith.constant 1.500000e+01 : f32
    %231 = vector.broadcast %cst_95 : f32 to vector<1x32xf32>
    %232 = arith.mulf %231, %230 : vector<1x32xf32>
    %233 = vector.extract_strided_slice %229 {offsets = [1, 0], sizes = [1, 32], strides = [1, 1]} : vector<2x32xf32> to vector<1x32xf32>
    %cst_96 = arith.constant 1.500000e+01 : f32
    %234 = vector.broadcast %cst_96 : f32 to vector<1x32xf32>
    %235 = arith.mulf %234, %233 : vector<1x32xf32>
    %236 = arith.maximumf %232, %235 : vector<1x32xf32>
    %cst_97 = arith.constant 0.000000e+00 : f32
    %237 = vector.broadcast %cst_97 : f32 to vector<1x32xf32>
    %238 = arith.maximumf %236, %237 : vector<1x32xf32>
    %239 = arith.subf %232, %238 : vector<1x32xf32>
    %240 = math.exp %239 : vector<1x32xf32>
    %241 = arith.subf %235, %238 : vector<1x32xf32>
    %242 = math.exp %241 : vector<1x32xf32>
    %cst_98 = arith.constant 0.000000e+00 : f32
    %243 = vector.broadcast %cst_98 : f32 to vector<1x32xf32>
    %244 = arith.subf %243, %238 : vector<1x32xf32>
    %245 = math.exp %244 : vector<1x32xf32>
    %cst_99 = arith.constant 1.000000e-01 : f32
    %246 = vector.broadcast %cst_99 : f32 to vector<1x32xf32>
    %247 = arith.mulf %246, %245 : vector<1x32xf32>
    %248 = arith.addf %240, %247 : vector<1x32xf32>
    %249 = arith.addf %240, %247 : vector<1x32xf32>
    %250 = arith.addf %249, %242 : vector<1x32xf32>
    %251 = tpu.reciprocal %250 {approx = true} : vector<1x32xf32> -> vector<1x32xf32>
    %252 = arith.mulf %248, %251 : vector<1x32xf32>
    %253 = arith.cmpf olt, %225, %252 : vector<1x32xf32>
    %254 = arith.extui %253 : vector<1x32xi1> to vector<1x32xi32>
    %255 = arith.sitofp %254 : vector<1x32xi32> to vector<1x32xf32>
    %256 = arith.mulf %255, %219 : vector<1x32xf32>
    %cst_100 = arith.constant 1.000000e-01 : f32
    %257 = vector.broadcast %cst_100 : f32 to vector<1x32xf32>
    %258 = arith.mulf %257, %156 : vector<1x32xf32>
    %cst_101 = arith.constant 0.899999976 : f32
    %259 = vector.broadcast %cst_101 : f32 to vector<1x32xf32>
    %260 = arith.mulf %259, %219 : vector<1x32xf32>
    %261 = arith.addf %258, %260 : vector<1x32xf32>
    %cst_102 = arith.constant dense<0.000000e+00> : vector<1x32xf32>
    %262 = tpu.matmul %256, %226, %cst_102 {dimension_numbers = #tpu.dot_dimension_numbers<[1], [0], [0], [1], [0, 0, 1, 1], [], []>} : vector<1x32xf32>, vector<32x32xf32>, vector<1x32xf32> -> vector<1x32xf32>
    %263 = arith.index_cast %c2_i32 : i32 to index
    %264 = memref.load %arg0[%263] : memref<8xi32, #tpu.memory_space<smem>>
    %265 = tpu.iota {dimensions = array<i32: 1>} : vector<1x32xi32>
    %266 = vector.broadcast %264 : i32 to vector<1x32xi32>
    %267 = arith.cmpi eq, %265, %266 : vector<1x32xi32>
    %268 = arith.extui %267 : vector<1x32xi1> to vector<1x32xi32>
    %269 = arith.sitofp %268 : vector<1x32xi32> to vector<1x32xf32>
    %270 = arith.subf %222, %262 : vector<1x32xf32>
    %271 = arith.mulf %269, %270 : vector<1x32xf32>
    %cst_103 = arith.constant dense<0.000000e+00> : vector<1xf32>
    %272 = vector.multi_reduction <add>, %271, %cst_103 [1] : vector<1x32xf32> to vector<1xf32>
    %273 = vector.shape_cast %272 : vector<1xf32> to vector<1x1xf32>
    %274 = arith.index_cast %264 : i32 to index
    %c0_104 = arith.constant 0 : index
    %275 = vector.load %arg11[%274, %c0_104] : memref<32x32xf32, #tpu.memory_space<vmem>>, vector<1x32xf32>
    %cst_105 = arith.constant 7.500000e-02 : f32
    %276 = vector.broadcast %cst_105 : f32 to vector<1x1xf32>
    %277 = arith.mulf %276, %273 : vector<1x1xf32>
    %278 = vector.broadcast %277 : vector<1x1xf32> to vector<1x32xf32>
    %279 = arith.mulf %278, %256 : vector<1x32xf32>
    %280 = arith.addf %275, %279 : vector<1x32xf32>
    %281 = arith.index_cast %264 : i32 to index
    %c0_106 = arith.constant 0 : index
    %282 = vector.load %arg11[%281, %c0_106] : memref<32x32xf32, #tpu.memory_space<vmem>>, vector<1x32xf32>
    tpu.vector_store %arg11[%281, %c0_106], %280 {strides = array<i32>} : memref<32x32xf32, #tpu.memory_space<vmem>>, vector<1x32xf32>,
    %283 = arith.index_cast %264 : i32 to index
    %c0_107 = arith.constant 0 : index
    %284 = vector.load %arg12[%283, %c0_107] : memref<32x32xf32, #tpu.memory_space<vmem>>, vector<1x32xf32>
    %cst_108 = arith.constant 7.500000e-02 : f32
    %285 = vector.broadcast %cst_108 : f32 to vector<1x1xf32>
    %286 = arith.mulf %285, %273 : vector<1x1xf32>
    %287 = vector.broadcast %286 : vector<1x1xf32> to vector<1x32xf32>
    %288 = arith.mulf %287, %261 : vector<1x32xf32>
    %289 = arith.addf %284, %288 : vector<1x32xf32>
    %290 = arith.index_cast %264 : i32 to index
    %c0_109 = arith.constant 0 : index
    %291 = vector.load %arg12[%290, %c0_109] : memref<32x32xf32, #tpu.memory_space<vmem>>, vector<1x32xf32>
    tpu.vector_store %arg12[%290, %c0_109], %289 {strides = array<i32>} : memref<32x32xf32, #tpu.memory_space<vmem>>, vector<1x32xf32>,
    %292 = arith.mulf %271, %256 : vector<1x32xf32>
    %cst_110 = arith.constant dense<0.000000e+00> : vector<1xf32>
    %293 = vector.multi_reduction <add>, %292, %cst_110 [1] : vector<1x32xf32> to vector<1xf32>
    %294 = vector.shape_cast %293 : vector<1xf32> to vector<1x1xf32>
    %cst_111 = arith.constant 7.500000e-02 : f32
    %295 = vector.broadcast %cst_111 : f32 to vector<1x1xf32>
    %296 = arith.mulf %295, %294 : vector<1x1xf32>
    %297 = vector.broadcast %296 : vector<1x1xf32> to vector<1x32xf32>
    %298 = arith.mulf %297, %256 : vector<1x32xf32>
    %299 = arith.addf %262, %298 : vector<1x32xf32>
    %cst_112 = arith.constant dense<0.000000e+00> : vector<1x8xf32>
    %300 = tpu.matmul %299, %4, %cst_112 {dimension_numbers = #tpu.dot_dimension_numbers<[1], [0], [0], [1], [0, 0, 1, 1], [], []>} : vector<1x32xf32>, vector<32x8xf32>, vector<1x8xf32> -> vector<1x8xf32>
    %cst_113 = arith.constant 1.000000e+01 : f32
    %301 = vector.broadcast %cst_113 : f32 to vector<1x8xf32>
    %302 = arith.mulf %301, %300 : vector<1x8xf32>
    %cst_114 = arith.constant dense<0xFF800000> : vector<1xf32>
    %303 = vector.multi_reduction <maximumf>, %302, %cst_114 [1] : vector<1x8xf32> to vector<1xf32>
    %304 = vector.shape_cast %303 : vector<1xf32> to vector<1x1xf32>
    %305 = vector.broadcast %304 : vector<1x1xf32> to vector<1x8xf32>
    %306 = arith.subf %302, %305 : vector<1x8xf32>
    %307 = math.exp %306 : vector<1x8xf32>
    %cst_115 = arith.constant dense<0.000000e+00> : vector<1xf32>
    %308 = vector.multi_reduction <add>, %307, %cst_115 [1] : vector<1x8xf32> to vector<1xf32>
    %309 = vector.shape_cast %308 : vector<1xf32> to vector<1x1xf32>
    %310 = tpu.reciprocal %309 {approx = true} : vector<1x1xf32> -> vector<1x1xf32>
    %311 = vector.broadcast %310 : vector<1x1xf32> to vector<1x8xf32>
    %312 = arith.mulf %307, %311 : vector<1x8xf32>
    %313 = tpu.concatenate %271, %256 in 0 : vector<1x32xf32>, vector<1x32xf32> -> vector<2x32xf32>
    %314 = arith.index_cast %c2_i32 : i32 to index
    %c0_116 = arith.constant 0 : index
    %c0_117 = arith.constant 0 : index
    %315 = vector.load %arg9[%314, %c0_116, %c0_117] : memref<8x2x32xf32, #tpu.memory_space<vmem>>, vector<1x2x32xf32>
    %316 = vector.shape_cast %315 : vector<1x2x32xf32> to vector<2x32xf32>
    %317 = vector.shape_cast %313 : vector<2x32xf32> to vector<1x2x32xf32>
    tpu.vector_store %arg9[%314, %c0_116, %c0_117], %317 {strides = array<i32>} : memref<8x2x32xf32, #tpu.memory_space<vmem>>, vector<1x2x32xf32>,
    %318 = arith.index_cast %c2_i32 : i32 to index
    %c0_118 = arith.constant 0 : index
    %c0_119 = arith.constant 0 : index
    %319 = vector.load %arg10[%318, %c0_118, %c0_119] : memref<8x1x8xf32, #tpu.memory_space<vmem>>, vector<1x1x8xf32>
    %320 = vector.shape_cast %319 : vector<1x1x8xf32> to vector<1x8xf32>
    %321 = vector.shape_cast %312 : vector<1x8xf32> to vector<1x1x8xf32>
    tpu.vector_store %arg10[%318, %c0_118, %c0_119], %321 {strides = array<i32>} : memref<8x1x8xf32, #tpu.memory_space<vmem>>, vector<1x1x8xf32>,
    %c3_i32 = arith.constant 3 : i32
    %322 = arith.index_cast %c3_i32 : i32 to index
    %c0_120 = arith.constant 0 : index
    %c0_121 = arith.constant 0 : index
    %323 = vector.load %arg1[%322, %c0_120, %c0_121] : memref<8x1x32xf32, #tpu.memory_space<vmem>>, vector<1x1x32xf32>
    %324 = vector.shape_cast %323 : vector<1x1x32xf32> to vector<1x32xf32>
    %325 = arith.index_cast %c3_i32 : i32 to index
    %c0_122 = arith.constant 0 : index
    %c0_123 = arith.constant 0 : index
    %326 = vector.load %arg2[%325, %c0_122, %c0_123] : memref<8x1x32xf32, #tpu.memory_space<vmem>>, vector<1x1x32xf32>
    %327 = vector.shape_cast %326 : vector<1x1x32xf32> to vector<1x32xf32>
    %328 = arith.index_cast %c3_i32 : i32 to index
    %c0_124 = arith.constant 0 : index
    %c0_125 = arith.constant 0 : index
    %329 = vector.load %arg3[%328, %c0_124, %c0_125] : memref<8x1x32xf32, #tpu.memory_space<vmem>>, vector<1x1x32xf32>
    %330 = vector.shape_cast %329 : vector<1x1x32xf32> to vector<1x32xf32>
    %c0_126 = arith.constant 0 : index
    %c0_127 = arith.constant 0 : index
    %331 = vector.load %arg11[%c0_126, %c0_127] : memref<32x32xf32, #tpu.memory_space<vmem>>, vector<32x32xf32>
    %c0_128 = arith.constant 0 : index
    %c0_129 = arith.constant 0 : index
    %332 = vector.load %arg12[%c0_128, %c0_129] : memref<32x32xf32, #tpu.memory_space<vmem>>, vector<32x32xf32>
    %333 = tpu.concatenate %324, %256 in 0 : vector<1x32xf32>, vector<1x32xf32> -> vector<2x32xf32>
    %cst_130 = arith.constant dense<0.000000e+00> : vector<2x32xf32>
    %334 = tpu.matmul %333, %332, %cst_130 {dimension_numbers = #tpu.dot_dimension_numbers<[1], [0], [0], [1], [0, 0, 1, 1], [], []>} : vector<2x32xf32>, vector<32x32xf32>, vector<2x32xf32> -> vector<2x32xf32>
    %335 = vector.extract_strided_slice %334 {offsets = [0, 0], sizes = [1, 32], strides = [1, 1]} : vector<2x32xf32> to vector<1x32xf32>
    %cst_131 = arith.constant 1.500000e+01 : f32
    %336 = vector.broadcast %cst_131 : f32 to vector<1x32xf32>
    %337 = arith.mulf %336, %335 : vector<1x32xf32>
    %338 = vector.extract_strided_slice %334 {offsets = [1, 0], sizes = [1, 32], strides = [1, 1]} : vector<2x32xf32> to vector<1x32xf32>
    %cst_132 = arith.constant 1.500000e+01 : f32
    %339 = vector.broadcast %cst_132 : f32 to vector<1x32xf32>
    %340 = arith.mulf %339, %338 : vector<1x32xf32>
    %341 = arith.maximumf %337, %340 : vector<1x32xf32>
    %cst_133 = arith.constant 0.000000e+00 : f32
    %342 = vector.broadcast %cst_133 : f32 to vector<1x32xf32>
    %343 = arith.maximumf %341, %342 : vector<1x32xf32>
    %344 = arith.subf %337, %343 : vector<1x32xf32>
    %345 = math.exp %344 : vector<1x32xf32>
    %346 = arith.subf %340, %343 : vector<1x32xf32>
    %347 = math.exp %346 : vector<1x32xf32>
    %cst_134 = arith.constant 0.000000e+00 : f32
    %348 = vector.broadcast %cst_134 : f32 to vector<1x32xf32>
    %349 = arith.subf %348, %343 : vector<1x32xf32>
    %350 = math.exp %349 : vector<1x32xf32>
    %cst_135 = arith.constant 1.000000e-01 : f32
    %351 = vector.broadcast %cst_135 : f32 to vector<1x32xf32>
    %352 = arith.mulf %351, %350 : vector<1x32xf32>
    %353 = arith.addf %345, %352 : vector<1x32xf32>
    %354 = arith.addf %345, %352 : vector<1x32xf32>
    %355 = arith.addf %354, %347 : vector<1x32xf32>
    %356 = tpu.reciprocal %355 {approx = true} : vector<1x32xf32> -> vector<1x32xf32>
    %357 = arith.mulf %353, %356 : vector<1x32xf32>
    %358 = arith.cmpf olt, %330, %357 : vector<1x32xf32>
    %359 = arith.extui %358 : vector<1x32xi1> to vector<1x32xi32>
    %360 = arith.sitofp %359 : vector<1x32xi32> to vector<1x32xf32>
    %361 = arith.mulf %360, %324 : vector<1x32xf32>
    %cst_136 = arith.constant 1.000000e-01 : f32
    %362 = vector.broadcast %cst_136 : f32 to vector<1x32xf32>
    %363 = arith.mulf %362, %261 : vector<1x32xf32>
    %cst_137 = arith.constant 0.899999976 : f32
    %364 = vector.broadcast %cst_137 : f32 to vector<1x32xf32>
    %365 = arith.mulf %364, %324 : vector<1x32xf32>
    %366 = arith.addf %363, %365 : vector<1x32xf32>
    %cst_138 = arith.constant dense<0.000000e+00> : vector<1x32xf32>
    %367 = tpu.matmul %361, %331, %cst_138 {dimension_numbers = #tpu.dot_dimension_numbers<[1], [0], [0], [1], [0, 0, 1, 1], [], []>} : vector<1x32xf32>, vector<32x32xf32>, vector<1x32xf32> -> vector<1x32xf32>
    %368 = arith.index_cast %c3_i32 : i32 to index
    %369 = memref.load %arg0[%368] : memref<8xi32, #tpu.memory_space<smem>>
    %370 = tpu.iota {dimensions = array<i32: 1>} : vector<1x32xi32>
    %371 = vector.broadcast %369 : i32 to vector<1x32xi32>
    %372 = arith.cmpi eq, %370, %371 : vector<1x32xi32>
    %373 = arith.extui %372 : vector<1x32xi1> to vector<1x32xi32>
    %374 = arith.sitofp %373 : vector<1x32xi32> to vector<1x32xf32>
    %375 = arith.subf %327, %367 : vector<1x32xf32>
    %376 = arith.mulf %374, %375 : vector<1x32xf32>
    %cst_139 = arith.constant dense<0.000000e+00> : vector<1xf32>
    %377 = vector.multi_reduction <add>, %376, %cst_139 [1] : vector<1x32xf32> to vector<1xf32>
    %378 = vector.shape_cast %377 : vector<1xf32> to vector<1x1xf32>
    %379 = arith.index_cast %369 : i32 to index
    %c0_140 = arith.constant 0 : index
    %380 = vector.load %arg11[%379, %c0_140] : memref<32x32xf32, #tpu.memory_space<vmem>>, vector<1x32xf32>
    %cst_141 = arith.constant 7.500000e-02 : f32
    %381 = vector.broadcast %cst_141 : f32 to vector<1x1xf32>
    %382 = arith.mulf %381, %378 : vector<1x1xf32>
    %383 = vector.broadcast %382 : vector<1x1xf32> to vector<1x32xf32>
    %384 = arith.mulf %383, %361 : vector<1x32xf32>
    %385 = arith.addf %380, %384 : vector<1x32xf32>
    %386 = arith.index_cast %369 : i32 to index
    %c0_142 = arith.constant 0 : index
    %387 = vector.load %arg11[%386, %c0_142] : memref<32x32xf32, #tpu.memory_space<vmem>>, vector<1x32xf32>
    tpu.vector_store %arg11[%386, %c0_142], %385 {strides = array<i32>} : memref<32x32xf32, #tpu.memory_space<vmem>>, vector<1x32xf32>,
    %388 = arith.index_cast %369 : i32 to index
    %c0_143 = arith.constant 0 : index
    %389 = vector.load %arg12[%388, %c0_143] : memref<32x32xf32, #tpu.memory_space<vmem>>, vector<1x32xf32>
    %cst_144 = arith.constant 7.500000e-02 : f32
    %390 = vector.broadcast %cst_144 : f32 to vector<1x1xf32>
    %391 = arith.mulf %390, %378 : vector<1x1xf32>
    %392 = vector.broadcast %391 : vector<1x1xf32> to vector<1x32xf32>
    %393 = arith.mulf %392, %366 : vector<1x32xf32>
    %394 = arith.addf %389, %393 : vector<1x32xf32>
    %395 = arith.index_cast %369 : i32 to index
    %c0_145 = arith.constant 0 : index
    %396 = vector.load %arg12[%395, %c0_145] : memref<32x32xf32, #tpu.memory_space<vmem>>, vector<1x32xf32>
    tpu.vector_store %arg12[%395, %c0_145], %394 {strides = array<i32>} : memref<32x32xf32, #tpu.memory_space<vmem>>, vector<1x32xf32>,
    %397 = arith.mulf %376, %361 : vector<1x32xf32>
    %cst_146 = arith.constant dense<0.000000e+00> : vector<1xf32>
    %398 = vector.multi_reduction <add>, %397, %cst_146 [1] : vector<1x32xf32> to vector<1xf32>
    %399 = vector.shape_cast %398 : vector<1xf32> to vector<1x1xf32>
    %cst_147 = arith.constant 7.500000e-02 : f32
    %400 = vector.broadcast %cst_147 : f32 to vector<1x1xf32>
    %401 = arith.mulf %400, %399 : vector<1x1xf32>
    %402 = vector.broadcast %401 : vector<1x1xf32> to vector<1x32xf32>
    %403 = arith.mulf %402, %361 : vector<1x32xf32>
    %404 = arith.addf %367, %403 : vector<1x32xf32>
    %cst_148 = arith.constant dense<0.000000e+00> : vector<1x8xf32>
    %405 = tpu.matmul %404, %4, %cst_148 {dimension_numbers = #tpu.dot_dimension_numbers<[1], [0], [0], [1], [0, 0, 1, 1], [], []>} : vector<1x32xf32>, vector<32x8xf32>, vector<1x8xf32> -> vector<1x8xf32>
    %cst_149 = arith.constant 1.000000e+01 : f32
    %406 = vector.broadcast %cst_149 : f32 to vector<1x8xf32>
    %407 = arith.mulf %406, %405 : vector<1x8xf32>
    %cst_150 = arith.constant dense<0xFF800000> : vector<1xf32>
    %408 = vector.multi_reduction <maximumf>, %407, %cst_150 [1] : vector<1x8xf32> to vector<1xf32>
    %409 = vector.shape_cast %408 : vector<1xf32> to vector<1x1xf32>
    %410 = vector.broadcast %409 : vector<1x1xf32> to vector<1x8xf32>
    %411 = arith.subf %407, %410 : vector<1x8xf32>
    %412 = math.exp %411 : vector<1x8xf32>
    %cst_151 = arith.constant dense<0.000000e+00> : vector<1xf32>
    %413 = vector.multi_reduction <add>, %412, %cst_151 [1] : vector<1x8xf32> to vector<1xf32>
    %414 = vector.shape_cast %413 : vector<1xf32> to vector<1x1xf32>
    %415 = tpu.reciprocal %414 {approx = true} : vector<1x1xf32> -> vector<1x1xf32>
    %416 = vector.broadcast %415 : vector<1x1xf32> to vector<1x8xf32>
    %417 = arith.mulf %412, %416 : vector<1x8xf32>
    %418 = tpu.concatenate %376, %361 in 0 : vector<1x32xf32>, vector<1x32xf32> -> vector<2x32xf32>
    %419 = arith.index_cast %c3_i32 : i32 to index
    %c0_152 = arith.constant 0 : index
    %c0_153 = arith.constant 0 : index
    %420 = vector.load %arg9[%419, %c0_152, %c0_153] : memref<8x2x32xf32, #tpu.memory_space<vmem>>, vector<1x2x32xf32>
    %421 = vector.shape_cast %420 : vector<1x2x32xf32> to vector<2x32xf32>
    %422 = vector.shape_cast %418 : vector<2x32xf32> to vector<1x2x32xf32>
    tpu.vector_store %arg9[%419, %c0_152, %c0_153], %422 {strides = array<i32>} : memref<8x2x32xf32, #tpu.memory_space<vmem>>, vector<1x2x32xf32>,
    %423 = arith.index_cast %c3_i32 : i32 to index
    %c0_154 = arith.constant 0 : index
    %c0_155 = arith.constant 0 : index
    %424 = vector.load %arg10[%423, %c0_154, %c0_155] : memref<8x1x8xf32, #tpu.memory_space<vmem>>, vector<1x1x8xf32>
    %425 = vector.shape_cast %424 : vector<1x1x8xf32> to vector<1x8xf32>
    %426 = vector.shape_cast %417 : vector<1x8xf32> to vector<1x1x8xf32>
    tpu.vector_store %arg10[%423, %c0_154, %c0_155], %426 {strides = array<i32>} : memref<8x1x8xf32, #tpu.memory_space<vmem>>, vector<1x1x8xf32>,
    %c4_i32 = arith.constant 4 : i32
    %427 = arith.index_cast %c4_i32 : i32 to index
    %c0_156 = arith.constant 0 : index
    %c0_157 = arith.constant 0 : index
    %428 = vector.load %arg1[%427, %c0_156, %c0_157] : memref<8x1x32xf32, #tpu.memory_space<vmem>>, vector<1x1x32xf32>
    %429 = vector.shape_cast %428 : vector<1x1x32xf32> to vector<1x32xf32>
    %430 = arith.index_cast %c4_i32 : i32 to index
    %c0_158 = arith.constant 0 : index
    %c0_159 = arith.constant 0 : index
    %431 = vector.load %arg2[%430, %c0_158, %c0_159] : memref<8x1x32xf32, #tpu.memory_space<vmem>>, vector<1x1x32xf32>
    %432 = vector.shape_cast %431 : vector<1x1x32xf32> to vector<1x32xf32>
    %433 = arith.index_cast %c4_i32 : i32 to index
    %c0_160 = arith.constant 0 : index
    %c0_161 = arith.constant 0 : index
    %434 = vector.load %arg3[%433, %c0_160, %c0_161] : memref<8x1x32xf32, #tpu.memory_space<vmem>>, vector<1x1x32xf32>
    %435 = vector.shape_cast %434 : vector<1x1x32xf32> to vector<1x32xf32>
    %c0_162 = arith.constant 0 : index
    %c0_163 = arith.constant 0 : index
    %436 = vector.load %arg11[%c0_162, %c0_163] : memref<32x32xf32, #tpu.memory_space<vmem>>, vector<32x32xf32>
    %c0_164 = arith.constant 0 : index
    %c0_165 = arith.constant 0 : index
    %437 = vector.load %arg12[%c0_164, %c0_165] : memref<32x32xf32, #tpu.memory_space<vmem>>, vector<32x32xf32>
    %438 = tpu.concatenate %429, %361 in 0 : vector<1x32xf32>, vector<1x32xf32> -> vector<2x32xf32>
    %cst_166 = arith.constant dense<0.000000e+00> : vector<2x32xf32>
    %439 = tpu.matmul %438, %437, %cst_166 {dimension_numbers = #tpu.dot_dimension_numbers<[1], [0], [0], [1], [0, 0, 1, 1], [], []>} : vector<2x32xf32>, vector<32x32xf32>, vector<2x32xf32> -> vector<2x32xf32>
    %440 = vector.extract_strided_slice %439 {offsets = [0, 0], sizes = [1, 32], strides = [1, 1]} : vector<2x32xf32> to vector<1x32xf32>
    %cst_167 = arith.constant 1.500000e+01 : f32
    %441 = vector.broadcast %cst_167 : f32 to vector<1x32xf32>
    %442 = arith.mulf %441, %440 : vector<1x32xf32>
    %443 = vector.extract_strided_slice %439 {offsets = [1, 0], sizes = [1, 32], strides = [1, 1]} : vector<2x32xf32> to vector<1x32xf32>
    %cst_168 = arith.constant 1.500000e+01 : f32
    %444 = vector.broadcast %cst_168 : f32 to vector<1x32xf32>
    %445 = arith.mulf %444, %443 : vector<1x32xf32>
    %446 = arith.maximumf %442, %445 : vector<1x32xf32>
    %cst_169 = arith.constant 0.000000e+00 : f32
    %447 = vector.broadcast %cst_169 : f32 to vector<1x32xf32>
    %448 = arith.maximumf %446, %447 : vector<1x32xf32>
    %449 = arith.subf %442, %448 : vector<1x32xf32>
    %450 = math.exp %449 : vector<1x32xf32>
    %451 = arith.subf %445, %448 : vector<1x32xf32>
    %452 = math.exp %451 : vector<1x32xf32>
    %cst_170 = arith.constant 0.000000e+00 : f32
    %453 = vector.broadcast %cst_170 : f32 to vector<1x32xf32>
    %454 = arith.subf %453, %448 : vector<1x32xf32>
    %455 = math.exp %454 : vector<1x32xf32>
    %cst_171 = arith.constant 1.000000e-01 : f32
    %456 = vector.broadcast %cst_171 : f32 to vector<1x32xf32>
    %457 = arith.mulf %456, %455 : vector<1x32xf32>
    %458 = arith.addf %450, %457 : vector<1x32xf32>
    %459 = arith.addf %450, %457 : vector<1x32xf32>
    %460 = arith.addf %459, %452 : vector<1x32xf32>
    %461 = tpu.reciprocal %460 {approx = true} : vector<1x32xf32> -> vector<1x32xf32>
    %462 = arith.mulf %458, %461 : vector<1x32xf32>
    %463 = arith.cmpf olt, %435, %462 : vector<1x32xf32>
    %464 = arith.extui %463 : vector<1x32xi1> to vector<1x32xi32>
    %465 = arith.sitofp %464 : vector<1x32xi32> to vector<1x32xf32>
    %466 = arith.mulf %465, %429 : vector<1x32xf32>
    %cst_172 = arith.constant 1.000000e-01 : f32
    %467 = vector.broadcast %cst_172 : f32 to vector<1x32xf32>
    %468 = arith.mulf %467, %366 : vector<1x32xf32>
    %cst_173 = arith.constant 0.899999976 : f32
    %469 = vector.broadcast %cst_173 : f32 to vector<1x32xf32>
    %470 = arith.mulf %469, %429 : vector<1x32xf32>
    %471 = arith.addf %468, %470 : vector<1x32xf32>
    %cst_174 = arith.constant dense<0.000000e+00> : vector<1x32xf32>
    %472 = tpu.matmul %466, %436, %cst_174 {dimension_numbers = #tpu.dot_dimension_numbers<[1], [0], [0], [1], [0, 0, 1, 1], [], []>} : vector<1x32xf32>, vector<32x32xf32>, vector<1x32xf32> -> vector<1x32xf32>
    %473 = arith.index_cast %c4_i32 : i32 to index
    %474 = memref.load %arg0[%473] : memref<8xi32, #tpu.memory_space<smem>>
    %475 = tpu.iota {dimensions = array<i32: 1>} : vector<1x32xi32>
    %476 = vector.broadcast %474 : i32 to vector<1x32xi32>
    %477 = arith.cmpi eq, %475, %476 : vector<1x32xi32>
    %478 = arith.extui %477 : vector<1x32xi1> to vector<1x32xi32>
    %479 = arith.sitofp %478 : vector<1x32xi32> to vector<1x32xf32>
    %480 = arith.subf %432, %472 : vector<1x32xf32>
    %481 = arith.mulf %479, %480 : vector<1x32xf32>
    %cst_175 = arith.constant dense<0.000000e+00> : vector<1xf32>
    %482 = vector.multi_reduction <add>, %481, %cst_175 [1] : vector<1x32xf32> to vector<1xf32>
    %483 = vector.shape_cast %482 : vector<1xf32> to vector<1x1xf32>
    %484 = arith.index_cast %474 : i32 to index
    %c0_176 = arith.constant 0 : index
    %485 = vector.load %arg11[%484, %c0_176] : memref<32x32xf32, #tpu.memory_space<vmem>>, vector<1x32xf32>
    %cst_177 = arith.constant 7.500000e-02 : f32
    %486 = vector.broadcast %cst_177 : f32 to vector<1x1xf32>
    %487 = arith.mulf %486, %483 : vector<1x1xf32>
    %488 = vector.broadcast %487 : vector<1x1xf32> to vector<1x32xf32>
    %489 = arith.mulf %488, %466 : vector<1x32xf32>
    %490 = arith.addf %485, %489 : vector<1x32xf32>
    %491 = arith.index_cast %474 : i32 to index
    %c0_178 = arith.constant 0 : index
    %492 = vector.load %arg11[%491, %c0_178] : memref<32x32xf32, #tpu.memory_space<vmem>>, vector<1x32xf32>
    tpu.vector_store %arg11[%491, %c0_178], %490 {strides = array<i32>} : memref<32x32xf32, #tpu.memory_space<vmem>>, vector<1x32xf32>,
    %493 = arith.index_cast %474 : i32 to index
    %c0_179 = arith.constant 0 : index
    %494 = vector.load %arg12[%493, %c0_179] : memref<32x32xf32, #tpu.memory_space<vmem>>, vector<1x32xf32>
    %cst_180 = arith.constant 7.500000e-02 : f32
    %495 = vector.broadcast %cst_180 : f32 to vector<1x1xf32>
    %496 = arith.mulf %495, %483 : vector<1x1xf32>
    %497 = vector.broadcast %496 : vector<1x1xf32> to vector<1x32xf32>
    %498 = arith.mulf %497, %471 : vector<1x32xf32>
    %499 = arith.addf %494, %498 : vector<1x32xf32>
    %500 = arith.index_cast %474 : i32 to index
    %c0_181 = arith.constant 0 : index
    %501 = vector.load %arg12[%500, %c0_181] : memref<32x32xf32, #tpu.memory_space<vmem>>, vector<1x32xf32>
    tpu.vector_store %arg12[%500, %c0_181], %499 {strides = array<i32>} : memref<32x32xf32, #tpu.memory_space<vmem>>, vector<1x32xf32>,
    %502 = arith.mulf %481, %466 : vector<1x32xf32>
    %cst_182 = arith.constant dense<0.000000e+00> : vector<1xf32>
    %503 = vector.multi_reduction <add>, %502, %cst_182 [1] : vector<1x32xf32> to vector<1xf32>
    %504 = vector.shape_cast %503 : vector<1xf32> to vector<1x1xf32>
    %cst_183 = arith.constant 7.500000e-02 : f32
    %505 = vector.broadcast %cst_183 : f32 to vector<1x1xf32>
    %506 = arith.mulf %505, %504 : vector<1x1xf32>
    %507 = vector.broadcast %506 : vector<1x1xf32> to vector<1x32xf32>
    %508 = arith.mulf %507, %466 : vector<1x32xf32>
    %509 = arith.addf %472, %508 : vector<1x32xf32>
    %cst_184 = arith.constant dense<0.000000e+00> : vector<1x8xf32>
    %510 = tpu.matmul %509, %4, %cst_184 {dimension_numbers = #tpu.dot_dimension_numbers<[1], [0], [0], [1], [0, 0, 1, 1], [], []>} : vector<1x32xf32>, vector<32x8xf32>, vector<1x8xf32> -> vector<1x8xf32>
    %cst_185 = arith.constant 1.000000e+01 : f32
    %511 = vector.broadcast %cst_185 : f32 to vector<1x8xf32>
    %512 = arith.mulf %511, %510 : vector<1x8xf32>
    %cst_186 = arith.constant dense<0xFF800000> : vector<1xf32>
    %513 = vector.multi_reduction <maximumf>, %512, %cst_186 [1] : vector<1x8xf32> to vector<1xf32>
    %514 = vector.shape_cast %513 : vector<1xf32> to vector<1x1xf32>
    %515 = vector.broadcast %514 : vector<1x1xf32> to vector<1x8xf32>
    %516 = arith.subf %512, %515 : vector<1x8xf32>
    %517 = math.exp %516 : vector<1x8xf32>
    %cst_187 = arith.constant dense<0.000000e+00> : vector<1xf32>
    %518 = vector.multi_reduction <add>, %517, %cst_187 [1] : vector<1x8xf32> to vector<1xf32>
    %519 = vector.shape_cast %518 : vector<1xf32> to vector<1x1xf32>
    %520 = tpu.reciprocal %519 {approx = true} : vector<1x1xf32> -> vector<1x1xf32>
    %521 = vector.broadcast %520 : vector<1x1xf32> to vector<1x8xf32>
    %522 = arith.mulf %517, %521 : vector<1x8xf32>
    %523 = tpu.concatenate %481, %466 in 0 : vector<1x32xf32>, vector<1x32xf32> -> vector<2x32xf32>
    %524 = arith.index_cast %c4_i32 : i32 to index
    %c0_188 = arith.constant 0 : index
    %c0_189 = arith.constant 0 : index
    %525 = vector.load %arg9[%524, %c0_188, %c0_189] : memref<8x2x32xf32, #tpu.memory_space<vmem>>, vector<1x2x32xf32>
    %526 = vector.shape_cast %525 : vector<1x2x32xf32> to vector<2x32xf32>
    %527 = vector.shape_cast %523 : vector<2x32xf32> to vector<1x2x32xf32>
    tpu.vector_store %arg9[%524, %c0_188, %c0_189], %527 {strides = array<i32>} : memref<8x2x32xf32, #tpu.memory_space<vmem>>, vector<1x2x32xf32>,
    %528 = arith.index_cast %c4_i32 : i32 to index
    %c0_190 = arith.constant 0 : index
    %c0_191 = arith.constant 0 : index
    %529 = vector.load %arg10[%528, %c0_190, %c0_191] : memref<8x1x8xf32, #tpu.memory_space<vmem>>, vector<1x1x8xf32>
    %530 = vector.shape_cast %529 : vector<1x1x8xf32> to vector<1x8xf32>
    %531 = vector.shape_cast %522 : vector<1x8xf32> to vector<1x1x8xf32>
    tpu.vector_store %arg10[%528, %c0_190, %c0_191], %531 {strides = array<i32>} : memref<8x1x8xf32, #tpu.memory_space<vmem>>, vector<1x1x8xf32>,
    %c5_i32 = arith.constant 5 : i32
    %532 = arith.index_cast %c5_i32 : i32 to index
    %c0_192 = arith.constant 0 : index
    %c0_193 = arith.constant 0 : index
    %533 = vector.load %arg1[%532, %c0_192, %c0_193] : memref<8x1x32xf32, #tpu.memory_space<vmem>>, vector<1x1x32xf32>
    %534 = vector.shape_cast %533 : vector<1x1x32xf32> to vector<1x32xf32>
    %535 = arith.index_cast %c5_i32 : i32 to index
    %c0_194 = arith.constant 0 : index
    %c0_195 = arith.constant 0 : index
    %536 = vector.load %arg2[%535, %c0_194, %c0_195] : memref<8x1x32xf32, #tpu.memory_space<vmem>>, vector<1x1x32xf32>
    %537 = vector.shape_cast %536 : vector<1x1x32xf32> to vector<1x32xf32>
    %538 = arith.index_cast %c5_i32 : i32 to index
    %c0_196 = arith.constant 0 : index
    %c0_197 = arith.constant 0 : index
    %539 = vector.load %arg3[%538, %c0_196, %c0_197] : memref<8x1x32xf32, #tpu.memory_space<vmem>>, vector<1x1x32xf32>
    %540 = vector.shape_cast %539 : vector<1x1x32xf32> to vector<1x32xf32>
    %c0_198 = arith.constant 0 : index
    %c0_199 = arith.constant 0 : index
    %541 = vector.load %arg11[%c0_198, %c0_199] : memref<32x32xf32, #tpu.memory_space<vmem>>, vector<32x32xf32>
    %c0_200 = arith.constant 0 : index
    %c0_201 = arith.constant 0 : index
    %542 = vector.load %arg12[%c0_200, %c0_201] : memref<32x32xf32, #tpu.memory_space<vmem>>, vector<32x32xf32>
    %543 = tpu.concatenate %534, %466 in 0 : vector<1x32xf32>, vector<1x32xf32> -> vector<2x32xf32>
    %cst_202 = arith.constant dense<0.000000e+00> : vector<2x32xf32>
    %544 = tpu.matmul %543, %542, %cst_202 {dimension_numbers = #tpu.dot_dimension_numbers<[1], [0], [0], [1], [0, 0, 1, 1], [], []>} : vector<2x32xf32>, vector<32x32xf32>, vector<2x32xf32> -> vector<2x32xf32>
    %545 = vector.extract_strided_slice %544 {offsets = [0, 0], sizes = [1, 32], strides = [1, 1]} : vector<2x32xf32> to vector<1x32xf32>
    %cst_203 = arith.constant 1.500000e+01 : f32
    %546 = vector.broadcast %cst_203 : f32 to vector<1x32xf32>
    %547 = arith.mulf %546, %545 : vector<1x32xf32>
    %548 = vector.extract_strided_slice %544 {offsets = [1, 0], sizes = [1, 32], strides = [1, 1]} : vector<2x32xf32> to vector<1x32xf32>
    %cst_204 = arith.constant 1.500000e+01 : f32
    %549 = vector.broadcast %cst_204 : f32 to vector<1x32xf32>
    %550 = arith.mulf %549, %548 : vector<1x32xf32>
    %551 = arith.maximumf %547, %550 : vector<1x32xf32>
    %cst_205 = arith.constant 0.000000e+00 : f32
    %552 = vector.broadcast %cst_205 : f32 to vector<1x32xf32>
    %553 = arith.maximumf %551, %552 : vector<1x32xf32>
    %554 = arith.subf %547, %553 : vector<1x32xf32>
    %555 = math.exp %554 : vector<1x32xf32>
    %556 = arith.subf %550, %553 : vector<1x32xf32>
    %557 = math.exp %556 : vector<1x32xf32>
    %cst_206 = arith.constant 0.000000e+00 : f32
    %558 = vector.broadcast %cst_206 : f32 to vector<1x32xf32>
    %559 = arith.subf %558, %553 : vector<1x32xf32>
    %560 = math.exp %559 : vector<1x32xf32>
    %cst_207 = arith.constant 1.000000e-01 : f32
    %561 = vector.broadcast %cst_207 : f32 to vector<1x32xf32>
    %562 = arith.mulf %561, %560 : vector<1x32xf32>
    %563 = arith.addf %555, %562 : vector<1x32xf32>
    %564 = arith.addf %555, %562 : vector<1x32xf32>
    %565 = arith.addf %564, %557 : vector<1x32xf32>
    %566 = tpu.reciprocal %565 {approx = true} : vector<1x32xf32> -> vector<1x32xf32>
    %567 = arith.mulf %563, %566 : vector<1x32xf32>
    %568 = arith.cmpf olt, %540, %567 : vector<1x32xf32>
    %569 = arith.extui %568 : vector<1x32xi1> to vector<1x32xi32>
    %570 = arith.sitofp %569 : vector<1x32xi32> to vector<1x32xf32>
    %571 = arith.mulf %570, %534 : vector<1x32xf32>
    %cst_208 = arith.constant 1.000000e-01 : f32
    %572 = vector.broadcast %cst_208 : f32 to vector<1x32xf32>
    %573 = arith.mulf %572, %471 : vector<1x32xf32>
    %cst_209 = arith.constant 0.899999976 : f32
    %574 = vector.broadcast %cst_209 : f32 to vector<1x32xf32>
    %575 = arith.mulf %574, %534 : vector<1x32xf32>
    %576 = arith.addf %573, %575 : vector<1x32xf32>
    %cst_210 = arith.constant dense<0.000000e+00> : vector<1x32xf32>
    %577 = tpu.matmul %571, %541, %cst_210 {dimension_numbers = #tpu.dot_dimension_numbers<[1], [0], [0], [1], [0, 0, 1, 1], [], []>} : vector<1x32xf32>, vector<32x32xf32>, vector<1x32xf32> -> vector<1x32xf32>
    %578 = arith.index_cast %c5_i32 : i32 to index
    %579 = memref.load %arg0[%578] : memref<8xi32, #tpu.memory_space<smem>>
    %580 = tpu.iota {dimensions = array<i32: 1>} : vector<1x32xi32>
    %581 = vector.broadcast %579 : i32 to vector<1x32xi32>
    %582 = arith.cmpi eq, %580, %581 : vector<1x32xi32>
    %583 = arith.extui %582 : vector<1x32xi1> to vector<1x32xi32>
    %584 = arith.sitofp %583 : vector<1x32xi32> to vector<1x32xf32>
    %585 = arith.subf %537, %577 : vector<1x32xf32>
    %586 = arith.mulf %584, %585 : vector<1x32xf32>
    %cst_211 = arith.constant dense<0.000000e+00> : vector<1xf32>
    %587 = vector.multi_reduction <add>, %586, %cst_211 [1] : vector<1x32xf32> to vector<1xf32>
    %588 = vector.shape_cast %587 : vector<1xf32> to vector<1x1xf32>
    %589 = arith.index_cast %579 : i32 to index
    %c0_212 = arith.constant 0 : index
    %590 = vector.load %arg11[%589, %c0_212] : memref<32x32xf32, #tpu.memory_space<vmem>>, vector<1x32xf32>
    %cst_213 = arith.constant 7.500000e-02 : f32
    %591 = vector.broadcast %cst_213 : f32 to vector<1x1xf32>
    %592 = arith.mulf %591, %588 : vector<1x1xf32>
    %593 = vector.broadcast %592 : vector<1x1xf32> to vector<1x32xf32>
    %594 = arith.mulf %593, %571 : vector<1x32xf32>
    %595 = arith.addf %590, %594 : vector<1x32xf32>
    %596 = arith.index_cast %579 : i32 to index
    %c0_214 = arith.constant 0 : index
    %597 = vector.load %arg11[%596, %c0_214] : memref<32x32xf32, #tpu.memory_space<vmem>>, vector<1x32xf32>
    tpu.vector_store %arg11[%596, %c0_214], %595 {strides = array<i32>} : memref<32x32xf32, #tpu.memory_space<vmem>>, vector<1x32xf32>,
    %598 = arith.index_cast %579 : i32 to index
    %c0_215 = arith.constant 0 : index
    %599 = vector.load %arg12[%598, %c0_215] : memref<32x32xf32, #tpu.memory_space<vmem>>, vector<1x32xf32>
    %cst_216 = arith.constant 7.500000e-02 : f32
    %600 = vector.broadcast %cst_216 : f32 to vector<1x1xf32>
    %601 = arith.mulf %600, %588 : vector<1x1xf32>
    %602 = vector.broadcast %601 : vector<1x1xf32> to vector<1x32xf32>
    %603 = arith.mulf %602, %576 : vector<1x32xf32>
    %604 = arith.addf %599, %603 : vector<1x32xf32>
    %605 = arith.index_cast %579 : i32 to index
    %c0_217 = arith.constant 0 : index
    %606 = vector.load %arg12[%605, %c0_217] : memref<32x32xf32, #tpu.memory_space<vmem>>, vector<1x32xf32>
    tpu.vector_store %arg12[%605, %c0_217], %604 {strides = array<i32>} : memref<32x32xf32, #tpu.memory_space<vmem>>, vector<1x32xf32>,
    %607 = arith.mulf %586, %571 : vector<1x32xf32>
    %cst_218 = arith.constant dense<0.000000e+00> : vector<1xf32>
    %608 = vector.multi_reduction <add>, %607, %cst_218 [1] : vector<1x32xf32> to vector<1xf32>
    %609 = vector.shape_cast %608 : vector<1xf32> to vector<1x1xf32>
    %cst_219 = arith.constant 7.500000e-02 : f32
    %610 = vector.broadcast %cst_219 : f32 to vector<1x1xf32>
    %611 = arith.mulf %610, %609 : vector<1x1xf32>
    %612 = vector.broadcast %611 : vector<1x1xf32> to vector<1x32xf32>
    %613 = arith.mulf %612, %571 : vector<1x32xf32>
    %614 = arith.addf %577, %613 : vector<1x32xf32>
    %cst_220 = arith.constant dense<0.000000e+00> : vector<1x8xf32>
    %615 = tpu.matmul %614, %4, %cst_220 {dimension_numbers = #tpu.dot_dimension_numbers<[1], [0], [0], [1], [0, 0, 1, 1], [], []>} : vector<1x32xf32>, vector<32x8xf32>, vector<1x8xf32> -> vector<1x8xf32>
    %cst_221 = arith.constant 1.000000e+01 : f32
    %616 = vector.broadcast %cst_221 : f32 to vector<1x8xf32>
    %617 = arith.mulf %616, %615 : vector<1x8xf32>
    %cst_222 = arith.constant dense<0xFF800000> : vector<1xf32>
    %618 = vector.multi_reduction <maximumf>, %617, %cst_222 [1] : vector<1x8xf32> to vector<1xf32>
    %619 = vector.shape_cast %618 : vector<1xf32> to vector<1x1xf32>
    %620 = vector.broadcast %619 : vector<1x1xf32> to vector<1x8xf32>
    %621 = arith.subf %617, %620 : vector<1x8xf32>
    %622 = math.exp %621 : vector<1x8xf32>
    %cst_223 = arith.constant dense<0.000000e+00> : vector<1xf32>
    %623 = vector.multi_reduction <add>, %622, %cst_223 [1] : vector<1x8xf32> to vector<1xf32>
    %624 = vector.shape_cast %623 : vector<1xf32> to vector<1x1xf32>
    %625 = tpu.reciprocal %624 {approx = true} : vector<1x1xf32> -> vector<1x1xf32>
    %626 = vector.broadcast %625 : vector<1x1xf32> to vector<1x8xf32>
    %627 = arith.mulf %622, %626 : vector<1x8xf32>
    %628 = tpu.concatenate %586, %571 in 0 : vector<1x32xf32>, vector<1x32xf32> -> vector<2x32xf32>
    %629 = arith.index_cast %c5_i32 : i32 to index
    %c0_224 = arith.constant 0 : index
    %c0_225 = arith.constant 0 : index
    %630 = vector.load %arg9[%629, %c0_224, %c0_225] : memref<8x2x32xf32, #tpu.memory_space<vmem>>, vector<1x2x32xf32>
    %631 = vector.shape_cast %630 : vector<1x2x32xf32> to vector<2x32xf32>
    %632 = vector.shape_cast %628 : vector<2x32xf32> to vector<1x2x32xf32>
    tpu.vector_store %arg9[%629, %c0_224, %c0_225], %632 {strides = array<i32>} : memref<8x2x32xf32, #tpu.memory_space<vmem>>, vector<1x2x32xf32>,
    %633 = arith.index_cast %c5_i32 : i32 to index
    %c0_226 = arith.constant 0 : index
    %c0_227 = arith.constant 0 : index
    %634 = vector.load %arg10[%633, %c0_226, %c0_227] : memref<8x1x8xf32, #tpu.memory_space<vmem>>, vector<1x1x8xf32>
    %635 = vector.shape_cast %634 : vector<1x1x8xf32> to vector<1x8xf32>
    %636 = vector.shape_cast %627 : vector<1x8xf32> to vector<1x1x8xf32>
    tpu.vector_store %arg10[%633, %c0_226, %c0_227], %636 {strides = array<i32>} : memref<8x1x8xf32, #tpu.memory_space<vmem>>, vector<1x1x8xf32>,
    %c6_i32 = arith.constant 6 : i32
    %637 = arith.index_cast %c6_i32 : i32 to index
    %c0_228 = arith.constant 0 : index
    %c0_229 = arith.constant 0 : index
    %638 = vector.load %arg1[%637, %c0_228, %c0_229] : memref<8x1x32xf32, #tpu.memory_space<vmem>>, vector<1x1x32xf32>
    %639 = vector.shape_cast %638 : vector<1x1x32xf32> to vector<1x32xf32>
    %640 = arith.index_cast %c6_i32 : i32 to index
    %c0_230 = arith.constant 0 : index
    %c0_231 = arith.constant 0 : index
    %641 = vector.load %arg2[%640, %c0_230, %c0_231] : memref<8x1x32xf32, #tpu.memory_space<vmem>>, vector<1x1x32xf32>
    %642 = vector.shape_cast %641 : vector<1x1x32xf32> to vector<1x32xf32>
    %643 = arith.index_cast %c6_i32 : i32 to index
    %c0_232 = arith.constant 0 : index
    %c0_233 = arith.constant 0 : index
    %644 = vector.load %arg3[%643, %c0_232, %c0_233] : memref<8x1x32xf32, #tpu.memory_space<vmem>>, vector<1x1x32xf32>
    %645 = vector.shape_cast %644 : vector<1x1x32xf32> to vector<1x32xf32>
    %c0_234 = arith.constant 0 : index
    %c0_235 = arith.constant 0 : index
    %646 = vector.load %arg11[%c0_234, %c0_235] : memref<32x32xf32, #tpu.memory_space<vmem>>, vector<32x32xf32>
    %c0_236 = arith.constant 0 : index
    %c0_237 = arith.constant 0 : index
    %647 = vector.load %arg12[%c0_236, %c0_237] : memref<32x32xf32, #tpu.memory_space<vmem>>, vector<32x32xf32>
    %648 = tpu.concatenate %639, %571 in 0 : vector<1x32xf32>, vector<1x32xf32> -> vector<2x32xf32>
    %cst_238 = arith.constant dense<0.000000e+00> : vector<2x32xf32>
    %649 = tpu.matmul %648, %647, %cst_238 {dimension_numbers = #tpu.dot_dimension_numbers<[1], [0], [0], [1], [0, 0, 1, 1], [], []>} : vector<2x32xf32>, vector<32x32xf32>, vector<2x32xf32> -> vector<2x32xf32>
    %650 = vector.extract_strided_slice %649 {offsets = [0, 0], sizes = [1, 32], strides = [1, 1]} : vector<2x32xf32> to vector<1x32xf32>
    %cst_239 = arith.constant 1.500000e+01 : f32
    %651 = vector.broadcast %cst_239 : f32 to vector<1x32xf32>
    %652 = arith.mulf %651, %650 : vector<1x32xf32>
    %653 = vector.extract_strided_slice %649 {offsets = [1, 0], sizes = [1, 32], strides = [1, 1]} : vector<2x32xf32> to vector<1x32xf32>
    %cst_240 = arith.constant 1.500000e+01 : f32
    %654 = vector.broadcast %cst_240 : f32 to vector<1x32xf32>
    %655 = arith.mulf %654, %653 : vector<1x32xf32>
    %656 = arith.maximumf %652, %655 : vector<1x32xf32>
    %cst_241 = arith.constant 0.000000e+00 : f32
    %657 = vector.broadcast %cst_241 : f32 to vector<1x32xf32>
    %658 = arith.maximumf %656, %657 : vector<1x32xf32>
    %659 = arith.subf %652, %658 : vector<1x32xf32>
    %660 = math.exp %659 : vector<1x32xf32>
    %661 = arith.subf %655, %658 : vector<1x32xf32>
    %662 = math.exp %661 : vector<1x32xf32>
    %cst_242 = arith.constant 0.000000e+00 : f32
    %663 = vector.broadcast %cst_242 : f32 to vector<1x32xf32>
    %664 = arith.subf %663, %658 : vector<1x32xf32>
    %665 = math.exp %664 : vector<1x32xf32>
    %cst_243 = arith.constant 1.000000e-01 : f32
    %666 = vector.broadcast %cst_243 : f32 to vector<1x32xf32>
    %667 = arith.mulf %666, %665 : vector<1x32xf32>
    %668 = arith.addf %660, %667 : vector<1x32xf32>
    %669 = arith.addf %660, %667 : vector<1x32xf32>
    %670 = arith.addf %669, %662 : vector<1x32xf32>
    %671 = tpu.reciprocal %670 {approx = true} : vector<1x32xf32> -> vector<1x32xf32>
    %672 = arith.mulf %668, %671 : vector<1x32xf32>
    %673 = arith.cmpf olt, %645, %672 : vector<1x32xf32>
    %674 = arith.extui %673 : vector<1x32xi1> to vector<1x32xi32>
    %675 = arith.sitofp %674 : vector<1x32xi32> to vector<1x32xf32>
    %676 = arith.mulf %675, %639 : vector<1x32xf32>
    %cst_244 = arith.constant 1.000000e-01 : f32
    %677 = vector.broadcast %cst_244 : f32 to vector<1x32xf32>
    %678 = arith.mulf %677, %576 : vector<1x32xf32>
    %cst_245 = arith.constant 0.899999976 : f32
    %679 = vector.broadcast %cst_245 : f32 to vector<1x32xf32>
    %680 = arith.mulf %679, %639 : vector<1x32xf32>
    %681 = arith.addf %678, %680 : vector<1x32xf32>
    %cst_246 = arith.constant dense<0.000000e+00> : vector<1x32xf32>
    %682 = tpu.matmul %676, %646, %cst_246 {dimension_numbers = #tpu.dot_dimension_numbers<[1], [0], [0], [1], [0, 0, 1, 1], [], []>} : vector<1x32xf32>, vector<32x32xf32>, vector<1x32xf32> -> vector<1x32xf32>
    %683 = arith.index_cast %c6_i32 : i32 to index
    %684 = memref.load %arg0[%683] : memref<8xi32, #tpu.memory_space<smem>>
    %685 = tpu.iota {dimensions = array<i32: 1>} : vector<1x32xi32>
    %686 = vector.broadcast %684 : i32 to vector<1x32xi32>
    %687 = arith.cmpi eq, %685, %686 : vector<1x32xi32>
    %688 = arith.extui %687 : vector<1x32xi1> to vector<1x32xi32>
    %689 = arith.sitofp %688 : vector<1x32xi32> to vector<1x32xf32>
    %690 = arith.subf %642, %682 : vector<1x32xf32>
    %691 = arith.mulf %689, %690 : vector<1x32xf32>
    %cst_247 = arith.constant dense<0.000000e+00> : vector<1xf32>
    %692 = vector.multi_reduction <add>, %691, %cst_247 [1] : vector<1x32xf32> to vector<1xf32>
    %693 = vector.shape_cast %692 : vector<1xf32> to vector<1x1xf32>
    %694 = arith.index_cast %684 : i32 to index
    %c0_248 = arith.constant 0 : index
    %695 = vector.load %arg11[%694, %c0_248] : memref<32x32xf32, #tpu.memory_space<vmem>>, vector<1x32xf32>
    %cst_249 = arith.constant 7.500000e-02 : f32
    %696 = vector.broadcast %cst_249 : f32 to vector<1x1xf32>
    %697 = arith.mulf %696, %693 : vector<1x1xf32>
    %698 = vector.broadcast %697 : vector<1x1xf32> to vector<1x32xf32>
    %699 = arith.mulf %698, %676 : vector<1x32xf32>
    %700 = arith.addf %695, %699 : vector<1x32xf32>
    %701 = arith.index_cast %684 : i32 to index
    %c0_250 = arith.constant 0 : index
    %702 = vector.load %arg11[%701, %c0_250] : memref<32x32xf32, #tpu.memory_space<vmem>>, vector<1x32xf32>
    tpu.vector_store %arg11[%701, %c0_250], %700 {strides = array<i32>} : memref<32x32xf32, #tpu.memory_space<vmem>>, vector<1x32xf32>,
    %703 = arith.index_cast %684 : i32 to index
    %c0_251 = arith.constant 0 : index
    %704 = vector.load %arg12[%703, %c0_251] : memref<32x32xf32, #tpu.memory_space<vmem>>, vector<1x32xf32>
    %cst_252 = arith.constant 7.500000e-02 : f32
    %705 = vector.broadcast %cst_252 : f32 to vector<1x1xf32>
    %706 = arith.mulf %705, %693 : vector<1x1xf32>
    %707 = vector.broadcast %706 : vector<1x1xf32> to vector<1x32xf32>
    %708 = arith.mulf %707, %681 : vector<1x32xf32>
    %709 = arith.addf %704, %708 : vector<1x32xf32>
    %710 = arith.index_cast %684 : i32 to index
    %c0_253 = arith.constant 0 : index
    %711 = vector.load %arg12[%710, %c0_253] : memref<32x32xf32, #tpu.memory_space<vmem>>, vector<1x32xf32>
    tpu.vector_store %arg12[%710, %c0_253], %709 {strides = array<i32>} : memref<32x32xf32, #tpu.memory_space<vmem>>, vector<1x32xf32>,
    %712 = arith.mulf %691, %676 : vector<1x32xf32>
    %cst_254 = arith.constant dense<0.000000e+00> : vector<1xf32>
    %713 = vector.multi_reduction <add>, %712, %cst_254 [1] : vector<1x32xf32> to vector<1xf32>
    %714 = vector.shape_cast %713 : vector<1xf32> to vector<1x1xf32>
    %cst_255 = arith.constant 7.500000e-02 : f32
    %715 = vector.broadcast %cst_255 : f32 to vector<1x1xf32>
    %716 = arith.mulf %715, %714 : vector<1x1xf32>
    %717 = vector.broadcast %716 : vector<1x1xf32> to vector<1x32xf32>
    %718 = arith.mulf %717, %676 : vector<1x32xf32>
    %719 = arith.addf %682, %718 : vector<1x32xf32>
    %cst_256 = arith.constant dense<0.000000e+00> : vector<1x8xf32>
    %720 = tpu.matmul %719, %4, %cst_256 {dimension_numbers = #tpu.dot_dimension_numbers<[1], [0], [0], [1], [0, 0, 1, 1], [], []>} : vector<1x32xf32>, vector<32x8xf32>, vector<1x8xf32> -> vector<1x8xf32>
    %cst_257 = arith.constant 1.000000e+01 : f32
    %721 = vector.broadcast %cst_257 : f32 to vector<1x8xf32>
    %722 = arith.mulf %721, %720 : vector<1x8xf32>
    %cst_258 = arith.constant dense<0xFF800000> : vector<1xf32>
    %723 = vector.multi_reduction <maximumf>, %722, %cst_258 [1] : vector<1x8xf32> to vector<1xf32>
    %724 = vector.shape_cast %723 : vector<1xf32> to vector<1x1xf32>
    %725 = vector.broadcast %724 : vector<1x1xf32> to vector<1x8xf32>
    %726 = arith.subf %722, %725 : vector<1x8xf32>
    %727 = math.exp %726 : vector<1x8xf32>
    %cst_259 = arith.constant dense<0.000000e+00> : vector<1xf32>
    %728 = vector.multi_reduction <add>, %727, %cst_259 [1] : vector<1x8xf32> to vector<1xf32>
    %729 = vector.shape_cast %728 : vector<1xf32> to vector<1x1xf32>
    %730 = tpu.reciprocal %729 {approx = true} : vector<1x1xf32> -> vector<1x1xf32>
    %731 = vector.broadcast %730 : vector<1x1xf32> to vector<1x8xf32>
    %732 = arith.mulf %727, %731 : vector<1x8xf32>
    %733 = tpu.concatenate %691, %676 in 0 : vector<1x32xf32>, vector<1x32xf32> -> vector<2x32xf32>
    %734 = arith.index_cast %c6_i32 : i32 to index
    %c0_260 = arith.constant 0 : index
    %c0_261 = arith.constant 0 : index
    %735 = vector.load %arg9[%734, %c0_260, %c0_261] : memref<8x2x32xf32, #tpu.memory_space<vmem>>, vector<1x2x32xf32>
    %736 = vector.shape_cast %735 : vector<1x2x32xf32> to vector<2x32xf32>
    %737 = vector.shape_cast %733 : vector<2x32xf32> to vector<1x2x32xf32>
    tpu.vector_store %arg9[%734, %c0_260, %c0_261], %737 {strides = array<i32>} : memref<8x2x32xf32, #tpu.memory_space<vmem>>, vector<1x2x32xf32>,
    %738 = arith.index_cast %c6_i32 : i32 to index
    %c0_262 = arith.constant 0 : index
    %c0_263 = arith.constant 0 : index
    %739 = vector.load %arg10[%738, %c0_262, %c0_263] : memref<8x1x8xf32, #tpu.memory_space<vmem>>, vector<1x1x8xf32>
    %740 = vector.shape_cast %739 : vector<1x1x8xf32> to vector<1x8xf32>
    %741 = vector.shape_cast %732 : vector<1x8xf32> to vector<1x1x8xf32>
    tpu.vector_store %arg10[%738, %c0_262, %c0_263], %741 {strides = array<i32>} : memref<8x1x8xf32, #tpu.memory_space<vmem>>, vector<1x1x8xf32>,
    %c7_i32 = arith.constant 7 : i32
    %742 = arith.index_cast %c7_i32 : i32 to index
    %c0_264 = arith.constant 0 : index
    %c0_265 = arith.constant 0 : index
    %743 = vector.load %arg1[%742, %c0_264, %c0_265] : memref<8x1x32xf32, #tpu.memory_space<vmem>>, vector<1x1x32xf32>
    %744 = vector.shape_cast %743 : vector<1x1x32xf32> to vector<1x32xf32>
    %745 = arith.index_cast %c7_i32 : i32 to index
    %c0_266 = arith.constant 0 : index
    %c0_267 = arith.constant 0 : index
    %746 = vector.load %arg2[%745, %c0_266, %c0_267] : memref<8x1x32xf32, #tpu.memory_space<vmem>>, vector<1x1x32xf32>
    %747 = vector.shape_cast %746 : vector<1x1x32xf32> to vector<1x32xf32>
    %748 = arith.index_cast %c7_i32 : i32 to index
    %c0_268 = arith.constant 0 : index
    %c0_269 = arith.constant 0 : index
    %749 = vector.load %arg3[%748, %c0_268, %c0_269] : memref<8x1x32xf32, #tpu.memory_space<vmem>>, vector<1x1x32xf32>
    %750 = vector.shape_cast %749 : vector<1x1x32xf32> to vector<1x32xf32>
    %c0_270 = arith.constant 0 : index
    %c0_271 = arith.constant 0 : index
    %751 = vector.load %arg11[%c0_270, %c0_271] : memref<32x32xf32, #tpu.memory_space<vmem>>, vector<32x32xf32>
    %c0_272 = arith.constant 0 : index
    %c0_273 = arith.constant 0 : index
    %752 = vector.load %arg12[%c0_272, %c0_273] : memref<32x32xf32, #tpu.memory_space<vmem>>, vector<32x32xf32>
    %753 = tpu.concatenate %744, %676 in 0 : vector<1x32xf32>, vector<1x32xf32> -> vector<2x32xf32>
    %cst_274 = arith.constant dense<0.000000e+00> : vector<2x32xf32>
    %754 = tpu.matmul %753, %752, %cst_274 {dimension_numbers = #tpu.dot_dimension_numbers<[1], [0], [0], [1], [0, 0, 1, 1], [], []>} : vector<2x32xf32>, vector<32x32xf32>, vector<2x32xf32> -> vector<2x32xf32>
    %755 = vector.extract_strided_slice %754 {offsets = [0, 0], sizes = [1, 32], strides = [1, 1]} : vector<2x32xf32> to vector<1x32xf32>
    %cst_275 = arith.constant 1.500000e+01 : f32
    %756 = vector.broadcast %cst_275 : f32 to vector<1x32xf32>
    %757 = arith.mulf %756, %755 : vector<1x32xf32>
    %758 = vector.extract_strided_slice %754 {offsets = [1, 0], sizes = [1, 32], strides = [1, 1]} : vector<2x32xf32> to vector<1x32xf32>
    %cst_276 = arith.constant 1.500000e+01 : f32
    %759 = vector.broadcast %cst_276 : f32 to vector<1x32xf32>
    %760 = arith.mulf %759, %758 : vector<1x32xf32>
    %761 = arith.maximumf %757, %760 : vector<1x32xf32>
    %cst_277 = arith.constant 0.000000e+00 : f32
    %762 = vector.broadcast %cst_277 : f32 to vector<1x32xf32>
    %763 = arith.maximumf %761, %762 : vector<1x32xf32>
    %764 = arith.subf %757, %763 : vector<1x32xf32>
    %765 = math.exp %764 : vector<1x32xf32>
    %766 = arith.subf %760, %763 : vector<1x32xf32>
    %767 = math.exp %766 : vector<1x32xf32>
    %cst_278 = arith.constant 0.000000e+00 : f32
    %768 = vector.broadcast %cst_278 : f32 to vector<1x32xf32>
    %769 = arith.subf %768, %763 : vector<1x32xf32>
    %770 = math.exp %769 : vector<1x32xf32>
    %cst_279 = arith.constant 1.000000e-01 : f32
    %771 = vector.broadcast %cst_279 : f32 to vector<1x32xf32>
    %772 = arith.mulf %771, %770 : vector<1x32xf32>
    %773 = arith.addf %765, %772 : vector<1x32xf32>
    %774 = arith.addf %765, %772 : vector<1x32xf32>
    %775 = arith.addf %774, %767 : vector<1x32xf32>
    %776 = tpu.reciprocal %775 {approx = true} : vector<1x32xf32> -> vector<1x32xf32>
    %777 = arith.mulf %773, %776 : vector<1x32xf32>
    %778 = arith.cmpf olt, %750, %777 : vector<1x32xf32>
    %779 = arith.extui %778 : vector<1x32xi1> to vector<1x32xi32>
    %780 = arith.sitofp %779 : vector<1x32xi32> to vector<1x32xf32>
    %781 = arith.mulf %780, %744 : vector<1x32xf32>
    %cst_280 = arith.constant 1.000000e-01 : f32
    %782 = vector.broadcast %cst_280 : f32 to vector<1x32xf32>
    %783 = arith.mulf %782, %681 : vector<1x32xf32>
    %cst_281 = arith.constant 0.899999976 : f32
    %784 = vector.broadcast %cst_281 : f32 to vector<1x32xf32>
    %785 = arith.mulf %784, %744 : vector<1x32xf32>
    %786 = arith.addf %783, %785 : vector<1x32xf32>
    %cst_282 = arith.constant dense<0.000000e+00> : vector<1x32xf32>
    %787 = tpu.matmul %781, %751, %cst_282 {dimension_numbers = #tpu.dot_dimension_numbers<[1], [0], [0], [1], [0, 0, 1, 1], [], []>} : vector<1x32xf32>, vector<32x32xf32>, vector<1x32xf32> -> vector<1x32xf32>
    %788 = arith.index_cast %c7_i32 : i32 to index
    %789 = memref.load %arg0[%788] : memref<8xi32, #tpu.memory_space<smem>>
    %790 = tpu.iota {dimensions = array<i32: 1>} : vector<1x32xi32>
    %791 = vector.broadcast %789 : i32 to vector<1x32xi32>
    %792 = arith.cmpi eq, %790, %791 : vector<1x32xi32>
    %793 = arith.extui %792 : vector<1x32xi1> to vector<1x32xi32>
    %794 = arith.sitofp %793 : vector<1x32xi32> to vector<1x32xf32>
    %795 = arith.subf %747, %787 : vector<1x32xf32>
    %796 = arith.mulf %794, %795 : vector<1x32xf32>
    %cst_283 = arith.constant dense<0.000000e+00> : vector<1xf32>
    %797 = vector.multi_reduction <add>, %796, %cst_283 [1] : vector<1x32xf32> to vector<1xf32>
    %798 = vector.shape_cast %797 : vector<1xf32> to vector<1x1xf32>
    %799 = arith.index_cast %789 : i32 to index
    %c0_284 = arith.constant 0 : index
    %800 = vector.load %arg11[%799, %c0_284] : memref<32x32xf32, #tpu.memory_space<vmem>>, vector<1x32xf32>
    %cst_285 = arith.constant 7.500000e-02 : f32
    %801 = vector.broadcast %cst_285 : f32 to vector<1x1xf32>
    %802 = arith.mulf %801, %798 : vector<1x1xf32>
    %803 = vector.broadcast %802 : vector<1x1xf32> to vector<1x32xf32>
    %804 = arith.mulf %803, %781 : vector<1x32xf32>
    %805 = arith.addf %800, %804 : vector<1x32xf32>
    %806 = arith.index_cast %789 : i32 to index
    %c0_286 = arith.constant 0 : index
    %807 = vector.load %arg11[%806, %c0_286] : memref<32x32xf32, #tpu.memory_space<vmem>>, vector<1x32xf32>
    tpu.vector_store %arg11[%806, %c0_286], %805 {strides = array<i32>} : memref<32x32xf32, #tpu.memory_space<vmem>>, vector<1x32xf32>,
    %808 = arith.index_cast %789 : i32 to index
    %c0_287 = arith.constant 0 : index
    %809 = vector.load %arg12[%808, %c0_287] : memref<32x32xf32, #tpu.memory_space<vmem>>, vector<1x32xf32>
    %cst_288 = arith.constant 7.500000e-02 : f32
    %810 = vector.broadcast %cst_288 : f32 to vector<1x1xf32>
    %811 = arith.mulf %810, %798 : vector<1x1xf32>
    %812 = vector.broadcast %811 : vector<1x1xf32> to vector<1x32xf32>
    %813 = arith.mulf %812, %786 : vector<1x32xf32>
    %814 = arith.addf %809, %813 : vector<1x32xf32>
    %815 = arith.index_cast %789 : i32 to index
    %c0_289 = arith.constant 0 : index
    %816 = vector.load %arg12[%815, %c0_289] : memref<32x32xf32, #tpu.memory_space<vmem>>, vector<1x32xf32>
    tpu.vector_store %arg12[%815, %c0_289], %814 {strides = array<i32>} : memref<32x32xf32, #tpu.memory_space<vmem>>, vector<1x32xf32>,
    %817 = arith.mulf %796, %781 : vector<1x32xf32>
    %cst_290 = arith.constant dense<0.000000e+00> : vector<1xf32>
    %818 = vector.multi_reduction <add>, %817, %cst_290 [1] : vector<1x32xf32> to vector<1xf32>
    %819 = vector.shape_cast %818 : vector<1xf32> to vector<1x1xf32>
    %cst_291 = arith.constant 7.500000e-02 : f32
    %820 = vector.broadcast %cst_291 : f32 to vector<1x1xf32>
    %821 = arith.mulf %820, %819 : vector<1x1xf32>
    %822 = vector.broadcast %821 : vector<1x1xf32> to vector<1x32xf32>
    %823 = arith.mulf %822, %781 : vector<1x32xf32>
    %824 = arith.addf %787, %823 : vector<1x32xf32>
    %cst_292 = arith.constant dense<0.000000e+00> : vector<1x8xf32>
    %825 = tpu.matmul %824, %4, %cst_292 {dimension_numbers = #tpu.dot_dimension_numbers<[1], [0], [0], [1], [0, 0, 1, 1], [], []>} : vector<1x32xf32>, vector<32x8xf32>, vector<1x8xf32> -> vector<1x8xf32>
    %cst_293 = arith.constant 1.000000e+01 : f32
    %826 = vector.broadcast %cst_293 : f32 to vector<1x8xf32>
    %827 = arith.mulf %826, %825 : vector<1x8xf32>
    %cst_294 = arith.constant dense<0xFF800000> : vector<1xf32>
    %828 = vector.multi_reduction <maximumf>, %827, %cst_294 [1] : vector<1x8xf32> to vector<1xf32>
    %829 = vector.shape_cast %828 : vector<1xf32> to vector<1x1xf32>
    %830 = vector.broadcast %829 : vector<1x1xf32> to vector<1x8xf32>
    %831 = arith.subf %827, %830 : vector<1x8xf32>
    %832 = math.exp %831 : vector<1x8xf32>
    %cst_295 = arith.constant dense<0.000000e+00> : vector<1xf32>
    %833 = vector.multi_reduction <add>, %832, %cst_295 [1] : vector<1x8xf32> to vector<1xf32>
    %834 = vector.shape_cast %833 : vector<1xf32> to vector<1x1xf32>
    %835 = tpu.reciprocal %834 {approx = true} : vector<1x1xf32> -> vector<1x1xf32>
    %836 = vector.broadcast %835 : vector<1x1xf32> to vector<1x8xf32>
    %837 = arith.mulf %832, %836 : vector<1x8xf32>
    %838 = tpu.concatenate %796, %781 in 0 : vector<1x32xf32>, vector<1x32xf32> -> vector<2x32xf32>
    %839 = arith.index_cast %c7_i32 : i32 to index
    %c0_296 = arith.constant 0 : index
    %c0_297 = arith.constant 0 : index
    %840 = vector.load %arg9[%839, %c0_296, %c0_297] : memref<8x2x32xf32, #tpu.memory_space<vmem>>, vector<1x2x32xf32>
    %841 = vector.shape_cast %840 : vector<1x2x32xf32> to vector<2x32xf32>
    %842 = vector.shape_cast %838 : vector<2x32xf32> to vector<1x2x32xf32>
    tpu.vector_store %arg9[%839, %c0_296, %c0_297], %842 {strides = array<i32>} : memref<8x2x32xf32, #tpu.memory_space<vmem>>, vector<1x2x32xf32>,
    %843 = arith.index_cast %c7_i32 : i32 to index
    %c0_298 = arith.constant 0 : index
    %c0_299 = arith.constant 0 : index
    %844 = vector.load %arg10[%843, %c0_298, %c0_299] : memref<8x1x8xf32, #tpu.memory_space<vmem>>, vector<1x1x8xf32>
    %845 = vector.shape_cast %844 : vector<1x1x8xf32> to vector<1x8xf32>
    %846 = vector.shape_cast %837 : vector<1x8xf32> to vector<1x1x8xf32>
    tpu.vector_store %arg10[%843, %c0_298, %c0_299], %846 {strides = array<i32>} : memref<8x1x8xf32, #tpu.memory_space<vmem>>, vector<1x1x8xf32>,
    %c8_i32 = arith.constant 8 : i32
    %c0_300 = arith.constant 0 : index
    %c0_301 = arith.constant 0 : index
    %847 = vector.load %arg13[%c0_300, %c0_301] : memref<1x32xf32, #tpu.memory_space<vmem>>, vector<1x32xf32>
    tpu.vector_store %arg13[%c0_300, %c0_301], %781 {strides = array<i32>} : memref<1x32xf32, #tpu.memory_space<vmem>>, vector<1x32xf32>,
    %c0_302 = arith.constant 0 : index
    %c0_303 = arith.constant 0 : index
    %848 = vector.load %arg14[%c0_302, %c0_303] : memref<1x32xf32, #tpu.memory_space<vmem>>, vector<1x32xf32>
    tpu.vector_store %arg14[%c0_302, %c0_303], %786 {strides = array<i32>} : memref<1x32xf32, #tpu.memory_space<vmem>>, vector<1x32xf32>,
    return
  }
}

</mosaic_0001>

<llo_original>
// kernel: tpu_custom_call.1
$region0: #{tpu_custom_call.1}
  #allocation0 [shape = 'u32[]', space=smem, size = 0x4, offset = 0x4, fixed_abs, tag = 'smem constant byte address 0x4 - core index']
  #allocation1 [shape = 'u32[144,128]{1,0:T(1,128)}', space=vmem, size = 0x12000, scoped, tag = 'internal scratch']
  %s0 = inlined_call_operand.vmem [shape: s32[8], index: 0, kind: input, shape index: {}]
  %s1 = inlined_call_operand.vmem [shape: f32[8,1,32], index: 1, kind: input, shape index: {}]
  %s2 = inlined_call_operand.vmem [shape: f32[8,1,32], index: 2, kind: input, shape index: {}]
  %s3 = inlined_call_operand.hbm [shape: f32[8,1,32], index: 3, kind: input, shape index: {}]
  %s4 = inlined_call_operand.vmem [shape: f32[32,32], index: 4, kind: input, shape index: {}]
  %s5 = inlined_call_operand.hbm [shape: f32[32,32], index: 5, kind: input, shape index: {}]
  %s6 = inlined_call_operand.vmem [shape: f32[32,8], index: 6, kind: input, shape index: {}]
  %s7 = inlined_call_operand.vmem [shape: f32[1,32], index: 7, kind: input, shape index: {}]
  %s8 = inlined_call_operand.vmem [shape: f32[1,32], index: 8, kind: input, shape index: {}]
  %s9 = inlined_call_operand.hbm [shape: f32[8,2,32], index: 9, kind: output, shape index: {0}]
  %s10 = inlined_call_operand.hbm [shape: f32[8,1,8], index: 10, kind: output, shape index: {1}]
  %s11 = inlined_call_operand.hbm [shape: f32[32,32], index: 11, kind: output, shape index: {2}]
  %s12 = inlined_call_operand.hbm [shape: f32[32,32], index: 12, kind: output, shape index: {3}]
  %s13 = inlined_call_operand.hbm [shape: f32[1,32], index: 13, kind: output, shape index: {4}]
  %s14 = inlined_call_operand.hbm [shape: f32[1,32], index: 14, kind: output, shape index: {5}]
  %15 = xla_tuple %s9, %s10, %s11, %s12, %s13, %s14
  %s16 = sld [smem:[#allocation0]]
  $region98: #{tpu_custom_call.1} parent=0
    _
  %s18 = ssub.s32 1, %s16
  %s19 = scalar_select 0, %s18, %s16
  $region1: #{tpu_custom_call.1} parent=0
    #allocation2 [shape = 'u8[512]{0}', space=smem, size = 0x200, scoped, tag = 'input window, operand 0, single buffered']
    #allocation3 [shape = 's32[1]{0}', space=sflag, size = 0x4, scoped, tag = 'scoped memory for tpu_custom_call.1']
    #allocation4 [shape = 's32[1]{0}', space=sflag, size = 0x4, scoped, tag = 'scoped memory for tpu_custom_call.1']
    #allocation5 [shape = 's32[1]{0}', space=sflag, size = 0x4, scoped, tag = 'scoped memory for tpu_custom_call.1']
    #allocation6 [shape = 'u8[4096]{0}', space=vmem, size = 0x1000, scoped, tag = 'input window, operand 3, single buffered']
    #allocation7 [shape = 'u8[16384]{0}', space=vmem, size = 0x4000, scoped, tag = 'input window, operand 5, single buffered']
    #allocation8 [shape = 's32[1]{0}', space=sflag, size = 0x4, scoped, tag = 'scoped memory for tpu_custom_call.1']
    #allocation9 [shape = 'u8[8192]{0}', space=vmem, size = 0x2000, scoped, tag = 'output window, operand 0, single buffered']
    #allocation10 [shape = 'u8[4096]{0}', space=vmem, size = 0x1000, scoped, tag = 'output window, operand 1, single buffered']
    #allocation11 [shape = 's32[1]{0}', space=sflag, size = 0x4, scoped, tag = 'scoped memory for tpu_custom_call.1']
    #allocation12 [shape = 'u8[16384]{0}', space=vmem, size = 0x4000, scoped, tag = 'output window, operand 2, single buffered']
    #allocation13 [shape = 'u8[16384]{0}', space=vmem, size = 0x4000, scoped, tag = 'output window, operand 3, single buffered']
    #allocation14 [shape = 's32[1]{0}', space=sflag, size = 0x4, scoped, tag = 'scoped memory for tpu_custom_call.1']
    #allocation15 [shape = 'u8[512]{0}', space=vmem, size = 0x400, scoped, tag = 'output window, operand 4, single buffered']
    #allocation16 [shape = 'u8[512]{0}', space=vmem, size = 0x400, scoped, tag = 'output window, operand 5, single buffered']
    #allocation17 [shape = 's32[1]{0}', space=sflag, size = 0x4, scoped, tag = 'scoped memory for tpu_custom_call.1']
    %20 = vsyncpa [#allocation5], 0
    %21 = vsyncpa [#allocation3], 0
    %22 = vsyncpa [#allocation8], 0
    %23 = vsyncpa [#allocation4], 0
    %24 = vsyncpa [#allocation11], 0
    %25 = vsyncpa [#allocation14], 0
    %26 = vsyncpa [#allocation17], 0
    // Predicated region
    $region2: #{tpu_custom_call.1} parent=1 // pred_check
      _
    $region3: #{tpu_custom_call.1} parent=1 // pred_check_branch
      %28 = sbr.rel (0) target = $region5
    $region4: #{tpu_custom_call.1} parent=1 // pred_region
      %s30 = ssub.s32 16, 16
      %31 = vsyncadd [#allocation5], %s30
      %s33 = sshll.u32 %s0, 4
      %s34 = int_to_ptr.vmem [resolvable:$true] %s33
      %36 = dma.vmem_to_smem %s34, 16, [#allocation2], [#allocation5]
    $region5: #{tpu_custom_call.1} parent=1 // pred_fallthru
      _
    // Predicated region
    $region6: #{tpu_custom_call.1} parent=1 // pred_check
      _
    $region7: #{tpu_custom_call.1} parent=1 // pred_check_branch
      %38 = sbr.rel (0) target = $region9
    $region8: #{tpu_custom_call.1} parent=1 // pred_region
      _
    $region9: #{tpu_custom_call.1} parent=1 // pred_fallthru
      _
    // Predicated region
    $region10: #{tpu_custom_call.1} parent=1 // pred_check
      _
    $region11: #{tpu_custom_call.1} parent=1 // pred_check_branch
      %40 = sbr.rel (0) target = $region13
    $region12: #{tpu_custom_call.1} parent=1 // pred_region
      _
    $region13: #{tpu_custom_call.1} parent=1 // pred_fallthru
      _
    // Predicated region
    $region14: #{tpu_custom_call.1} parent=1 // pred_check
      _
    $region15: #{tpu_custom_call.1} parent=1 // pred_check_branch
      %42 = sbr.rel (0) target = $region17
    $region16: #{tpu_custom_call.1} parent=1 // pred_region
      %s44 = ssub.s32 128, 128
      %45 = vsyncadd [#allocation3], %s44
      %s46 = sshll.u32 [#allocation6], 4
      %s47 = int_to_ptr.vmem [resolvable:$true] %s46
      %52 = dma.hbm_to_vmem [thread:$0]  %s3, 128, %s47, [#allocation3], 16, 16, 1
    $region17: #{tpu_custom_call.1} parent=1 // pred_fallthru
      _
    // Predicated region
    $region18: #{tpu_custom_call.1} parent=1 // pred_check
      _
    $region19: #{tpu_custom_call.1} parent=1 // pred_check_branch
      %54 = sbr.rel (0) target = $region21
    $region20: #{tpu_custom_call.1} parent=1 // pred_region
      _
    $region21: #{tpu_custom_call.1} parent=1 // pred_fallthru
      _
    // Predicated region
    $region22: #{tpu_custom_call.1} parent=1 // pred_check
      _
    $region23: #{tpu_custom_call.1} parent=1 // pred_check_branch
      %56 = sbr.rel (0) target = $region25
    $region24: #{tpu_custom_call.1} parent=1 // pred_region
      %s58 = ssub.s32 512, 512
      %59 = vsyncadd [#allocation8], %s58
      %s60 = sshll.u32 [#allocation7], 4
      %s61 = int_to_ptr.vmem [resolvable:$true] %s60
      %66 = dma.hbm_to_vmem [thread:$0]  %s5, 512, %s61, [#allocation8], 128, 128, 8
    $region25: #{tpu_custom_call.1} parent=1 // pred_fallthru
      _
    // Predicated region
    $region26: #{tpu_custom_call.1} parent=1 // pred_check
      _
    $region27: #{tpu_custom_call.1} parent=1 // pred_check_branch
      %68 = sbr.rel (0) target = $region29
    $region28: #{tpu_custom_call.1} parent=1 // pred_region
      _
    $region29: #{tpu_custom_call.1} parent=1 // pred_fallthru
      _
    // Predicated region
    $region30: #{tpu_custom_call.1} parent=1 // pred_check
      _
    $region31: #{tpu_custom_call.1} parent=1 // pred_check_branch
      %70 = sbr.rel (0) target = $region33
    $region32: #{tpu_custom_call.1} parent=1 // pred_region
      _
    $region33: #{tpu_custom_call.1} parent=1 // pred_fallthru
      _
    // Predicated region
    $region34: #{tpu_custom_call.1} parent=1 // pred_check
      _
    $region35: #{tpu_custom_call.1} parent=1 // pred_check_branch
      %72 = sbr.rel (0) target = $region37
    $region36: #{tpu_custom_call.1} parent=1 // pred_region
      _
    $region37: #{tpu_custom_call.1} parent=1 // pred_fallthru
      _
    // Predicated region
    $region38: #{tpu_custom_call.1} parent=1 // pred_check
      _
    $region39: #{tpu_custom_call.1} parent=1 // pred_check_branch
      %74 = sbr.rel (0) target = $region41
    $region40: #{tpu_custom_call.1} parent=1 // pred_region
      %75 = dma.done [#allocation5], 16
    $region41: #{tpu_custom_call.1} parent=1 // pred_fallthru
      _
    // Predicated region
    $region42: #{tpu_custom_call.1} parent=1 // pred_check
      _
    $region43: #{tpu_custom_call.1} parent=1 // pred_check_branch
      %77 = sbr.rel (0) target = $region45
    $region44: #{tpu_custom_call.1} parent=1 // pred_region
      %78 = dma.done [#allocation3], 128
    $region45: #{tpu_custom_call.1} parent=1 // pred_fallthru
      _
    // Predicated region
    $region46: #{tpu_custom_call.1} parent=1 // pred_check
      _
    $region47: #{tpu_custom_call.1} parent=1 // pred_check_branch
      %80 = sbr.rel (0) target = $region49
    $region48: #{tpu_custom_call.1} parent=1 // pred_region
      %81 = dma.done [#allocation8], 512
    $region49: #{tpu_custom_call.1} parent=1 // pred_fallthru
      _
    %82 = sfence
    %v83 = vld [vmem:[%s4] sm:$0xff]
    %v84 = vld [vmem:[%s4 + $0x8] sm:$0xff]
    %v85 = vld [vmem:[%s4 + $0x10] sm:$0xff]
    %v86 = vld [vmem:[%s4 + $0x18] sm:$0xff]
    %vm87 = vcmask 261120
    %88 = vst.msk [vmem:[#allocation12] sm:$0xff] %vm87, %v83
    %89 = vst.msk [vmem:[#allocation12 + $0x8] sm:$0xff] %vm87, %v84
    %90 = vst.msk [vmem:[#allocation12 + $0x10] sm:$0xff] %vm87, %v85
    %91 = vst.msk [vmem:[#allocation12 + $0x18] sm:$0xff] %vm87, %v86
    %v92 = vld [vmem:[#allocation7] sm:$0xff]
    %v93 = vld [vmem:[#allocation7 + $0x8] sm:$0xff]
    %v94 = vld [vmem:[#allocation7 + $0x10] sm:$0xff]
    %v95 = vld [vmem:[#allocation7 + $0x18] sm:$0xff]
    %96 = vst.msk [vmem:[#allocation13] sm:$0xff] %vm87, %v92
    %97 = vst.msk [vmem:[#allocation13 + $0x8] sm:$0xff] %vm87, %v93
    %98 = vst.msk [vmem:[#allocation13 + $0x10] sm:$0xff] %vm87, %v94
    %99 = vst.msk [vmem:[#allocation13 + $0x18] sm:$0xff] %vm87, %v95
    %v100 = vld [vmem:[%s6] sm:$0xff]
    %v101 = vld [vmem:[%s6 + $0x8] sm:$0xff]
    %v102 = vld [vmem:[%s6 + $0x10] sm:$0xff]
    %v103 = vld [vmem:[%s6 + $0x18] sm:$0xff]
    %v104 = vld [vmem:[%s7] sm:$0x1]
    %v105 = vld [vmem:[%s8] sm:$0x1]
    %v106 = vld [vmem:[%s1] sm:$0x1]
    %v107 = vld [vmem:[%s2] sm:$0x1]
    %v108 = vld [vmem:[#allocation6] sm:$0x1]
    %v109 = vld [vmem:[#allocation12] sm:$0xff]
    %v110 = vld [vmem:[#allocation12 + $0x8] sm:$0xff]
    %v111 = vld [vmem:[#allocation12 + $0x10] sm:$0xff]
    %v112 = vld [vmem:[#allocation12 + $0x18] sm:$0xff]
    %v113 = vld [vmem:[#allocation13] sm:$0xff]
    %v114 = vld [vmem:[#allocation13 + $0x8] sm:$0xff]
    %v115 = vld [vmem:[#allocation13 + $0x10] sm:$0xff]
    %v116 = vld [vmem:[#allocation13 + $0x18] sm:$0xff]
    %v118 = vlaneseq
    %v119 = vshrl.u32 %v118, 7
    %v120 = vsub.s32 0, %v119
    %v121 = vrot.slane %v104, %v120
    %vm123 = vcmask 1040384
    %v124 = vsel %vm123, %v106, %v121
    %v126 = vsel %vm87, %v124, 0
    %128 = vmatprep.subr.mxu0 0.0
    %129 = vmatpush1.msra.mxu0 %v113
    %130 = vmatprep.subr.mxu0 0.0
    %131 = vmatpush1.msra.mxu0 %v114
    %132 = vmatprep.subr.mxu0 0.0
    %133 = vmatpush1.msra.mxu0 %v115
    %134 = vmatprep.subr.mxu0 0.0
    %135 = vmatpush1.msra.mxu0 %v116
    %136 = vmatprep.subr.mxu0 0.0
    %137 = vmatpush1.msra.mxu0 0.0
    %138 = vmatprep.subr.mxu0 0.0
    %139 = vmatpush1.msra.mxu0 0.0
    %140 = vmatprep.subr.mxu0 0.0
    %141 = vmatpush1.msra.mxu0 0.0
    %142 = vmatprep.subr.mxu0 0.0
    %143 = vmatpush1.msra.mxu0 0.0
    %144 = vmatprep.subr.mxu0 0.0
    %145 = vmatpush1.msra.mxu0 0.0
    %146 = vmatprep.subr.mxu0 0.0
    %147 = vmatpush1.msra.mxu0 0.0
    %148 = vmatprep.subr.mxu0 0.0
    %149 = vmatpush1.msra.mxu0 0.0
    %150 = vmatprep.subr.mxu0 0.0
    %151 = vmatpush1.msra.mxu0 0.0
    %152 = vmatprep.subr.mxu0 0.0
    %153 = vmatpush1.msra.mxu0 0.0
    %154 = vmatprep.subr.mxu0 0.0
    %155 = vmatpush1.msra.mxu0 0.0
    %156 = vmatprep.subr.mxu0 0.0
    %157 = vmatpush1.msra.mxu0 0.0
    %158 = vmatprep.subr.mxu0 0.0
    %159 = vmatpush1.msra.mxu0 0.0
    %160 = vmatprep.subr.mxu0 0.0
    %161 = vmatpush1.msra.mxu0 0.0
    %162 = vmatprep.subr.mxu0 0.0
    %163 = vmatpush1.msra.mxu0 0.0
    %164 = vmatprep.subr.mxu0 0.0
    %165 = vmatpush1.msra.mxu0 0.0
    %166 = vmatprep.subr.mxu0 0.0
    %167 = vmatpush1.msra.mxu0 0.0
    %168 = vmatprep.subr.mxu0 0.0
    %169 = vmatpush1.msra.mxu0 0.0
    %170 = vmatprep.subr.mxu0 0.0
    %171 = vmatpush1.msra.mxu0 0.0
    %172 = vmatprep.subr.mxu0 0.0
    %173 = vmatpush1.msra.mxu0 0.0
    %174 = vmatprep.subr.mxu0 0.0
    %175 = vmatpush1.msra.mxu0 0.0
    %176 = vmatprep.subr.mxu0 0.0
    %177 = vmatpush1.msra.mxu0 0.0
    %178 = vmatprep.subr.mxu0 0.0
    %179 = vmatpush1.msra.mxu0 0.0
    %180 = vmatprep.subr.mxu0 0.0
    %181 = vmatpush1.msra.mxu0 0.0
    %182 = vmatprep.subr.mxu0 0.0
    %183 = vmatpush1.msra.mxu0 0.0
    %184 = vmatprep.subr.mxu0 0.0
    %185 = vmatpush1.msra.mxu0 0.0
    %186 = vmatprep.subr.mxu0 0.0
    %187 = vmatpush1.msra.mxu0 0.0
    %188 = vmatprep.subr.mxu0 0.0
    %189 = vmatpush1.msra.mxu0 0.0
    %190 = vmatprep.subr.mxu0 0.0
    %191 = vmatpush1.msra.mxu0 0.0
    %192 = vmatprep.mubr.f32.mxu0 0.0
    %193 = vmatmul.mubr.f32.gmra.mrb[0].mxu0 %v126
    %v194 = vpop.f32.mrb[0].mxu0
    %v195 = vadd.f32 0.0, %v194
    %v196 = vpop.f32.mrb[0].mxu0
    %197 = vdwg.mxu0
    %v198 = vmul.f32 %v195, 15.0
    %v200 = vrot.slane %v198, 1
    %v202 = vmax.f32 %v198, %v200
    %v203 = vmax.f32 %v202, 0.0
    %v204 = vsub.f32 %v198, %v203
    %v205 = vmul.f32 %v204, 1.442695
    %v206 = vpow.pop %v205
    %v208 = vrot.slane %v203, 7
    %v210 = vsub.f32 %v198, %v208
    %v211 = vmul.f32 %v210, 1.442695
    %v212 = vpow.pop %v211
    %v213 = vsub.f32 0.0, %v203
    %v214 = vmul.f32 %v213, 1.442695
    %v215 = vpow.pop %v214
    %v216 = vmul.f32 %v215, 0.1
    %v217 = vadd.f32 %v206, %v216
    %v219 = vrot.slane %v212, 1
    %v221 = vadd.f32 %v217, %v219
    %v222 = vrcp.pop %v221
    %v223 = vmul.f32 %v217, %v222
    %vm224 = vcmp.lt.f32.partialorder %v108, %v223
    %v225 = vsel %vm224, 1, 0
    %v226 = vcvt.s32.f32 %v225
    %v227 = vmul.f32 %v226, %v106
    %v228 = vmul.f32 %v105, 0.1
    %v229 = vmul.f32 %v106, 0.9
    %v230 = vadd.f32 %v228, %v229
    %v232 = vsel %vm87, %v227, 0
    %234 = vmatprep.subr.mxu0 0.0
    %235 = vmatpush1.msra.mxu0 %v109
    %236 = vmatprep.subr.mxu0 0.0
    %237 = vmatpush1.msra.mxu0 %v110
    %238 = vmatprep.subr.mxu0 0.0
    %239 = vmatpush1.msra.mxu0 %v111
    %240 = vmatprep.subr.mxu0 0.0
    %241 = vmatpush1.msra.mxu0 %v112
    %242 = vmatprep.subr.mxu0 0.0
    %243 = vmatpush1.msra.mxu0 0.0
    %244 = vmatprep.subr.mxu0 0.0
    %245 = vmatpush1.msra.mxu0 0.0
    %246 = vmatprep.subr.mxu0 0.0
    %247 = vmatpush1.msra.mxu0 0.0
    %248 = vmatprep.subr.mxu0 0.0
    %249 = vmatpush1.msra.mxu0 0.0
    %250 = vmatprep.subr.mxu0 0.0
    %251 = vmatpush1.msra.mxu0 0.0
    %252 = vmatprep.subr.mxu0 0.0
    %253 = vmatpush1.msra.mxu0 0.0
    %254 = vmatprep.subr.mxu0 0.0
    %255 = vmatpush1.msra.mxu0 0.0
    %256 = vmatprep.subr.mxu0 0.0
    %257 = vmatpush1.msra.mxu0 0.0
    %258 = vmatprep.subr.mxu0 0.0
    %259 = vmatpush1.msra.mxu0 0.0
    %260 = vmatprep.subr.mxu0 0.0
    %261 = vmatpush1.msra.mxu0 0.0
    %262 = vmatprep.subr.mxu0 0.0
    %263 = vmatpush1.msra.mxu0 0.0
    %264 = vmatprep.subr.mxu0 0.0
    %265 = vmatpush1.msra.mxu0 0.0
    %266 = vmatprep.subr.mxu0 0.0
    %267 = vmatpush1.msra.mxu0 0.0
    %268 = vmatprep.subr.mxu0 0.0
    %269 = vmatpush1.msra.mxu0 0.0
    %270 = vmatprep.subr.mxu0 0.0
    %271 = vmatpush1.msra.mxu0 0.0
    %272 = vmatprep.subr.mxu0 0.0
    %273 = vmatpush1.msra.mxu0 0.0
    %274 = vmatprep.subr.mxu0 0.0
    %275 = vmatpush1.msra.mxu0 0.0
    %276 = vmatprep.subr.mxu0 0.0
    %277 = vmatpush1.msra.mxu0 0.0
    %278 = vmatprep.subr.mxu0 0.0
    %279 = vmatpush1.msra.mxu0 0.0
    %280 = vmatprep.subr.mxu0 0.0
    %281 = vmatpush1.msra.mxu0 0.0
    %282 = vmatprep.subr.mxu0 0.0
    %283 = vmatpush1.msra.mxu0 0.0
    %284 = vmatprep.subr.mxu0 0.0
    %285 = vmatpush1.msra.mxu0 0.0
    %286 = vmatprep.subr.mxu0 0.0
    %287 = vmatpush1.msra.mxu0 0.0
    %288 = vmatprep.subr.mxu0 0.0
    %289 = vmatpush1.msra.mxu0 0.0
    %290 = vmatprep.subr.mxu0 0.0
    %291 = vmatpush1.msra.mxu0 0.0
    %292 = vmatprep.subr.mxu0 0.0
    %293 = vmatpush1.msra.mxu0 0.0
    %294 = vmatprep.subr.mxu0 0.0
    %295 = vmatpush1.msra.mxu0 0.0
    %296 = vmatprep.subr.mxu0 0.0
    %297 = vmatpush1.msra.mxu0 0.0
    %298 = vmatprep.mubr.f32.mxu0 0.0
    %299 = vmatmul.mubr.f32.gmra.mrb[0].mxu0 %v232
    %v300 = vpop.f32.mrb[0].mxu0
    %v301 = vadd.f32 0.0, %v300
    %v302 = vpop.f32.mrb[0].mxu0
    %303 = vdwg.mxu0
    %s304 = sld [smem:[#allocation2]]
    %v305 = vlaneseq
    %v306 = vand.u32 %v305, 127
    %v307 = vstv %s304
    %vm308 = vcmp.eq.s32.totalorder %v306, %v307
    %v309 = vsel %vm308, 1, 0
    %v310 = vcvt.s32.f32 %v309
    %v311 = vsub.f32 %v107, %v301
    %v312 = vmul.f32 %v310, %v311
    %vm313 = vcmask 253952
    %v314 = vsel %vm313, %v312, 0.0
    %315 = vadd.xlane.f32.xlu0 %v314
    %v316 = vpop.xlane.xlu0 %315
    %s317 = scalar_lea.vmem [#allocation12], %s304
    %v318 = vld [vmem:[%s317] sm:$0x1]
    %v319 = vmul.f32 %v316, 0.075
    %v320 = vmul.f32 %v319, %v227
    %v321 = vadd.f32 %v318, %v320
    %322 = vst.msk [vmem:[%s317] sm:$0x1] %vm313, %v321
    %s323 = scalar_lea.vmem [#allocation13], %s304
    %v324 = vld [vmem:[%s323] sm:$0x1]
    %v325 = vmul.f32 %v319, %v230
    %v326 = vadd.f32 %v324, %v325
    %327 = vst.msk [vmem:[%s323] sm:$0x1] %vm313, %v326
    %v328 = vmul.f32 %v312, %v227
    %v329 = vsel %vm313, %v328, 0.0
    %330 = vadd.xlane.f32.xlu0 %v329
    %v331 = vpop.xlane.xlu0 %330
    %v332 = vmul.f32 %v331, 0.075
    %v333 = vmul.f32 %v332, %v227
    %v334 = vadd.f32 %v301, %v333
    %v336 = vsel %vm87, %v334, 0
    %338 = vmatprep.subr.mxu0 0.0
    %339 = vmatpush1.msra.mxu0 %v100
    %340 = vmatprep.subr.mxu0 0.0
    %341 = vmatpush1.msra.mxu0 %v101
    %342 = vmatprep.subr.mxu0 0.0
    %343 = vmatpush1.msra.mxu0 %v102
    %344 = vmatprep.subr.mxu0 0.0
    %345 = vmatpush1.msra.mxu0 %v103
    %346 = vmatprep.subr.mxu0 0.0
    %347 = vmatpush1.msra.mxu0 0.0
    %348 = vmatprep.subr.mxu0 0.0
    %349 = vmatpush1.msra.mxu0 0.0
    %350 = vmatprep.subr.mxu0 0.0
    %351 = vmatpush1.msra.mxu0 0.0
    %352 = vmatprep.subr.mxu0 0.0
    %353 = vmatpush1.msra.mxu0 0.0
    %354 = vmatprep.subr.mxu0 0.0
    %355 = vmatpush1.msra.mxu0 0.0
    %356 = vmatprep.subr.mxu0 0.0
    %357 = vmatpush1.msra.mxu0 0.0
    %358 = vmatprep.subr.mxu0 0.0
    %359 = vmatpush1.msra.mxu0 0.0
    %360 = vmatprep.subr.mxu0 0.0
    %361 = vmatpush1.msra.mxu0 0.0
    %362 = vmatprep.subr.mxu0 0.0
    %363 = vmatpush1.msra.mxu0 0.0
    %364 = vmatprep.subr.mxu0 0.0
    %365 = vmatpush1.msra.mxu0 0.0
    %366 = vmatprep.subr.mxu0 0.0
    %367 = vmatpush1.msra.mxu0 0.0
    %368 = vmatprep.subr.mxu0 0.0
    %369 = vmatpush1.msra.mxu0 0.0
    %370 = vmatprep.subr.mxu0 0.0
    %371 = vmatpush1.msra.mxu0 0.0
    %372 = vmatprep.subr.mxu0 0.0
    %373 = vmatpush1.msra.mxu0 0.0
    %374 = vmatprep.subr.mxu0 0.0
    %375 = vmatpush1.msra.mxu0 0.0
    %376 = vmatprep.subr.mxu0 0.0
    %377 = vmatpush1.msra.mxu0 0.0
    %378 = vmatprep.subr.mxu0 0.0
    %379 = vmatpush1.msra.mxu0 0.0
    %380 = vmatprep.subr.mxu0 0.0
    %381 = vmatpush1.msra.mxu0 0.0
    %382 = vmatprep.subr.mxu0 0.0
    %383 = vmatpush1.msra.mxu0 0.0
    %384 = vmatprep.subr.mxu0 0.0
    %385 = vmatpush1.msra.mxu0 0.0
    %386 = vmatprep.subr.mxu0 0.0
    %387 = vmatpush1.msra.mxu0 0.0
    %388 = vmatprep.subr.mxu0 0.0
    %389 = vmatpush1.msra.mxu0 0.0
    %390 = vmatprep.subr.mxu0 0.0
    %391 = vmatpush1.msra.mxu0 0.0
    %392 = vmatprep.subr.mxu0 0.0
    %393 = vmatpush1.msra.mxu0 0.0
    %394 = vmatprep.subr.mxu0 0.0
    %395 = vmatpush1.msra.mxu0 0.0
    %396 = vmatprep.subr.mxu0 0.0
    %397 = vmatpush1.msra.mxu0 0.0
    %398 = vmatprep.subr.mxu0 0.0
    %399 = vmatpush1.msra.mxu0 0.0
    %400 = vmatprep.subr.mxu0 0.0
    %401 = vmatpush1.msra.mxu0 0.0
    %402 = vmatprep.mubr.f32.mxu0 0.0
    %403 = vmatmul.mubr.f32.gmra.mrb[0].mxu0 %v336
    %v404 = vpop.f32.mrb[0].mxu0
    %v405 = vadd.f32 0.0, %v404
    %v406 = vpop.f32.mrb[0].mxu0
    %407 = vdwg.mxu0
    %v408 = vmul.f32 %v405, 10.0
    %vm409 = vcmask 57344
    %v410 = vsel %vm409, %v408, -inf
    %411 = vmax.xlane.f32.xlu0 %v410
    %v412 = vpop.xlane.xlu0 %411
    %v413 = vsub.f32 %v408, %v412
    %v414 = vmul.f32 %v413, 1.442695
    %v415 = vpow.pop %v414
    %v416 = vsel %vm409, %v415, 0.0
    %417 = vadd.xlane.f32.xlu0 %v416
    %v418 = vpop.xlane.xlu0 %417
    %v419 = vrcp.pop %v418
    %v420 = vmul.f32 %v415, %v419
    %v421 = vlaneseq
    %v422 = vshrl.u32 %v421, 7
    %v423 = vsub.s32 0, %v422
    %v424 = vrot.slane %v227, %v423
    %v426 = vsel %vm123, %v312, %v424
    %vm427 = vcmask 254976
    %428 = vst.msk [vmem:[#allocation9] sm:$0x3] %vm427, %v426
    %429 = vst.msk [vmem:[#allocation10] sm:$0x1] %vm409, %v420
    %s430 = scalar_lea.vmem %s1, 1
    %v431 = vld [vmem:[%s430] sm:$0x1]
    %s432 = scalar_lea.vmem %s2, 1
    %v433 = vld [vmem:[%s432] sm:$0x1]
    %s434 = scalar_lea.vmem [#allocation6], 1
    %v435 = vld [vmem:[%s434] sm:$0x1]
    %v436 = vld [vmem:[#allocation12] sm:$0xff]
    %v437 = vld [vmem:[#allocation12 + $0x8] sm:$0xff]
    %v438 = vld [vmem:[#allocation12 + $0x10] sm:$0xff]
    %v439 = vld [vmem:[#allocation12 + $0x18] sm:$0xff]
    %v440 = vld [vmem:[#allocation13] sm:$0xff]
    %v441 = vld [vmem:[#allocation13 + $0x8] sm:$0xff]
    %v442 = vld [vmem:[#allocation13 + $0x10] sm:$0xff]
    %v443 = vld [vmem:[#allocation13 + $0x18] sm:$0xff]
    %v444 = vsel %vm123, %v431, %v424
    %v446 = vsel %vm87, %v444, 0
    %448 = vmatprep.subr.mxu0 0.0
    %449 = vmatpush1.msra.mxu0 %v440
    %450 = vmatprep.subr.mxu0 0.0
    %451 = vmatpush1.msra.mxu0 %v441
    %452 = vmatprep.subr.mxu0 0.0
    %453 = vmatpush1.msra.mxu0 %v442
    %454 = vmatprep.subr.mxu0 0.0
    %455 = vmatpush1.msra.mxu0 %v443
    %456 = vmatprep.subr.mxu0 0.0
    %457 = vmatpush1.msra.mxu0 0.0
    %458 = vmatprep.subr.mxu0 0.0
    %459 = vmatpush1.msra.mxu0 0.0
    %460 = vmatprep.subr.mxu0 0.0
    %461 = vmatpush1.msra.mxu0 0.0
    %462 = vmatprep.subr.mxu0 0.0
    %463 = vmatpush1.msra.mxu0 0.0
    %464 = vmatprep.subr.mxu0 0.0
    %465 = vmatpush1.msra.mxu0 0.0
    %466 = vmatprep.subr.mxu0 0.0
    %467 = vmatpush1.msra.mxu0 0.0
    %468 = vmatprep.subr.mxu0 0.0
    %469 = vmatpush1.msra.mxu0 0.0
    %470 = vmatprep.subr.mxu0 0.0
    %471 = vmatpush1.msra.mxu0 0.0
    %472 = vmatprep.subr.mxu0 0.0
    %473 = vmatpush1.msra.mxu0 0.0
    %474 = vmatprep.subr.mxu0 0.0
    %475 = vmatpush1.msra.mxu0 0.0
    %476 = vmatprep.subr.mxu0 0.0
    %477 = vmatpush1.msra.mxu0 0.0
    %478 = vmatprep.subr.mxu0 0.0
    %479 = vmatpush1.msra.mxu0 0.0
    %480 = vmatprep.subr.mxu0 0.0
    %481 = vmatpush1.msra.mxu0 0.0
    %482 = vmatprep.subr.mxu0 0.0
    %483 = vmatpush1.msra.mxu0 0.0
    %484 = vmatprep.subr.mxu0 0.0
    %485 = vmatpush1.msra.mxu0 0.0
    %486 = vmatprep.subr.mxu0 0.0
    %487 = vmatpush1.msra.mxu0 0.0
    %488 = vmatprep.subr.mxu0 0.0
    %489 = vmatpush1.msra.mxu0 0.0
    %490 = vmatprep.subr.mxu0 0.0
    %491 = vmatpush1.msra.mxu0 0.0
    %492 = vmatprep.subr.mxu0 0.0
    %493 = vmatpush1.msra.mxu0 0.0
    %494 = vmatprep.subr.mxu0 0.0
    %495 = vmatpush1.msra.mxu0 0.0
    %496 = vmatprep.subr.mxu0 0.0
    %497 = vmatpush1.msra.mxu0 0.0
    %498 = vmatprep.subr.mxu0 0.0
    %499 = vmatpush1.msra.mxu0 0.0
    %500 = vmatprep.subr.mxu0 0.0
    %501 = vmatpush1.msra.mxu0 0.0
    %502 = vmatprep.subr.mxu0 0.0
    %503 = vmatpush1.msra.mxu0 0.0
    %504 = vmatprep.subr.mxu0 0.0
    %505 = vmatpush1.msra.mxu0 0.0
    %506 = vmatprep.subr.mxu0 0.0
    %507 = vmatpush1.msra.mxu0 0.0
    %508 = vmatprep.subr.mxu0 0.0
    %509 = vmatpush1.msra.mxu0 0.0
    %510 = vmatprep.subr.mxu0 0.0
    %511 = vmatpush1.msra.mxu0 0.0
    %512 = vmatprep.mubr.f32.mxu0 0.0
    %513 = vmatmul.mubr.f32.gmra.mrb[0].mxu0 %v446
    %v514 = vpop.f32.mrb[0].mxu0
    %v515 = vadd.f32 0.0, %v514
    %v516 = vpop.f32.mrb[0].mxu0
    %517 = vdwg.mxu0
    %v518 = vmul.f32 %v515, 15.0
    %v520 = vrot.slane %v518, 1
    %v522 = vmax.f32 %v518, %v520
    %v523 = vmax.f32 %v522, 0.0
    %v524 = vsub.f32 %v518, %v523
    %v525 = vmul.f32 %v524, 1.442695
    %v526 = vpow.pop %v525
    %v528 = vrot.slane %v523, 7
    %v530 = vsub.f32 %v518, %v528
    %v531 = vmul.f32 %v530, 1.442695
    %v532 = vpow.pop %v531
    %v533 = vsub.f32 0.0, %v523
    %v534 = vmul.f32 %v533, 1.442695
    %v535 = vpow.pop %v534
    %v536 = vmul.f32 %v535, 0.1
    %v537 = vadd.f32 %v526, %v536
    %v539 = vrot.slane %v532, 1
    %v541 = vadd.f32 %v537, %v539
    %v542 = vrcp.pop %v541
    %v543 = vmul.f32 %v537, %v542
    %vm544 = vcmp.lt.f32.partialorder %v435, %v543
    %v545 = vsel %vm544, 1, 0
    %v546 = vcvt.s32.f32 %v545
    %v547 = vmul.f32 %v546, %v431
    %v548 = vmul.f32 %v230, 0.1
    %v549 = vmul.f32 %v431, 0.9
    %v550 = vadd.f32 %v548, %v549
    %v552 = vsel %vm87, %v547, 0
    %554 = vmatprep.subr.mxu0 0.0
    %555 = vmatpush1.msra.mxu0 %v436
    %556 = vmatprep.subr.mxu0 0.0
    %557 = vmatpush1.msra.mxu0 %v437
    %558 = vmatprep.subr.mxu0 0.0
    %559 = vmatpush1.msra.mxu0 %v438
    %560 = vmatprep.subr.mxu0 0.0
    %561 = vmatpush1.msra.mxu0 %v439
    %562 = vmatprep.subr.mxu0 0.0
    %563 = vmatpush1.msra.mxu0 0.0
    %564 = vmatprep.subr.mxu0 0.0
    %565 = vmatpush1.msra.mxu0 0.0
    %566 = vmatprep.subr.mxu0 0.0
    %567 = vmatpush1.msra.mxu0 0.0
    %568 = vmatprep.subr.mxu0 0.0
    %569 = vmatpush1.msra.mxu0 0.0
    %570 = vmatprep.subr.mxu0 0.0
    %571 = vmatpush1.msra.mxu0 0.0
    %572 = vmatprep.subr.mxu0 0.0
    %573 = vmatpush1.msra.mxu0 0.0
    %574 = vmatprep.subr.mxu0 0.0
    %575 = vmatpush1.msra.mxu0 0.0
    %576 = vmatprep.subr.mxu0 0.0
    %577 = vmatpush1.msra.mxu0 0.0
    %578 = vmatprep.subr.mxu0 0.0
    %579 = vmatpush1.msra.mxu0 0.0
    %580 = vmatprep.subr.mxu0 0.0
    %581 = vmatpush1.msra.mxu0 0.0
    %582 = vmatprep.subr.mxu0 0.0
    %583 = vmatpush1.msra.mxu0 0.0
    %584 = vmatprep.subr.mxu0 0.0
    %585 = vmatpush1.msra.mxu0 0.0
    %586 = vmatprep.subr.mxu0 0.0
    %587 = vmatpush1.msra.mxu0 0.0
    %588 = vmatprep.subr.mxu0 0.0
    %589 = vmatpush1.msra.mxu0 0.0
    %590 = vmatprep.subr.mxu0 0.0
    %591 = vmatpush1.msra.mxu0 0.0
    %592 = vmatprep.subr.mxu0 0.0
    %593 = vmatpush1.msra.mxu0 0.0
    %594 = vmatprep.subr.mxu0 0.0
    %595 = vmatpush1.msra.mxu0 0.0
    %596 = vmatprep.subr.mxu0 0.0
    %597 = vmatpush1.msra.mxu0 0.0
    %598 = vmatprep.subr.mxu0 0.0
    %599 = vmatpush1.msra.mxu0 0.0
    %600 = vmatprep.subr.mxu0 0.0
    %601 = vmatpush1.msra.mxu0 0.0
    %602 = vmatprep.subr.mxu0 0.0
    %603 = vmatpush1.msra.mxu0 0.0
    %604 = vmatprep.subr.mxu0 0.0
    %605 = vmatpush1.msra.mxu0 0.0
    %606 = vmatprep.subr.mxu0 0.0
    %607 = vmatpush1.msra.mxu0 0.0
    %608 = vmatprep.subr.mxu0 0.0
    %609 = vmatpush1.msra.mxu0 0.0
    %610 = vmatprep.subr.mxu0 0.0
    %611 = vmatpush1.msra.mxu0 0.0
    %612 = vmatprep.subr.mxu0 0.0
    %613 = vmatpush1.msra.mxu0 0.0
    %614 = vmatprep.subr.mxu0 0.0
    %615 = vmatpush1.msra.mxu0 0.0
    %616 = vmatprep.subr.mxu0 0.0
    %617 = vmatpush1.msra.mxu0 0.0
    %618 = vmatprep.mubr.f32.mxu0 0.0
    %619 = vmatmul.mubr.f32.gmra.mrb[0].mxu0 %v552
    %v620 = vpop.f32.mrb[0].mxu0
    %v621 = vadd.f32 0.0, %v620
    %v622 = vpop.f32.mrb[0].mxu0
    %623 = vdwg.mxu0
    %s624 = sld [smem:[#allocation2 + $0x1]]
    %v625 = vstv %s624
    %vm626 = vcmp.eq.s32.totalorder %v306, %v625
    %v627 = vsel %vm626, 1, 0
    %v628 = vcvt.s32.f32 %v627
    %v629 = vsub.f32 %v433, %v621
    %v630 = vmul.f32 %v628, %v629
    %v631 = vsel %vm313, %v630, 0.0
    %632 = vadd.xlane.f32.xlu0 %v631
    %v633 = vpop.xlane.xlu0 %632
    %s634 = scalar_lea.vmem [#allocation12], %s624
    %v635 = vld [vmem:[%s634] sm:$0x1]
    %v636 = vmul.f32 %v633, 0.075
    %v637 = vmul.f32 %v636, %v547
    %v638 = vadd.f32 %v635, %v637
    %639 = vst.msk [vmem:[%s634] sm:$0x1] %vm313, %v638
    %s640 = scalar_lea.vmem [#allocation13], %s624
    %v641 = vld [vmem:[%s640] sm:$0x1]
    %v642 = vmul.f32 %v636, %v550
    %v643 = vadd.f32 %v641, %v642
    %644 = vst.msk [vmem:[%s640] sm:$0x1] %vm313, %v643
    %v645 = vmul.f32 %v630, %v547
    %v646 = vsel %vm313, %v645, 0.0
    %647 = vadd.xlane.f32.xlu0 %v646
    %v648 = vpop.xlane.xlu0 %647
    %v649 = vmul.f32 %v648, 0.075
    %v650 = vmul.f32 %v649, %v547
    %v651 = vadd.f32 %v621, %v650
    %v653 = vsel %vm87, %v651, 0
    %655 = vmatprep.subr.mxu0 0.0
    %656 = vmatpush1.msra.mxu0 %v100
    %657 = vmatprep.subr.mxu0 0.0
    %658 = vmatpush1.msra.mxu0 %v101
    %659 = vmatprep.subr.mxu0 0.0
    %660 = vmatpush1.msra.mxu0 %v102
    %661 = vmatprep.subr.mxu0 0.0
    %662 = vmatpush1.msra.mxu0 %v103
    %663 = vmatprep.subr.mxu0 0.0
    %664 = vmatpush1.msra.mxu0 0.0
    %665 = vmatprep.subr.mxu0 0.0
    %666 = vmatpush1.msra.mxu0 0.0
    %667 = vmatprep.subr.mxu0 0.0
    %668 = vmatpush1.msra.mxu0 0.0
    %669 = vmatprep.subr.mxu0 0.0
    %670 = vmatpush1.msra.mxu0 0.0
    %671 = vmatprep.subr.mxu0 0.0
    %672 = vmatpush1.msra.mxu0 0.0
    %673 = vmatprep.subr.mxu0 0.0
    %674 = vmatpush1.msra.mxu0 0.0
    %675 = vmatprep.subr.mxu0 0.0
    %676 = vmatpush1.msra.mxu0 0.0
    %677 = vmatprep.subr.mxu0 0.0
    %678 = vmatpush1.msra.mxu0 0.0
    %679 = vmatprep.subr.mxu0 0.0
    %680 = vmatpush1.msra.mxu0 0.0
    %681 = vmatprep.subr.mxu0 0.0
    %682 = vmatpush1.msra.mxu0 0.0
    %683 = vmatprep.subr.mxu0 0.0
    %684 = vmatpush1.msra.mxu0 0.0
    %685 = vmatprep.subr.mxu0 0.0
    %686 = vmatpush1.msra.mxu0 0.0
    %687 = vmatprep.subr.mxu0 0.0
    %688 = vmatpush1.msra.mxu0 0.0
    %689 = vmatprep.subr.mxu0 0.0
    %690 = vmatpush1.msra.mxu0 0.0
    %691 = vmatprep.subr.mxu0 0.0
    %692 = vmatpush1.msra.mxu0 0.0
    %693 = vmatprep.subr.mxu0 0.0
    %694 = vmatpush1.msra.mxu0 0.0
    %695 = vmatprep.subr.mxu0 0.0
    %696 = vmatpush1.msra.mxu0 0.0
    %697 = vmatprep.subr.mxu0 0.0
    %698 = vmatpush1.msra.mxu0 0.0
    %699 = vmatprep.subr.mxu0 0.0
    %700 = vmatpush1.msra.mxu0 0.0
    %701 = vmatprep.subr.mxu0 0.0
    %702 = vmatpush1.msra.mxu0 0.0
    %703 = vmatprep.subr.mxu0 0.0
    %704 = vmatpush1.msra.mxu0 0.0
    %705 = vmatprep.subr.mxu0 0.0
    %706 = vmatpush1.msra.mxu0 0.0
    %707 = vmatprep.subr.mxu0 0.0
    %708 = vmatpush1.msra.mxu0 0.0
    %709 = vmatprep.subr.mxu0 0.0
    %710 = vmatpush1.msra.mxu0 0.0
    %711 = vmatprep.subr.mxu0 0.0
    %712 = vmatpush1.msra.mxu0 0.0
    %713 = vmatprep.subr.mxu0 0.0
    %714 = vmatpush1.msra.mxu0 0.0
    %715 = vmatprep.subr.mxu0 0.0
    %716 = vmatpush1.msra.mxu0 0.0
    %717 = vmatprep.subr.mxu0 0.0
    %718 = vmatpush1.msra.mxu0 0.0
    %719 = vmatprep.mubr.f32.mxu0 0.0
    %720 = vmatmul.mubr.f32.gmra.mrb[0].mxu0 %v653
    %v721 = vpop.f32.mrb[0].mxu0
    %v722 = vadd.f32 0.0, %v721
    %v723 = vpop.f32.mrb[0].mxu0
    %724 = vdwg.mxu0
    %v725 = vmul.f32 %v722, 10.0
    %v726 = vsel %vm409, %v725, -inf
    %727 = vmax.xlane.f32.xlu0 %v726
    %v728 = vpop.xlane.xlu0 %727
    %v729 = vsub.f32 %v725, %v728
    %v730 = vmul.f32 %v729, 1.442695
    %v731 = vpow.pop %v730
    %v732 = vsel %vm409, %v731, 0.0
    %733 = vadd.xlane.f32.xlu0 %v732
    %v734 = vpop.xlane.xlu0 %733
    %v735 = vrcp.pop %v734
    %v736 = vmul.f32 %v731, %v735
    %v737 = vlaneseq
    %v738 = vshrl.u32 %v737, 7
    %v739 = vsub.s32 0, %v738
    %v740 = vrot.slane %v547, %v739
    %v742 = vsel %vm123, %v630, %v740
    %s743 = scalar_lea.vmem [#allocation9], 2
    %744 = vst.msk [vmem:[%s743] sm:$0x3] %vm427, %v742
    %s745 = scalar_lea.vmem [#allocation10], 1
    %746 = vst.msk [vmem:[%s745] sm:$0x1] %vm409, %v736
    %s747 = scalar_lea.vmem %s1, 2
    %v748 = vld [vmem:[%s747] sm:$0x1]
    %s749 = scalar_lea.vmem %s2, 2
    %v750 = vld [vmem:[%s749] sm:$0x1]
    %s751 = scalar_lea.vmem [#allocation6], 2
    %v752 = vld [vmem:[%s751] sm:$0x1]
    %v753 = vld [vmem:[#allocation12] sm:$0xff]
    %v754 = vld [vmem:[#allocation12 + $0x8] sm:$0xff]
    %v755 = vld [vmem:[#allocation12 + $0x10] sm:$0xff]
    %v756 = vld [vmem:[#allocation12 + $0x18] sm:$0xff]
    %v757 = vld [vmem:[#allocation13] sm:$0xff]
    %v758 = vld [vmem:[#allocation13 + $0x8] sm:$0xff]
    %v759 = vld [vmem:[#allocation13 + $0x10] sm:$0xff]
    %v760 = vld [vmem:[#allocation13 + $0x18] sm:$0xff]
    %v761 = vsel %vm123, %v748, %v740
    %v763 = vsel %vm87, %v761, 0
    %765 = vmatprep.subr.mxu0 0.0
    %766 = vmatpush1.msra.mxu0 %v757
    %767 = vmatprep.subr.mxu0 0.0
    %768 = vmatpush1.msra.mxu0 %v758
    %769 = vmatprep.subr.mxu0 0.0
    %770 = vmatpush1.msra.mxu0 %v759
    %771 = vmatprep.subr.mxu0 0.0
    %772 = vmatpush1.msra.mxu0 %v760
    %773 = vmatprep.subr.mxu0 0.0
    %774 = vmatpush1.msra.mxu0 0.0
    %775 = vmatprep.subr.mxu0 0.0
    %776 = vmatpush1.msra.mxu0 0.0
    %777 = vmatprep.subr.mxu0 0.0
    %778 = vmatpush1.msra.mxu0 0.0
    %779 = vmatprep.subr.mxu0 0.0
    %780 = vmatpush1.msra.mxu0 0.0
    %781 = vmatprep.subr.mxu0 0.0
    %782 = vmatpush1.msra.mxu0 0.0
    %783 = vmatprep.subr.mxu0 0.0
    %784 = vmatpush1.msra.mxu0 0.0
    %785 = vmatprep.subr.mxu0 0.0
    %786 = vmatpush1.msra.mxu0 0.0
    %787 = vmatprep.subr.mxu0 0.0
    %788 = vmatpush1.msra.mxu0 0.0
    %789 = vmatprep.subr.mxu0 0.0
    %790 = vmatpush1.msra.mxu0 0.0
    %791 = vmatprep.subr.mxu0 0.0
    %792 = vmatpush1.msra.mxu0 0.0
    %793 = vmatprep.subr.mxu0 0.0
    %794 = vmatpush1.msra.mxu0 0.0
    %795 = vmatprep.subr.mxu0 0.0
    %796 = vmatpush1.msra.mxu0 0.0
    %797 = vmatprep.subr.mxu0 0.0
    %798 = vmatpush1.msra.mxu0 0.0
    %799 = vmatprep.subr.mxu0 0.0
    %800 = vmatpush1.msra.mxu0 0.0
    %801 = vmatprep.subr.mxu0 0.0
    %802 = vmatpush1.msra.mxu0 0.0
    %803 = vmatprep.subr.mxu0 0.0
    %804 = vmatpush1.msra.mxu0 0.0
    %805 = vmatprep.subr.mxu0 0.0
    %806 = vmatpush1.msra.mxu0 0.0
    %807 = vmatprep.subr.mxu0 0.0
    %808 = vmatpush1.msra.mxu0 0.0
    %809 = vmatprep.subr.mxu0 0.0
    %810 = vmatpush1.msra.mxu0 0.0
    %811 = vmatprep.subr.mxu0 0.0
    %812 = vmatpush1.msra.mxu0 0.0
    %813 = vmatprep.subr.mxu0 0.0
    %814 = vmatpush1.msra.mxu0 0.0
    %815 = vmatprep.subr.mxu0 0.0
    %816 = vmatpush1.msra.mxu0 0.0
    %817 = vmatprep.subr.mxu0 0.0
    %818 = vmatpush1.msra.mxu0 0.0
    %819 = vmatprep.subr.mxu0 0.0
    %820 = vmatpush1.msra.mxu0 0.0
    %821 = vmatprep.subr.mxu0 0.0
    %822 = vmatpush1.msra.mxu0 0.0
    %823 = vmatprep.subr.mxu0 0.0
    %824 = vmatpush1.msra.mxu0 0.0
    %825 = vmatprep.subr.mxu0 0.0
    %826 = vmatpush1.msra.mxu0 0.0
    %827 = vmatprep.subr.mxu0 0.0
    %828 = vmatpush1.msra.mxu0 0.0
    %829 = vmatprep.mubr.f32.mxu0 0.0
    %830 = vmatmul.mubr.f32.gmra.mrb[0].mxu0 %v763
    %v831 = vpop.f32.mrb[0].mxu0
    %v832 = vadd.f32 0.0, %v831
    %v833 = vpop.f32.mrb[0].mxu0
    %834 = vdwg.mxu0
    %v835 = vmul.f32 %v832, 15.0
    %v837 = vrot.slane %v835, 1
    %v839 = vmax.f32 %v835, %v837
    %v840 = vmax.f32 %v839, 0.0
    %v841 = vsub.f32 %v835, %v840
    %v842 = vmul.f32 %v841, 1.442695
    %v843 = vpow.pop %v842
    %v845 = vrot.slane %v840, 7
    %v847 = vsub.f32 %v835, %v845
    %v848 = vmul.f32 %v847, 1.442695
    %v849 = vpow.pop %v848
    %v850 = vsub.f32 0.0, %v840
    %v851 = vmul.f32 %v850, 1.442695
    %v852 = vpow.pop %v851
    %v853 = vmul.f32 %v852, 0.1
    %v854 = vadd.f32 %v843, %v853
    %v856 = vrot.slane %v849, 1
    %v858 = vadd.f32 %v854, %v856
    %v859 = vrcp.pop %v858
    %v860 = vmul.f32 %v854, %v859
    %vm861 = vcmp.lt.f32.partialorder %v752, %v860
    %v862 = vsel %vm861, 1, 0
    %v863 = vcvt.s32.f32 %v862
    %v864 = vmul.f32 %v863, %v748
    %v865 = vmul.f32 %v550, 0.1
    %v866 = vmul.f32 %v748, 0.9
    %v867 = vadd.f32 %v865, %v866
    %v869 = vsel %vm87, %v864, 0
    %871 = vmatprep.subr.mxu0 0.0
    %872 = vmatpush1.msra.mxu0 %v753
    %873 = vmatprep.subr.mxu0 0.0
    %874 = vmatpush1.msra.mxu0 %v754
    %875 = vmatprep.subr.mxu0 0.0
    %876 = vmatpush1.msra.mxu0 %v755
    %877 = vmatprep.subr.mxu0 0.0
    %878 = vmatpush1.msra.mxu0 %v756
    %879 = vmatprep.subr.mxu0 0.0
    %880 = vmatpush1.msra.mxu0 0.0
    %881 = vmatprep.subr.mxu0 0.0
    %882 = vmatpush1.msra.mxu0 0.0
    %883 = vmatprep.subr.mxu0 0.0
    %884 = vmatpush1.msra.mxu0 0.0
    %885 = vmatprep.subr.mxu0 0.0
    %886 = vmatpush1.msra.mxu0 0.0
    %887 = vmatprep.subr.mxu0 0.0
    %888 = vmatpush1.msra.mxu0 0.0
    %889 = vmatprep.subr.mxu0 0.0
    %890 = vmatpush1.msra.mxu0 0.0
    %891 = vmatprep.subr.mxu0 0.0
    %892 = vmatpush1.msra.mxu0 0.0
    %893 = vmatprep.subr.mxu0 0.0
    %894 = vmatpush1.msra.mxu0 0.0
    %895 = vmatprep.subr.mxu0 0.0
    %896 = vmatpush1.msra.mxu0 0.0
    %897 = vmatprep.subr.mxu0 0.0
    %898 = vmatpush1.msra.mxu0 0.0
    %899 = vmatprep.subr.mxu0 0.0
    %900 = vmatpush1.msra.mxu0 0.0
    %901 = vmatprep.subr.mxu0 0.0
    %902 = vmatpush1.msra.mxu0 0.0
    %903 = vmatprep.subr.mxu0 0.0
    %904 = vmatpush1.msra.mxu0 0.0
    %905 = vmatprep.subr.mxu0 0.0
    %906 = vmatpush1.msra.mxu0 0.0
    %907 = vmatprep.subr.mxu0 0.0
    %908 = vmatpush1.msra.mxu0 0.0
    %909 = vmatprep.subr.mxu0 0.0
    %910 = vmatpush1.msra.mxu0 0.0
    %911 = vmatprep.subr.mxu0 0.0
    %912 = vmatpush1.msra.mxu0 0.0
    %913 = vmatprep.subr.mxu0 0.0
    %914 = vmatpush1.msra.mxu0 0.0
    %915 = vmatprep.subr.mxu0 0.0
    %916 = vmatpush1.msra.mxu0 0.0
    %917 = vmatprep.subr.mxu0 0.0
    %918 = vmatpush1.msra.mxu0 0.0
    %919 = vmatprep.subr.mxu0 0.0
    %920 = vmatpush1.msra.mxu0 0.0
    %921 = vmatprep.subr.mxu0 0.0
    %922 = vmatpush1.msra.mxu0 0.0
    %923 = vmatprep.subr.mxu0 0.0
    %924 = vmatpush1.msra.mxu0 0.0
    %925 = vmatprep.subr.mxu0 0.0
    %926 = vmatpush1.msra.mxu0 0.0
    %927 = vmatprep.subr.mxu0 0.0
    %928 = vmatpush1.msra.mxu0 0.0
    %929 = vmatprep.subr.mxu0 0.0
    %930 = vmatpush1.msra.mxu0 0.0
    %931 = vmatprep.subr.mxu0 0.0
    %932 = vmatpush1.msra.mxu0 0.0
    %933 = vmatprep.subr.mxu0 0.0
    %934 = vmatpush1.msra.mxu0 0.0
    %935 = vmatprep.mubr.f32.mxu0 0.0
    %936 = vmatmul.mubr.f32.gmra.mrb[0].mxu0 %v869
    %v937 = vpop.f32.mrb[0].mxu0
    %v938 = vadd.f32 0.0, %v937
    %v939 = vpop.f32.mrb[0].mxu0
    %940 = vdwg.mxu0
    %s941 = sld [smem:[#allocation2 + $0x2]]
    %v942 = vstv %s941
    %vm943 = vcmp.eq.s32.totalorder %v306, %v942
    %v944 = vsel %vm943, 1, 0
    %v945 = vcvt.s32.f32 %v944
    %v946 = vsub.f32 %v750, %v938
    %v947 = vmul.f32 %v945, %v946
    %v948 = vsel %vm313, %v947, 0.0
    %949 = vadd.xlane.f32.xlu0 %v948
    %v950 = vpop.xlane.xlu0 %949
    %s951 = scalar_lea.vmem [#allocation12], %s941
    %v952 = vld [vmem:[%s951] sm:$0x1]
    %v953 = vmul.f32 %v950, 0.075
    %v954 = vmul.f32 %v953, %v864
    %v955 = vadd.f32 %v952, %v954
    %956 = vst.msk [vmem:[%s951] sm:$0x1] %vm313, %v955
    %s957 = scalar_lea.vmem [#allocation13], %s941
    %v958 = vld [vmem:[%s957] sm:$0x1]
    %v959 = vmul.f32 %v953, %v867
    %v960 = vadd.f32 %v958, %v959
    %961 = vst.msk [vmem:[%s957] sm:$0x1] %vm313, %v960
    %v962 = vmul.f32 %v947, %v864
    %v963 = vsel %vm313, %v962, 0.0
    %964 = vadd.xlane.f32.xlu0 %v963
    %v965 = vpop.xlane.xlu0 %964
    %v966 = vmul.f32 %v965, 0.075
    %v967 = vmul.f32 %v966, %v864
    %v968 = vadd.f32 %v938, %v967
    %v970 = vsel %vm87, %v968, 0
    %972 = vmatprep.subr.mxu0 0.0
    %973 = vmatpush1.msra.mxu0 %v100
    %974 = vmatprep.subr.mxu0 0.0
    %975 = vmatpush1.msra.mxu0 %v101
    %976 = vmatprep.subr.mxu0 0.0
    %977 = vmatpush1.msra.mxu0 %v102
    %978 = vmatprep.subr.mxu0 0.0
    %979 = vmatpush1.msra.mxu0 %v103
    %980 = vmatprep.subr.mxu0 0.0
    %981 = vmatpush1.msra.mxu0 0.0
    %982 = vmatprep.subr.mxu0 0.0
    %983 = vmatpush1.msra.mxu0 0.0
    %984 = vmatprep.subr.mxu0 0.0
    %985 = vmatpush1.msra.mxu0 0.0
    %986 = vmatprep.subr.mxu0 0.0
    %987 = vmatpush1.msra.mxu0 0.0
    %988 = vmatprep.subr.mxu0 0.0
    %989 = vmatpush1.msra.mxu0 0.0
    %990 = vmatprep.subr.mxu0 0.0
    %991 = vmatpush1.msra.mxu0 0.0
    %992 = vmatprep.subr.mxu0 0.0
    %993 = vmatpush1.msra.mxu0 0.0
    %994 = vmatprep.subr.mxu0 0.0
    %995 = vmatpush1.msra.mxu0 0.0
    %996 = vmatprep.subr.mxu0 0.0
    %997 = vmatpush1.msra.mxu0 0.0
    %998 = vmatprep.subr.mxu0 0.0
    %999 = vmatpush1.msra.mxu0 0.0
    %1000 = vmatprep.subr.mxu0 0.0
    %1001 = vmatpush1.msra.mxu0 0.0
    %1002 = vmatprep.subr.mxu0 0.0
    %1003 = vmatpush1.msra.mxu0 0.0
    %1004 = vmatprep.subr.mxu0 0.0
    %1005 = vmatpush1.msra.mxu0 0.0
    %1006 = vmatprep.subr.mxu0 0.0
    %1007 = vmatpush1.msra.mxu0 0.0
    %1008 = vmatprep.subr.mxu0 0.0
    %1009 = vmatpush1.msra.mxu0 0.0
    %1010 = vmatprep.subr.mxu0 0.0
    %1011 = vmatpush1.msra.mxu0 0.0
    %1012 = vmatprep.subr.mxu0 0.0
    %1013 = vmatpush1.msra.mxu0 0.0
    %1014 = vmatprep.subr.mxu0 0.0
    %1015 = vmatpush1.msra.mxu0 0.0
    %1016 = vmatprep.subr.mxu0 0.0
    %1017 = vmatpush1.msra.mxu0 0.0
    %1018 = vmatprep.subr.mxu0 0.0
    %1019 = vmatpush1.msra.mxu0 0.0
    %1020 = vmatprep.subr.mxu0 0.0
    %1021 = vmatpush1.msra.mxu0 0.0
    %1022 = vmatprep.subr.mxu0 0.0
    %1023 = vmatpush1.msra.mxu0 0.0
    %1024 = vmatprep.subr.mxu0 0.0
    %1025 = vmatpush1.msra.mxu0 0.0
    %1026 = vmatprep.subr.mxu0 0.0
    %1027 = vmatpush1.msra.mxu0 0.0
    %1028 = vmatprep.subr.mxu0 0.0
    %1029 = vmatpush1.msra.mxu0 0.0
    %1030 = vmatprep.subr.mxu0 0.0
    %1031 = vmatpush1.msra.mxu0 0.0
    %1032 = vmatprep.subr.mxu0 0.0
    %1033 = vmatpush1.msra.mxu0 0.0
    %1034 = vmatprep.subr.mxu0 0.0
    %1035 = vmatpush1.msra.mxu0 0.0
    %1036 = vmatprep.mubr.f32.mxu0 0.0
    %1037 = vmatmul.mubr.f32.gmra.mrb[0].mxu0 %v970
    %v1038 = vpop.f32.mrb[0].mxu0
    %v1039 = vadd.f32 0.0, %v1038
    %v1040 = vpop.f32.mrb[0].mxu0
    %1041 = vdwg.mxu0
    %v1042 = vmul.f32 %v1039, 10.0
    %v1043 = vsel %vm409, %v1042, -inf
    %1044 = vmax.xlane.f32.xlu0 %v1043
    %v1045 = vpop.xlane.xlu0 %1044
    %v1046 = vsub.f32 %v1042, %v1045
    %v1047 = vmul.f32 %v1046, 1.442695
    %v1048 = vpow.pop %v1047
    %v1049 = vsel %vm409, %v1048, 0.0
    %1050 = vadd.xlane.f32.xlu0 %v1049
    %v1051 = vpop.xlane.xlu0 %1050
    %v1052 = vrcp.pop %v1051
    %v1053 = vmul.f32 %v1048, %v1052
    %v1054 = vlaneseq
    %v1055 = vshrl.u32 %v1054, 7
    %v1056 = vsub.s32 0, %v1055
    %v1057 = vrot.slane %v864, %v1056
    %v1059 = vsel %vm123, %v947, %v1057
    %s1060 = scalar_lea.vmem [#allocation9], 4
    %1061 = vst.msk [vmem:[%s1060] sm:$0x3] %vm427, %v1059
    %s1062 = scalar_lea.vmem [#allocation10], 2
    %1063 = vst.msk [vmem:[%s1062] sm:$0x1] %vm409, %v1053
    %s1064 = scalar_lea.vmem %s1, 3
    %v1065 = vld [vmem:[%s1064] sm:$0x1]
    %s1066 = scalar_lea.vmem %s2, 3
    %v1067 = vld [vmem:[%s1066] sm:$0x1]
    %s1068 = scalar_lea.vmem [#allocation6], 3
    %v1069 = vld [vmem:[%s1068] sm:$0x1]
    %v1070 = vld [vmem:[#allocation12] sm:$0xff]
    %v1071 = vld [vmem:[#allocation12 + $0x8] sm:$0xff]
    %v1072 = vld [vmem:[#allocation12 + $0x10] sm:$0xff]
    %v1073 = vld [vmem:[#allocation12 + $0x18] sm:$0xff]
    %v1074 = vld [vmem:[#allocation13] sm:$0xff]
    %v1075 = vld [vmem:[#allocation13 + $0x8] sm:$0xff]
    %v1076 = vld [vmem:[#allocation13 + $0x10] sm:$0xff]
    %v1077 = vld [vmem:[#allocation13 + $0x18] sm:$0xff]
    %v1078 = vsel %vm123, %v1065, %v1057
    %v1080 = vsel %vm87, %v1078, 0
    %1082 = vmatprep.subr.mxu0 0.0
    %1083 = vmatpush1.msra.mxu0 %v1074
    %1084 = vmatprep.subr.mxu0 0.0
    %1085 = vmatpush1.msra.mxu0 %v1075
    %1086 = vmatprep.subr.mxu0 0.0
    %1087 = vmatpush1.msra.mxu0 %v1076
    %1088 = vmatprep.subr.mxu0 0.0
    %1089 = vmatpush1.msra.mxu0 %v1077
    %1090 = vmatprep.subr.mxu0 0.0
    %1091 = vmatpush1.msra.mxu0 0.0
    %1092 = vmatprep.subr.mxu0 0.0
    %1093 = vmatpush1.msra.mxu0 0.0
    %1094 = vmatprep.subr.mxu0 0.0
    %1095 = vmatpush1.msra.mxu0 0.0
    %1096 = vmatprep.subr.mxu0 0.0
    %1097 = vmatpush1.msra.mxu0 0.0
    %1098 = vmatprep.subr.mxu0 0.0
    %1099 = vmatpush1.msra.mxu0 0.0
    %1100 = vmatprep.subr.mxu0 0.0
    %1101 = vmatpush1.msra.mxu0 0.0
    %1102 = vmatprep.subr.mxu0 0.0
    %1103 = vmatpush1.msra.mxu0 0.0
    %1104 = vmatprep.subr.mxu0 0.0
    %1105 = vmatpush1.msra.mxu0 0.0
    %1106 = vmatprep.subr.mxu0 0.0
    %1107 = vmatpush1.msra.mxu0 0.0
    %1108 = vmatprep.subr.mxu0 0.0
    %1109 = vmatpush1.msra.mxu0 0.0
    %1110 = vmatprep.subr.mxu0 0.0
    %1111 = vmatpush1.msra.mxu0 0.0
    %1112 = vmatprep.subr.mxu0 0.0
    %1113 = vmatpush1.msra.mxu0 0.0
    %1114 = vmatprep.subr.mxu0 0.0
    %1115 = vmatpush1.msra.mxu0 0.0
    %1116 = vmatprep.subr.mxu0 0.0
    %1117 = vmatpush1.msra.mxu0 0.0
    %1118 = vmatprep.subr.mxu0 0.0
    %1119 = vmatpush1.msra.mxu0 0.0
    %1120 = vmatprep.subr.mxu0 0.0
    %1121 = vmatpush1.msra.mxu0 0.0
    %1122 = vmatprep.subr.mxu0 0.0
    %1123 = vmatpush1.msra.mxu0 0.0
    %1124 = vmatprep.subr.mxu0 0.0
    %1125 = vmatpush1.msra.mxu0 0.0
    %1126 = vmatprep.subr.mxu0 0.0
    %1127 = vmatpush1.msra.mxu0 0.0
    %1128 = vmatprep.subr.mxu0 0.0
    %1129 = vmatpush1.msra.mxu0 0.0
    %1130 = vmatprep.subr.mxu0 0.0
    %1131 = vmatpush1.msra.mxu0 0.0
    %1132 = vmatprep.subr.mxu0 0.0
    %1133 = vmatpush1.msra.mxu0 0.0
    %1134 = vmatprep.subr.mxu0 0.0
    %1135 = vmatpush1.msra.mxu0 0.0
    %1136 = vmatprep.subr.mxu0 0.0
    %1137 = vmatpush1.msra.mxu0 0.0
    %1138 = vmatprep.subr.mxu0 0.0
    %1139 = vmatpush1.msra.mxu0 0.0
    %1140 = vmatprep.subr.mxu0 0.0
    %1141 = vmatpush1.msra.mxu0 0.0
    %1142 = vmatprep.subr.mxu0 0.0
    %1143 = vmatpush1.msra.mxu0 0.0
    %1144 = vmatprep.subr.mxu0 0.0
    %1145 = vmatpush1.msra.mxu0 0.0
    %1146 = vmatprep.mubr.f32.mxu0 0.0
    %1147 = vmatmul.mubr.f32.gmra.mrb[0].mxu0 %v1080
    %v1148 = vpop.f32.mrb[0].mxu0
    %v1149 = vadd.f32 0.0, %v1148
    %v1150 = vpop.f32.mrb[0].mxu0
    %1151 = vdwg.mxu0
    %v1152 = vmul.f32 %v1149, 15.0
    %v1154 = vrot.slane %v1152, 1
    %v1156 = vmax.f32 %v1152, %v1154
    %v1157 = vmax.f32 %v1156, 0.0
    %v1158 = vsub.f32 %v1152, %v1157
    %v1159 = vmul.f32 %v1158, 1.442695
    %v1160 = vpow.pop %v1159
    %v1162 = vrot.slane %v1157, 7
    %v1164 = vsub.f32 %v1152, %v1162
    %v1165 = vmul.f32 %v1164, 1.442695
    %v1166 = vpow.pop %v1165
    %v1167 = vsub.f32 0.0, %v1157
    %v1168 = vmul.f32 %v1167, 1.442695
    %v1169 = vpow.pop %v1168
    %v1170 = vmul.f32 %v1169, 0.1
    %v1171 = vadd.f32 %v1160, %v1170
    %v1173 = vrot.slane %v1166, 1
    %v1175 = vadd.f32 %v1171, %v1173
    %v1176 = vrcp.pop %v1175
    %v1177 = vmul.f32 %v1171, %v1176
    %vm1178 = vcmp.lt.f32.partialorder %v1069, %v1177
    %v1179 = vsel %vm1178, 1, 0
    %v1180 = vcvt.s32.f32 %v1179
    %v1181 = vmul.f32 %v1180, %v1065
    %v1182 = vmul.f32 %v867, 0.1
    %v1183 = vmul.f32 %v1065, 0.9
    %v1184 = vadd.f32 %v1182, %v1183
    %v1186 = vsel %vm87, %v1181, 0
    %1188 = vmatprep.subr.mxu0 0.0
    %1189 = vmatpush1.msra.mxu0 %v1070
    %1190 = vmatprep.subr.mxu0 0.0
    %1191 = vmatpush1.msra.mxu0 %v1071
    %1192 = vmatprep.subr.mxu0 0.0
    %1193 = vmatpush1.msra.mxu0 %v1072
    %1194 = vmatprep.subr.mxu0 0.0
    %1195 = vmatpush1.msra.mxu0 %v1073
    %1196 = vmatprep.subr.mxu0 0.0
    %1197 = vmatpush1.msra.mxu0 0.0
    %1198 = vmatprep.subr.mxu0 0.0
    %1199 = vmatpush1.msra.mxu0 0.0
    %1200 = vmatprep.subr.mxu0 0.0
    %1201 = vmatpush1.msra.mxu0 0.0
    %1202 = vmatprep.subr.mxu0 0.0
    %1203 = vmatpush1.msra.mxu0 0.0
    %1204 = vmatprep.subr.mxu0 0.0
    %1205 = vmatpush1.msra.mxu0 0.0
    %1206 = vmatprep.subr.mxu0 0.0
    %1207 = vmatpush1.msra.mxu0 0.0
    %1208 = vmatprep.subr.mxu0 0.0
    %1209 = vmatpush1.msra.mxu0 0.0
    %1210 = vmatprep.subr.mxu0 0.0
    %1211 = vmatpush1.msra.mxu0 0.0
    %1212 = vmatprep.subr.mxu0 0.0
    %1213 = vmatpush1.msra.mxu0 0.0
    %1214 = vmatprep.subr.mxu0 0.0
    %1215 = vmatpush1.msra.mxu0 0.0
    %1216 = vmatprep.subr.mxu0 0.0
    %1217 = vmatpush1.msra.mxu0 0.0
    %1218 = vmatprep.subr.mxu0 0.0
    %1219 = vmatpush1.msra.mxu0 0.0
    %1220 = vmatprep.subr.mxu0 0.0
    %1221 = vmatpush1.msra.mxu0 0.0
    %1222 = vmatprep.subr.mxu0 0.0
    %1223 = vmatpush1.msra.mxu0 0.0
    %1224 = vmatprep.subr.mxu0 0.0
    %1225 = vmatpush1.msra.mxu0 0.0
    %1226 = vmatprep.subr.mxu0 0.0
    %1227 = vmatpush1.msra.mxu0 0.0
    %1228 = vmatprep.subr.mxu0 0.0
    %1229 = vmatpush1.msra.mxu0 0.0
    %1230 = vmatprep.subr.mxu0 0.0
    %1231 = vmatpush1.msra.mxu0 0.0
    %1232 = vmatprep.subr.mxu0 0.0
    %1233 = vmatpush1.msra.mxu0 0.0
    %1234 = vmatprep.subr.mxu0 0.0
    %1235 = vmatpush1.msra.mxu0 0.0
    %1236 = vmatprep.subr.mxu0 0.0
    %1237 = vmatpush1.msra.mxu0 0.0
    %1238 = vmatprep.subr.mxu0 0.0
    %1239 = vmatpush1.msra.mxu0 0.0
    %1240 = vmatprep.subr.mxu0 0.0
    %1241 = vmatpush1.msra.mxu0 0.0
    %1242 = vmatprep.subr.mxu0 0.0
    %1243 = vmatpush1.msra.mxu0 0.0
    %1244 = vmatprep.subr.mxu0 0.0
    %1245 = vmatpush1.msra.mxu0 0.0
    %1246 = vmatprep.subr.mxu0 0.0
    %1247 = vmatpush1.msra.mxu0 0.0
    %1248 = vmatprep.subr.mxu0 0.0
    %1249 = vmatpush1.msra.mxu0 0.0
    %1250 = vmatprep.subr.mxu0 0.0
    %1251 = vmatpush1.msra.mxu0 0.0
    %1252 = vmatprep.mubr.f32.mxu0 0.0
    %1253 = vmatmul.mubr.f32.gmra.mrb[0].mxu0 %v1186
    %v1254 = vpop.f32.mrb[0].mxu0
    %v1255 = vadd.f32 0.0, %v1254
    %v1256 = vpop.f32.mrb[0].mxu0
    %1257 = vdwg.mxu0
    %s1258 = sld [smem:[#allocation2 + $0x3]]
    %v1259 = vstv %s1258
    %vm1260 = vcmp.eq.s32.totalorder %v306, %v1259
    %v1261 = vsel %vm1260, 1, 0
    %v1262 = vcvt.s32.f32 %v1261
    %v1263 = vsub.f32 %v1067, %v1255
    %v1264 = vmul.f32 %v1262, %v1263
    %v1265 = vsel %vm313, %v1264, 0.0
    %1266 = vadd.xlane.f32.xlu0 %v1265
    %v1267 = vpop.xlane.xlu0 %1266
    %s1268 = scalar_lea.vmem [#allocation12], %s1258
    %v1269 = vld [vmem:[%s1268] sm:$0x1]
    %v1270 = vmul.f32 %v1267, 0.075
    %v1271 = vmul.f32 %v1270, %v1181
    %v1272 = vadd.f32 %v1269, %v1271
    %1273 = vst.msk [vmem:[%s1268] sm:$0x1] %vm313, %v1272
    %s1274 = scalar_lea.vmem [#allocation13], %s1258
    %v1275 = vld [vmem:[%s1274] sm:$0x1]
    %v1276 = vmul.f32 %v1270, %v1184
    %v1277 = vadd.f32 %v1275, %v1276
    %1278 = vst.msk [vmem:[%s1274] sm:$0x1] %vm313, %v1277
    %v1279 = vmul.f32 %v1264, %v1181
    %v1280 = vsel %vm313, %v1279, 0.0
    %1281 = vadd.xlane.f32.xlu0 %v1280
    %v1282 = vpop.xlane.xlu0 %1281
    %v1283 = vmul.f32 %v1282, 0.075
    %v1284 = vmul.f32 %v1283, %v1181
    %v1285 = vadd.f32 %v1255, %v1284
    %v1287 = vsel %vm87, %v1285, 0
    %1289 = vmatprep.subr.mxu0 0.0
    %1290 = vmatpush1.msra.mxu0 %v100
    %1291 = vmatprep.subr.mxu0 0.0
    %1292 = vmatpush1.msra.mxu0 %v101
    %1293 = vmatprep.subr.mxu0 0.0
    %1294 = vmatpush1.msra.mxu0 %v102
    %1295 = vmatprep.subr.mxu0 0.0
    %1296 = vmatpush1.msra.mxu0 %v103
    %1297 = vmatprep.subr.mxu0 0.0
    %1298 = vmatpush1.msra.mxu0 0.0
    %1299 = vmatprep.subr.mxu0 0.0
    %1300 = vmatpush1.msra.mxu0 0.0
    %1301 = vmatprep.subr.mxu0 0.0
    %1302 = vmatpush1.msra.mxu0 0.0
    %1303 = vmatprep.subr.mxu0 0.0
    %1304 = vmatpush1.msra.mxu0 0.0
    %1305 = vmatprep.subr.mxu0 0.0
    %1306 = vmatpush1.msra.mxu0 0.0
    %1307 = vmatprep.subr.mxu0 0.0
    %1308 = vmatpush1.msra.mxu0 0.0
    %1309 = vmatprep.subr.mxu0 0.0
    %1310 = vmatpush1.msra.mxu0 0.0
    %1311 = vmatprep.subr.mxu0 0.0
    %1312 = vmatpush1.msra.mxu0 0.0
    %1313 = vmatprep.subr.mxu0 0.0
    %1314 = vmatpush1.msra.mxu0 0.0
    %1315 = vmatprep.subr.mxu0 0.0
    %1316 = vmatpush1.msra.mxu0 0.0
    %1317 = vmatprep.subr.mxu0 0.0
    %1318 = vmatpush1.msra.mxu0 0.0
    %1319 = vmatprep.subr.mxu0 0.0
    %1320 = vmatpush1.msra.mxu0 0.0
    %1321 = vmatprep.subr.mxu0 0.0
    %1322 = vmatpush1.msra.mxu0 0.0
    %1323 = vmatprep.subr.mxu0 0.0
    %1324 = vmatpush1.msra.mxu0 0.0
    %1325 = vmatprep.subr.mxu0 0.0
    %1326 = vmatpush1.msra.mxu0 0.0
    %1327 = vmatprep.subr.mxu0 0.0
    %1328 = vmatpush1.msra.mxu0 0.0
    %1329 = vmatprep.subr.mxu0 0.0
    %1330 = vmatpush1.msra.mxu0 0.0
    %1331 = vmatprep.subr.mxu0 0.0
    %1332 = vmatpush1.msra.mxu0 0.0
    %1333 = vmatprep.subr.mxu0 0.0
    %1334 = vmatpush1.msra.mxu0 0.0
    %1335 = vmatprep.subr.mxu0 0.0
    %1336 = vmatpush1.msra.mxu0 0.0
    %1337 = vmatprep.subr.mxu0 0.0
    %1338 = vmatpush1.msra.mxu0 0.0
    %1339 = vmatprep.subr.mxu0 0.0
    %1340 = vmatpush1.msra.mxu0 0.0
    %1341 = vmatprep.subr.mxu0 0.0
    %1342 = vmatpush1.msra.mxu0 0.0
    %1343 = vmatprep.subr.mxu0 0.0
    %1344 = vmatpush1.msra.mxu0 0.0
    %1345 = vmatprep.subr.mxu0 0.0
    %1346 = vmatpush1.msra.mxu0 0.0
    %1347 = vmatprep.subr.mxu0 0.0
    %1348 = vmatpush1.msra.mxu0 0.0
    %1349 = vmatprep.subr.mxu0 0.0
    %1350 = vmatpush1.msra.mxu0 0.0
    %1351 = vmatprep.subr.mxu0 0.0
    %1352 = vmatpush1.msra.mxu0 0.0
    %1353 = vmatprep.mubr.f32.mxu0 0.0
    %1354 = vmatmul.mubr.f32.gmra.mrb[0].mxu0 %v1287
    %v1355 = vpop.f32.mrb[0].mxu0
    %v1356 = vadd.f32 0.0, %v1355
    %v1357 = vpop.f32.mrb[0].mxu0
    %1358 = vdwg.mxu0
    %v1359 = vmul.f32 %v1356, 10.0
    %v1360 = vsel %vm409, %v1359, -inf
    %1361 = vmax.xlane.f32.xlu0 %v1360
    %v1362 = vpop.xlane.xlu0 %1361
    %v1363 = vsub.f32 %v1359, %v1362
    %v1364 = vmul.f32 %v1363, 1.442695
    %v1365 = vpow.pop %v1364
    %v1366 = vsel %vm409, %v1365, 0.0
    %1367 = vadd.xlane.f32.xlu0 %v1366
    %v1368 = vpop.xlane.xlu0 %1367
    %v1369 = vrcp.pop %v1368
    %v1370 = vmul.f32 %v1365, %v1369
    %v1371 = vlaneseq
    %v1372 = vshrl.u32 %v1371, 7
    %v1373 = vsub.s32 0, %v1372
    %v1374 = vrot.slane %v1181, %v1373
    %v1376 = vsel %vm123, %v1264, %v1374
    %s1377 = scalar_lea.vmem [#allocation9], 6
    %1378 = vst.msk [vmem:[%s1377] sm:$0x3] %vm427, %v1376
    %s1379 = scalar_lea.vmem [#allocation10], 3
    %1380 = vst.msk [vmem:[%s1379] sm:$0x1] %vm409, %v1370
    %s1381 = scalar_lea.vmem %s1, 4
    %v1382 = vld [vmem:[%s1381] sm:$0x1]
    %s1383 = scalar_lea.vmem %s2, 4
    %v1384 = vld [vmem:[%s1383] sm:$0x1]
    %s1385 = scalar_lea.vmem [#allocation6], 4
    %v1386 = vld [vmem:[%s1385] sm:$0x1]
    %v1387 = vld [vmem:[#allocation12] sm:$0xff]
    %v1388 = vld [vmem:[#allocation12 + $0x8] sm:$0xff]
    %v1389 = vld [vmem:[#allocation12 + $0x10] sm:$0xff]
    %v1390 = vld [vmem:[#allocation12 + $0x18] sm:$0xff]
    %v1391 = vld [vmem:[#allocation13] sm:$0xff]
    %v1392 = vld [vmem:[#allocation13 + $0x8] sm:$0xff]
    %v1393 = vld [vmem:[#allocation13 + $0x10] sm:$0xff]
    %v1394 = vld [vmem:[#allocation13 + $0x18] sm:$0xff]
    %v1395 = vsel %vm123, %v1382, %v1374
    %v1397 = vsel %vm87, %v1395, 0
    %1399 = vmatprep.subr.mxu0 0.0
    %1400 = vmatpush1.msra.mxu0 %v1391
    %1401 = vmatprep.subr.mxu0 0.0
    %1402 = vmatpush1.msra.mxu0 %v1392
    %1403 = vmatprep.subr.mxu0 0.0
    %1404 = vmatpush1.msra.mxu0 %v1393
    %1405 = vmatprep.subr.mxu0 0.0
    %1406 = vmatpush1.msra.mxu0 %v1394
    %1407 = vmatprep.subr.mxu0 0.0
    %1408 = vmatpush1.msra.mxu0 0.0
    %1409 = vmatprep.subr.mxu0 0.0
    %1410 = vmatpush1.msra.mxu0 0.0
    %1411 = vmatprep.subr.mxu0 0.0
    %1412 = vmatpush1.msra.mxu0 0.0
    %1413 = vmatprep.subr.mxu0 0.0
    %1414 = vmatpush1.msra.mxu0 0.0
    %1415 = vmatprep.subr.mxu0 0.0
    %1416 = vmatpush1.msra.mxu0 0.0
    %1417 = vmatprep.subr.mxu0 0.0
    %1418 = vmatpush1.msra.mxu0 0.0
    %1419 = vmatprep.subr.mxu0 0.0
    %1420 = vmatpush1.msra.mxu0 0.0
    %1421 = vmatprep.subr.mxu0 0.0
    %1422 = vmatpush1.msra.mxu0 0.0
    %1423 = vmatprep.subr.mxu0 0.0
    %1424 = vmatpush1.msra.mxu0 0.0
    %1425 = vmatprep.subr.mxu0 0.0
    %1426 = vmatpush1.msra.mxu0 0.0
    %1427 = vmatprep.subr.mxu0 0.0
    %1428 = vmatpush1.msra.mxu0 0.0
    %1429 = vmatprep.subr.mxu0 0.0
    %1430 = vmatpush1.msra.mxu0 0.0
    %1431 = vmatprep.subr.mxu0 0.0
    %1432 = vmatpush1.msra.mxu0 0.0
    %1433 = vmatprep.subr.mxu0 0.0
    %1434 = vmatpush1.msra.mxu0 0.0
    %1435 = vmatprep.subr.mxu0 0.0
    %1436 = vmatpush1.msra.mxu0 0.0
    %1437 = vmatprep.subr.mxu0 0.0
    %1438 = vmatpush1.msra.mxu0 0.0
    %1439 = vmatprep.subr.mxu0 0.0
    %1440 = vmatpush1.msra.mxu0 0.0
    %1441 = vmatprep.subr.mxu0 0.0
    %1442 = vmatpush1.msra.mxu0 0.0
    %1443 = vmatprep.subr.mxu0 0.0
    %1444 = vmatpush1.msra.mxu0 0.0
    %1445 = vmatprep.subr.mxu0 0.0
    %1446 = vmatpush1.msra.mxu0 0.0
    %1447 = vmatprep.subr.mxu0 0.0
    %1448 = vmatpush1.msra.mxu0 0.0
    %1449 = vmatprep.subr.mxu0 0.0
    %1450 = vmatpush1.msra.mxu0 0.0
    %1451 = vmatprep.subr.mxu0 0.0
    %1452 = vmatpush1.msra.mxu0 0.0
    %1453 = vmatprep.subr.mxu0 0.0
    %1454 = vmatpush1.msra.mxu0 0.0
    %1455 = vmatprep.subr.mxu0 0.0
    %1456 = vmatpush1.msra.mxu0 0.0
    %1457 = vmatprep.subr.mxu0 0.0
    %1458 = vmatpush1.msra.mxu0 0.0
    %1459 = vmatprep.subr.mxu0 0.0
    %1460 = vmatpush1.msra.mxu0 0.0
    %1461 = vmatprep.subr.mxu0 0.0
    %1462 = vmatpush1.msra.mxu0 0.0
    %1463 = vmatprep.mubr.f32.mxu0 0.0
    %1464 = vmatmul.mubr.f32.gmra.mrb[0].mxu0 %v1397
    %v1465 = vpop.f32.mrb[0].mxu0
    %v1466 = vadd.f32 0.0, %v1465
    %v1467 = vpop.f32.mrb[0].mxu0
    %1468 = vdwg.mxu0
    %v1469 = vmul.f32 %v1466, 15.0
    %v1471 = vrot.slane %v1469, 1
    %v1473 = vmax.f32 %v1469, %v1471
    %v1474 = vmax.f32 %v1473, 0.0
    %v1475 = vsub.f32 %v1469, %v1474
    %v1476 = vmul.f32 %v1475, 1.442695
    %v1477 = vpow.pop %v1476
    %v1479 = vrot.slane %v1474, 7
    %v1481 = vsub.f32 %v1469, %v1479
    %v1482 = vmul.f32 %v1481, 1.442695
    %v1483 = vpow.pop %v1482
    %v1484 = vsub.f32 0.0, %v1474
    %v1485 = vmul.f32 %v1484, 1.442695
    %v1486 = vpow.pop %v1485
    %v1487 = vmul.f32 %v1486, 0.1
    %v1488 = vadd.f32 %v1477, %v1487
    %v1490 = vrot.slane %v1483, 1
    %v1492 = vadd.f32 %v1488, %v1490
    %v1493 = vrcp.pop %v1492
    %v1494 = vmul.f32 %v1488, %v1493
    %vm1495 = vcmp.lt.f32.partialorder %v1386, %v1494
    %v1496 = vsel %vm1495, 1, 0
    %v1497 = vcvt.s32.f32 %v1496
    %v1498 = vmul.f32 %v1497, %v1382
    %v1499 = vmul.f32 %v1184, 0.1
    %v1500 = vmul.f32 %v1382, 0.9
    %v1501 = vadd.f32 %v1499, %v1500
    %v1503 = vsel %vm87, %v1498, 0
    %1505 = vmatprep.subr.mxu0 0.0
    %1506 = vmatpush1.msra.mxu0 %v1387
    %1507 = vmatprep.subr.mxu0 0.0
    %1508 = vmatpush1.msra.mxu0 %v1388
    %1509 = vmatprep.subr.mxu0 0.0
    %1510 = vmatpush1.msra.mxu0 %v1389
    %1511 = vmatprep.subr.mxu0 0.0
    %1512 = vmatpush1.msra.mxu0 %v1390
    %1513 = vmatprep.subr.mxu0 0.0
    %1514 = vmatpush1.msra.mxu0 0.0
    %1515 = vmatprep.subr.mxu0 0.0
    %1516 = vmatpush1.msra.mxu0 0.0
    %1517 = vmatprep.subr.mxu0 0.0
    %1518 = vmatpush1.msra.mxu0 0.0
    %1519 = vmatprep.subr.mxu0 0.0
    %1520 = vmatpush1.msra.mxu0 0.0
    %1521 = vmatprep.subr.mxu0 0.0
    %1522 = vmatpush1.msra.mxu0 0.0
    %1523 = vmatprep.subr.mxu0 0.0
    %1524 = vmatpush1.msra.mxu0 0.0
    %1525 = vmatprep.subr.mxu0 0.0
    %1526 = vmatpush1.msra.mxu0 0.0
    %1527 = vmatprep.subr.mxu0 0.0
    %1528 = vmatpush1.msra.mxu0 0.0
    %1529 = vmatprep.subr.mxu0 0.0
    %1530 = vmatpush1.msra.mxu0 0.0
    %1531 = vmatprep.subr.mxu0 0.0
    %1532 = vmatpush1.msra.mxu0 0.0
    %1533 = vmatprep.subr.mxu0 0.0
    %1534 = vmatpush1.msra.mxu0 0.0
    %1535 = vmatprep.subr.mxu0 0.0
    %1536 = vmatpush1.msra.mxu0 0.0
    %1537 = vmatprep.subr.mxu0 0.0
    %1538 = vmatpush1.msra.mxu0 0.0
    %1539 = vmatprep.subr.mxu0 0.0
    %1540 = vmatpush1.msra.mxu0 0.0
    %1541 = vmatprep.subr.mxu0 0.0
    %1542 = vmatpush1.msra.mxu0 0.0
    %1543 = vmatprep.subr.mxu0 0.0
    %1544 = vmatpush1.msra.mxu0 0.0
    %1545 = vmatprep.subr.mxu0 0.0
    %1546 = vmatpush1.msra.mxu0 0.0
    %1547 = vmatprep.subr.mxu0 0.0
    %1548 = vmatpush1.msra.mxu0 0.0
    %1549 = vmatprep.subr.mxu0 0.0
    %1550 = vmatpush1.msra.mxu0 0.0
    %1551 = vmatprep.subr.mxu0 0.0
    %1552 = vmatpush1.msra.mxu0 0.0
    %1553 = vmatprep.subr.mxu0 0.0
    %1554 = vmatpush1.msra.mxu0 0.0
    %1555 = vmatprep.subr.mxu0 0.0
    %1556 = vmatpush1.msra.mxu0 0.0
    %1557 = vmatprep.subr.mxu0 0.0
    %1558 = vmatpush1.msra.mxu0 0.0
    %1559 = vmatprep.subr.mxu0 0.0
    %1560 = vmatpush1.msra.mxu0 0.0
    %1561 = vmatprep.subr.mxu0 0.0
    %1562 = vmatpush1.msra.mxu0 0.0
    %1563 = vmatprep.subr.mxu0 0.0
    %1564 = vmatpush1.msra.mxu0 0.0
    %1565 = vmatprep.subr.mxu0 0.0
    %1566 = vmatpush1.msra.mxu0 0.0
    %1567 = vmatprep.subr.mxu0 0.0
    %1568 = vmatpush1.msra.mxu0 0.0
    %1569 = vmatprep.mubr.f32.mxu0 0.0
    %1570 = vmatmul.mubr.f32.gmra.mrb[0].mxu0 %v1503
    %v1571 = vpop.f32.mrb[0].mxu0
    %v1572 = vadd.f32 0.0, %v1571
    %v1573 = vpop.f32.mrb[0].mxu0
    %1574 = vdwg.mxu0
    %s1575 = sld [smem:[#allocation2 + $0x4]]
    %v1576 = vstv %s1575
    %vm1577 = vcmp.eq.s32.totalorder %v306, %v1576
    %v1578 = vsel %vm1577, 1, 0
    %v1579 = vcvt.s32.f32 %v1578
    %v1580 = vsub.f32 %v1384, %v1572
    %v1581 = vmul.f32 %v1579, %v1580
    %v1582 = vsel %vm313, %v1581, 0.0
    %1583 = vadd.xlane.f32.xlu0 %v1582
    %v1584 = vpop.xlane.xlu0 %1583
    %s1585 = scalar_lea.vmem [#allocation12], %s1575
    %v1586 = vld [vmem:[%s1585] sm:$0x1]
    %v1587 = vmul.f32 %v1584, 0.075
    %v1588 = vmul.f32 %v1587, %v1498
    %v1589 = vadd.f32 %v1586, %v1588
    %1590 = vst.msk [vmem:[%s1585] sm:$0x1] %vm313, %v1589
    %s1591 = scalar_lea.vmem [#allocation13], %s1575
    %v1592 = vld [vmem:[%s1591] sm:$0x1]
    %v1593 = vmul.f32 %v1587, %v1501
    %v1594 = vadd.f32 %v1592, %v1593
    %1595 = vst.msk [vmem:[%s1591] sm:$0x1] %vm313, %v1594
    %v1596 = vmul.f32 %v1581, %v1498
    %v1597 = vsel %vm313, %v1596, 0.0
    %1598 = vadd.xlane.f32.xlu0 %v1597
    %v1599 = vpop.xlane.xlu0 %1598
    %v1600 = vmul.f32 %v1599, 0.075
    %v1601 = vmul.f32 %v1600, %v1498
    %v1602 = vadd.f32 %v1572, %v1601
    %v1604 = vsel %vm87, %v1602, 0
    %1606 = vmatprep.subr.mxu0 0.0
    %1607 = vmatpush1.msra.mxu0 %v100
    %1608 = vmatprep.subr.mxu0 0.0
    %1609 = vmatpush1.msra.mxu0 %v101
    %1610 = vmatprep.subr.mxu0 0.0
    %1611 = vmatpush1.msra.mxu0 %v102
    %1612 = vmatprep.subr.mxu0 0.0
    %1613 = vmatpush1.msra.mxu0 %v103
    %1614 = vmatprep.subr.mxu0 0.0
    %1615 = vmatpush1.msra.mxu0 0.0
    %1616 = vmatprep.subr.mxu0 0.0
    %1617 = vmatpush1.msra.mxu0 0.0
    %1618 = vmatprep.subr.mxu0 0.0
    %1619 = vmatpush1.msra.mxu0 0.0
    %1620 = vmatprep.subr.mxu0 0.0
    %1621 = vmatpush1.msra.mxu0 0.0
    %1622 = vmatprep.subr.mxu0 0.0
    %1623 = vmatpush1.msra.mxu0 0.0
    %1624 = vmatprep.subr.mxu0 0.0
    %1625 = vmatpush1.msra.mxu0 0.0
    %1626 = vmatprep.subr.mxu0 0.0
    %1627 = vmatpush1.msra.mxu0 0.0
    %1628 = vmatprep.subr.mxu0 0.0
    %1629 = vmatpush1.msra.mxu0 0.0
    %1630 = vmatprep.subr.mxu0 0.0
    %1631 = vmatpush1.msra.mxu0 0.0
    %1632 = vmatprep.subr.mxu0 0.0
    %1633 = vmatpush1.msra.mxu0 0.0
    %1634 = vmatprep.subr.mxu0 0.0
    %1635 = vmatpush1.msra.mxu0 0.0
    %1636 = vmatprep.subr.mxu0 0.0
    %1637 = vmatpush1.msra.mxu0 0.0
    %1638 = vmatprep.subr.mxu0 0.0
    %1639 = vmatpush1.msra.mxu0 0.0
    %1640 = vmatprep.subr.mxu0 0.0
    %1641 = vmatpush1.msra.mxu0 0.0
    %1642 = vmatprep.subr.mxu0 0.0
    %1643 = vmatpush1.msra.mxu0 0.0
    %1644 = vmatprep.subr.mxu0 0.0
    %1645 = vmatpush1.msra.mxu0 0.0
    %1646 = vmatprep.subr.mxu0 0.0
    %1647 = vmatpush1.msra.mxu0 0.0
    %1648 = vmatprep.subr.mxu0 0.0
    %1649 = vmatpush1.msra.mxu0 0.0
    %1650 = vmatprep.subr.mxu0 0.0
    %1651 = vmatpush1.msra.mxu0 0.0
    %1652 = vmatprep.subr.mxu0 0.0
    %1653 = vmatpush1.msra.mxu0 0.0
    %1654 = vmatprep.subr.mxu0 0.0
    %1655 = vmatpush1.msra.mxu0 0.0
    %1656 = vmatprep.subr.mxu0 0.0
    %1657 = vmatpush1.msra.mxu0 0.0
    %1658 = vmatprep.subr.mxu0 0.0
    %1659 = vmatpush1.msra.mxu0 0.0
    %1660 = vmatprep.subr.mxu0 0.0
    %1661 = vmatpush1.msra.mxu0 0.0
    %1662 = vmatprep.subr.mxu0 0.0
    %1663 = vmatpush1.msra.mxu0 0.0
    %1664 = vmatprep.subr.mxu0 0.0
    %1665 = vmatpush1.msra.mxu0 0.0
    %1666 = vmatprep.subr.mxu0 0.0
    %1667 = vmatpush1.msra.mxu0 0.0
    %1668 = vmatprep.subr.mxu0 0.0
    %1669 = vmatpush1.msra.mxu0 0.0
    %1670 = vmatprep.mubr.f32.mxu0 0.0
    %1671 = vmatmul.mubr.f32.gmra.mrb[0].mxu0 %v1604
    %v1672 = vpop.f32.mrb[0].mxu0
    %v1673 = vadd.f32 0.0, %v1672
    %v1674 = vpop.f32.mrb[0].mxu0
    %1675 = vdwg.mxu0
    %v1676 = vmul.f32 %v1673, 10.0
    %v1677 = vsel %vm409, %v1676, -inf
    %1678 = vmax.xlane.f32.xlu0 %v1677
    %v1679 = vpop.xlane.xlu0 %1678
    %v1680 = vsub.f32 %v1676, %v1679
    %v1681 = vmul.f32 %v1680, 1.442695
    %v1682 = vpow.pop %v1681
    %v1683 = vsel %vm409, %v1682, 0.0
    %1684 = vadd.xlane.f32.xlu0 %v1683
    %v1685 = vpop.xlane.xlu0 %1684
    %v1686 = vrcp.pop %v1685
    %v1687 = vmul.f32 %v1682, %v1686
    %v1688 = vlaneseq
    %v1689 = vshrl.u32 %v1688, 7
    %v1690 = vsub.s32 0, %v1689
    %v1691 = vrot.slane %v1498, %v1690
    %v1693 = vsel %vm123, %v1581, %v1691
    %s1694 = scalar_lea.vmem [#allocation9], 8
    %1695 = vst.msk [vmem:[%s1694] sm:$0x3] %vm427, %v1693
    %s1696 = scalar_lea.vmem [#allocation10], 4
    %1697 = vst.msk [vmem:[%s1696] sm:$0x1] %vm409, %v1687
    %s1698 = scalar_lea.vmem %s1, 5
    %v1699 = vld [vmem:[%s1698] sm:$0x1]
    %s1700 = scalar_lea.vmem %s2, 5
    %v1701 = vld [vmem:[%s1700] sm:$0x1]
    %s1702 = scalar_lea.vmem [#allocation6], 5
    %v1703 = vld [vmem:[%s1702] sm:$0x1]
    %v1704 = vld [vmem:[#allocation12] sm:$0xff]
    %v1705 = vld [vmem:[#allocation12 + $0x8] sm:$0xff]
    %v1706 = vld [vmem:[#allocation12 + $0x10] sm:$0xff]
    %v1707 = vld [vmem:[#allocation12 + $0x18] sm:$0xff]
    %v1708 = vld [vmem:[#allocation13] sm:$0xff]
    %v1709 = vld [vmem:[#allocation13 + $0x8] sm:$0xff]
    %v1710 = vld [vmem:[#allocation13 + $0x10] sm:$0xff]
    %v1711 = vld [vmem:[#allocation13 + $0x18] sm:$0xff]
    %v1712 = vsel %vm123, %v1699, %v1691
    %v1714 = vsel %vm87, %v1712, 0
    %1716 = vmatprep.subr.mxu0 0.0
    %1717 = vmatpush1.msra.mxu0 %v1708
    %1718 = vmatprep.subr.mxu0 0.0
    %1719 = vmatpush1.msra.mxu0 %v1709
    %1720 = vmatprep.subr.mxu0 0.0
    %1721 = vmatpush1.msra.mxu0 %v1710
    %1722 = vmatprep.subr.mxu0 0.0
    %1723 = vmatpush1.msra.mxu0 %v1711
    %1724 = vmatprep.subr.mxu0 0.0
    %1725 = vmatpush1.msra.mxu0 0.0
    %1726 = vmatprep.subr.mxu0 0.0
    %1727 = vmatpush1.msra.mxu0 0.0
    %1728 = vmatprep.subr.mxu0 0.0
    %1729 = vmatpush1.msra.mxu0 0.0
    %1730 = vmatprep.subr.mxu0 0.0
    %1731 = vmatpush1.msra.mxu0 0.0
    %1732 = vmatprep.subr.mxu0 0.0
    %1733 = vmatpush1.msra.mxu0 0.0
    %1734 = vmatprep.subr.mxu0 0.0
    %1735 = vmatpush1.msra.mxu0 0.0
    %1736 = vmatprep.subr.mxu0 0.0
    %1737 = vmatpush1.msra.mxu0 0.0
    %1738 = vmatprep.subr.mxu0 0.0
    %1739 = vmatpush1.msra.mxu0 0.0
    %1740 = vmatprep.subr.mxu0 0.0
    %1741 = vmatpush1.msra.mxu0 0.0
    %1742 = vmatprep.subr.mxu0 0.0
    %1743 = vmatpush1.msra.mxu0 0.0
    %1744 = vmatprep.subr.mxu0 0.0
    %1745 = vmatpush1.msra.mxu0 0.0
    %1746 = vmatprep.subr.mxu0 0.0
    %1747 = vmatpush1.msra.mxu0 0.0
    %1748 = vmatprep.subr.mxu0 0.0
    %1749 = vmatpush1.msra.mxu0 0.0
    %1750 = vmatprep.subr.mxu0 0.0
    %1751 = vmatpush1.msra.mxu0 0.0
    %1752 = vmatprep.subr.mxu0 0.0
    %1753 = vmatpush1.msra.mxu0 0.0
    %1754 = vmatprep.subr.mxu0 0.0
    %1755 = vmatpush1.msra.mxu0 0.0
    %1756 = vmatprep.subr.mxu0 0.0
    %1757 = vmatpush1.msra.mxu0 0.0
    %1758 = vmatprep.subr.mxu0 0.0
    %1759 = vmatpush1.msra.mxu0 0.0
    %1760 = vmatprep.subr.mxu0 0.0
    %1761 = vmatpush1.msra.mxu0 0.0
    %1762 = vmatprep.subr.mxu0 0.0
    %1763 = vmatpush1.msra.mxu0 0.0
    %1764 = vmatprep.subr.mxu0 0.0
    %1765 = vmatpush1.msra.mxu0 0.0
    %1766 = vmatprep.subr.mxu0 0.0
    %1767 = vmatpush1.msra.mxu0 0.0
    %1768 = vmatprep.subr.mxu0 0.0
    %1769 = vmatpush1.msra.mxu0 0.0
    %1770 = vmatprep.subr.mxu0 0.0
    %1771 = vmatpush1.msra.mxu0 0.0
    %1772 = vmatprep.subr.mxu0 0.0
    %1773 = vmatpush1.msra.mxu0 0.0
    %1774 = vmatprep.subr.mxu0 0.0
    %1775 = vmatpush1.msra.mxu0 0.0
    %1776 = vmatprep.subr.mxu0 0.0
    %1777 = vmatpush1.msra.mxu0 0.0
    %1778 = vmatprep.subr.mxu0 0.0
    %1779 = vmatpush1.msra.mxu0 0.0
    %1780 = vmatprep.mubr.f32.mxu0 0.0
    %1781 = vmatmul.mubr.f32.gmra.mrb[0].mxu0 %v1714
    %v1782 = vpop.f32.mrb[0].mxu0
    %v1783 = vadd.f32 0.0, %v1782
    %v1784 = vpop.f32.mrb[0].mxu0
    %1785 = vdwg.mxu0
    %v1786 = vmul.f32 %v1783, 15.0
    %v1788 = vrot.slane %v1786, 1
    %v1790 = vmax.f32 %v1786, %v1788
    %v1791 = vmax.f32 %v1790, 0.0
    %v1792 = vsub.f32 %v1786, %v1791
    %v1793 = vmul.f32 %v1792, 1.442695
    %v1794 = vpow.pop %v1793
    %v1796 = vrot.slane %v1791, 7
    %v1798 = vsub.f32 %v1786, %v1796
    %v1799 = vmul.f32 %v1798, 1.442695
    %v1800 = vpow.pop %v1799
    %v1801 = vsub.f32 0.0, %v1791
    %v1802 = vmul.f32 %v1801, 1.442695
    %v1803 = vpow.pop %v1802
    %v1804 = vmul.f32 %v1803, 0.1
    %v1805 = vadd.f32 %v1794, %v1804
    %v1807 = vrot.slane %v1800, 1
    %v1809 = vadd.f32 %v1805, %v1807
    %v1810 = vrcp.pop %v1809
    %v1811 = vmul.f32 %v1805, %v1810
    %vm1812 = vcmp.lt.f32.partialorder %v1703, %v1811
    %v1813 = vsel %vm1812, 1, 0
    %v1814 = vcvt.s32.f32 %v1813
    %v1815 = vmul.f32 %v1814, %v1699
    %v1816 = vmul.f32 %v1501, 0.1
    %v1817 = vmul.f32 %v1699, 0.9
    %v1818 = vadd.f32 %v1816, %v1817
    %v1820 = vsel %vm87, %v1815, 0
    %1822 = vmatprep.subr.mxu0 0.0
    %1823 = vmatpush1.msra.mxu0 %v1704
    %1824 = vmatprep.subr.mxu0 0.0
    %1825 = vmatpush1.msra.mxu0 %v1705
    %1826 = vmatprep.subr.mxu0 0.0
    %1827 = vmatpush1.msra.mxu0 %v1706
    %1828 = vmatprep.subr.mxu0 0.0
    %1829 = vmatpush1.msra.mxu0 %v1707
    %1830 = vmatprep.subr.mxu0 0.0
    %1831 = vmatpush1.msra.mxu0 0.0
    %1832 = vmatprep.subr.mxu0 0.0
    %1833 = vmatpush1.msra.mxu0 0.0
    %1834 = vmatprep.subr.mxu0 0.0
    %1835 = vmatpush1.msra.mxu0 0.0
    %1836 = vmatprep.subr.mxu0 0.0
    %1837 = vmatpush1.msra.mxu0 0.0
    %1838 = vmatprep.subr.mxu0 0.0
    %1839 = vmatpush1.msra.mxu0 0.0
    %1840 = vmatprep.subr.mxu0 0.0
    %1841 = vmatpush1.msra.mxu0 0.0
    %1842 = vmatprep.subr.mxu0 0.0
    %1843 = vmatpush1.msra.mxu0 0.0
    %1844 = vmatprep.subr.mxu0 0.0
    %1845 = vmatpush1.msra.mxu0 0.0
    %1846 = vmatprep.subr.mxu0 0.0
    %1847 = vmatpush1.msra.mxu0 0.0
    %1848 = vmatprep.subr.mxu0 0.0
    %1849 = vmatpush1.msra.mxu0 0.0
    %1850 = vmatprep.subr.mxu0 0.0
    %1851 = vmatpush1.msra.mxu0 0.0
    %1852 = vmatprep.subr.mxu0 0.0
    %1853 = vmatpush1.msra.mxu0 0.0
    %1854 = vmatprep.subr.mxu0 0.0
    %1855 = vmatpush1.msra.mxu0 0.0
    %1856 = vmatprep.subr.mxu0 0.0
    %1857 = vmatpush1.msra.mxu0 0.0
    %1858 = vmatprep.subr.mxu0 0.0
    %1859 = vmatpush1.msra.mxu0 0.0
    %1860 = vmatprep.subr.mxu0 0.0
    %1861 = vmatpush1.msra.mxu0 0.0
    %1862 = vmatprep.subr.mxu0 0.0
    %1863 = vmatpush1.msra.mxu0 0.0
    %1864 = vmatprep.subr.mxu0 0.0
    %1865 = vmatpush1.msra.mxu0 0.0
    %1866 = vmatprep.subr.mxu0 0.0
    %1867 = vmatpush1.msra.mxu0 0.0
    %1868 = vmatprep.subr.mxu0 0.0
    %1869 = vmatpush1.msra.mxu0 0.0
    %1870 = vmatprep.subr.mxu0 0.0
    %1871 = vmatpush1.msra.mxu0 0.0
    %1872 = vmatprep.subr.mxu0 0.0
    %1873 = vmatpush1.msra.mxu0 0.0
    %1874 = vmatprep.subr.mxu0 0.0
    %1875 = vmatpush1.msra.mxu0 0.0
    %1876 = vmatprep.subr.mxu0 0.0
    %1877 = vmatpush1.msra.mxu0 0.0
    %1878 = vmatprep.subr.mxu0 0.0
    %1879 = vmatpush1.msra.mxu0 0.0
    %1880 = vmatprep.subr.mxu0 0.0
    %1881 = vmatpush1.msra.mxu0 0.0
    %1882 = vmatprep.subr.mxu0 0.0
    %1883 = vmatpush1.msra.mxu0 0.0
    %1884 = vmatprep.subr.mxu0 0.0
    %1885 = vmatpush1.msra.mxu0 0.0
    %1886 = vmatprep.mubr.f32.mxu0 0.0
    %1887 = vmatmul.mubr.f32.gmra.mrb[0].mxu0 %v1820
    %v1888 = vpop.f32.mrb[0].mxu0
    %v1889 = vadd.f32 0.0, %v1888
    %v1890 = vpop.f32.mrb[0].mxu0
    %1891 = vdwg.mxu0
    %s1892 = sld [smem:[#allocation2 + $0x5]]
    %v1893 = vstv %s1892
    %vm1894 = vcmp.eq.s32.totalorder %v306, %v1893
    %v1895 = vsel %vm1894, 1, 0
    %v1896 = vcvt.s32.f32 %v1895
    %v1897 = vsub.f32 %v1701, %v1889
    %v1898 = vmul.f32 %v1896, %v1897
    %v1899 = vsel %vm313, %v1898, 0.0
    %1900 = vadd.xlane.f32.xlu0 %v1899
    %v1901 = vpop.xlane.xlu0 %1900
    %s1902 = scalar_lea.vmem [#allocation12], %s1892
    %v1903 = vld [vmem:[%s1902] sm:$0x1]
    %v1904 = vmul.f32 %v1901, 0.075
    %v1905 = vmul.f32 %v1904, %v1815
    %v1906 = vadd.f32 %v1903, %v1905
    %1907 = vst.msk [vmem:[%s1902] sm:$0x1] %vm313, %v1906
    %s1908 = scalar_lea.vmem [#allocation13], %s1892
    %v1909 = vld [vmem:[%s1908] sm:$0x1]
    %v1910 = vmul.f32 %v1904, %v1818
    %v1911 = vadd.f32 %v1909, %v1910
    %1912 = vst.msk [vmem:[%s1908] sm:$0x1] %vm313, %v1911
    %v1913 = vmul.f32 %v1898, %v1815
    %v1914 = vsel %vm313, %v1913, 0.0
    %1915 = vadd.xlane.f32.xlu0 %v1914
    %v1916 = vpop.xlane.xlu0 %1915
    %v1917 = vmul.f32 %v1916, 0.075
    %v1918 = vmul.f32 %v1917, %v1815
    %v1919 = vadd.f32 %v1889, %v1918
    %v1921 = vsel %vm87, %v1919, 0
    %1923 = vmatprep.subr.mxu0 0.0
    %1924 = vmatpush1.msra.mxu0 %v100
    %1925 = vmatprep.subr.mxu0 0.0
    %1926 = vmatpush1.msra.mxu0 %v101
    %1927 = vmatprep.subr.mxu0 0.0
    %1928 = vmatpush1.msra.mxu0 %v102
    %1929 = vmatprep.subr.mxu0 0.0
    %1930 = vmatpush1.msra.mxu0 %v103
    %1931 = vmatprep.subr.mxu0 0.0
    %1932 = vmatpush1.msra.mxu0 0.0
    %1933 = vmatprep.subr.mxu0 0.0
    %1934 = vmatpush1.msra.mxu0 0.0
    %1935 = vmatprep.subr.mxu0 0.0
    %1936 = vmatpush1.msra.mxu0 0.0
    %1937 = vmatprep.subr.mxu0 0.0
    %1938 = vmatpush1.msra.mxu0 0.0
    %1939 = vmatprep.subr.mxu0 0.0
    %1940 = vmatpush1.msra.mxu0 0.0
    %1941 = vmatprep.subr.mxu0 0.0
    %1942 = vmatpush1.msra.mxu0 0.0
    %1943 = vmatprep.subr.mxu0 0.0
    %1944 = vmatpush1.msra.mxu0 0.0
    %1945 = vmatprep.subr.mxu0 0.0
    %1946 = vmatpush1.msra.mxu0 0.0
    %1947 = vmatprep.subr.mxu0 0.0
    %1948 = vmatpush1.msra.mxu0 0.0
    %1949 = vmatprep.subr.mxu0 0.0
    %1950 = vmatpush1.msra.mxu0 0.0
    %1951 = vmatprep.subr.mxu0 0.0
    %1952 = vmatpush1.msra.mxu0 0.0
    %1953 = vmatprep.subr.mxu0 0.0
    %1954 = vmatpush1.msra.mxu0 0.0
    %1955 = vmatprep.subr.mxu0 0.0
    %1956 = vmatpush1.msra.mxu0 0.0
    %1957 = vmatprep.subr.mxu0 0.0
    %1958 = vmatpush1.msra.mxu0 0.0
    %1959 = vmatprep.subr.mxu0 0.0
    %1960 = vmatpush1.msra.mxu0 0.0
    %1961 = vmatprep.subr.mxu0 0.0
    %1962 = vmatpush1.msra.mxu0 0.0
    %1963 = vmatprep.subr.mxu0 0.0
    %1964 = vmatpush1.msra.mxu0 0.0
    %1965 = vmatprep.subr.mxu0 0.0
    %1966 = vmatpush1.msra.mxu0 0.0
    %1967 = vmatprep.subr.mxu0 0.0
    %1968 = vmatpush1.msra.mxu0 0.0
    %1969 = vmatprep.subr.mxu0 0.0
    %1970 = vmatpush1.msra.mxu0 0.0
    %1971 = vmatprep.subr.mxu0 0.0
    %1972 = vmatpush1.msra.mxu0 0.0
    %1973 = vmatprep.subr.mxu0 0.0
    %1974 = vmatpush1.msra.mxu0 0.0
    %1975 = vmatprep.subr.mxu0 0.0
    %1976 = vmatpush1.msra.mxu0 0.0
    %1977 = vmatprep.subr.mxu0 0.0
    %1978 = vmatpush1.msra.mxu0 0.0
    %1979 = vmatprep.subr.mxu0 0.0
    %1980 = vmatpush1.msra.mxu0 0.0
    %1981 = vmatprep.subr.mxu0 0.0
    %1982 = vmatpush1.msra.mxu0 0.0
    %1983 = vmatprep.subr.mxu0 0.0
    %1984 = vmatpush1.msra.mxu0 0.0
    %1985 = vmatprep.subr.mxu0 0.0
    %1986 = vmatpush1.msra.mxu0 0.0
    %1987 = vmatprep.mubr.f32.mxu0 0.0
    %1988 = vmatmul.mubr.f32.gmra.mrb[0].mxu0 %v1921
    %v1989 = vpop.f32.mrb[0].mxu0
    %v1990 = vadd.f32 0.0, %v1989
    %v1991 = vpop.f32.mrb[0].mxu0
    %1992 = vdwg.mxu0
    %v1993 = vmul.f32 %v1990, 10.0
    %v1994 = vsel %vm409, %v1993, -inf
    %1995 = vmax.xlane.f32.xlu0 %v1994
    %v1996 = vpop.xlane.xlu0 %1995
    %v1997 = vsub.f32 %v1993, %v1996
    %v1998 = vmul.f32 %v1997, 1.442695
    %v1999 = vpow.pop %v1998
    %v2000 = vsel %vm409, %v1999, 0.0
    %2001 = vadd.xlane.f32.xlu0 %v2000
    %v2002 = vpop.xlane.xlu0 %2001
    %v2003 = vrcp.pop %v2002
    %v2004 = vmul.f32 %v1999, %v2003
    %v2005 = vlaneseq
    %v2006 = vshrl.u32 %v2005, 7
    %v2007 = vsub.s32 0, %v2006
    %v2008 = vrot.slane %v1815, %v2007
    %v2010 = vsel %vm123, %v1898, %v2008
    %s2011 = scalar_lea.vmem [#allocation9], 10
    %2012 = vst.msk [vmem:[%s2011] sm:$0x3] %vm427, %v2010
    %s2013 = scalar_lea.vmem [#allocation10], 5
    %2014 = vst.msk [vmem:[%s2013] sm:$0x1] %vm409, %v2004
    %s2015 = scalar_lea.vmem %s1, 6
    %v2016 = vld [vmem:[%s2015] sm:$0x1]
    %s2017 = scalar_lea.vmem %s2, 6
    %v2018 = vld [vmem:[%s2017] sm:$0x1]
    %s2019 = scalar_lea.vmem [#allocation6], 6
    %v2020 = vld [vmem:[%s2019] sm:$0x1]
    %v2021 = vld [vmem:[#allocation12] sm:$0xff]
    %v2022 = vld [vmem:[#allocation12 + $0x8] sm:$0xff]
    %v2023 = vld [vmem:[#allocation12 + $0x10] sm:$0xff]
    %v2024 = vld [vmem:[#allocation12 + $0x18] sm:$0xff]
    %v2025 = vld [vmem:[#allocation13] sm:$0xff]
    %v2026 = vld [vmem:[#allocation13 + $0x8] sm:$0xff]
    %v2027 = vld [vmem:[#allocation13 + $0x10] sm:$0xff]
    %v2028 = vld [vmem:[#allocation13 + $0x18] sm:$0xff]
    %v2029 = vsel %vm123, %v2016, %v2008
    %v2031 = vsel %vm87, %v2029, 0
    %2033 = vmatprep.subr.mxu0 0.0
    %2034 = vmatpush1.msra.mxu0 %v2025
    %2035 = vmatprep.subr.mxu0 0.0
    %2036 = vmatpush1.msra.mxu0 %v2026
    %2037 = vmatprep.subr.mxu0 0.0
    %2038 = vmatpush1.msra.mxu0 %v2027
    %2039 = vmatprep.subr.mxu0 0.0
    %2040 = vmatpush1.msra.mxu0 %v2028
    %2041 = vmatprep.subr.mxu0 0.0
    %2042 = vmatpush1.msra.mxu0 0.0
    %2043 = vmatprep.subr.mxu0 0.0
    %2044 = vmatpush1.msra.mxu0 0.0
    %2045 = vmatprep.subr.mxu0 0.0
    %2046 = vmatpush1.msra.mxu0 0.0
    %2047 = vmatprep.subr.mxu0 0.0
    %2048 = vmatpush1.msra.mxu0 0.0
    %2049 = vmatprep.subr.mxu0 0.0
    %2050 = vmatpush1.msra.mxu0 0.0
    %2051 = vmatprep.subr.mxu0 0.0
    %2052 = vmatpush1.msra.mxu0 0.0
    %2053 = vmatprep.subr.mxu0 0.0
    %2054 = vmatpush1.msra.mxu0 0.0
    %2055 = vmatprep.subr.mxu0 0.0
    %2056 = vmatpush1.msra.mxu0 0.0
    %2057 = vmatprep.subr.mxu0 0.0
    %2058 = vmatpush1.msra.mxu0 0.0
    %2059 = vmatprep.subr.mxu0 0.0
    %2060 = vmatpush1.msra.mxu0 0.0
    %2061 = vmatprep.subr.mxu0 0.0
    %2062 = vmatpush1.msra.mxu0 0.0
    %2063 = vmatprep.subr.mxu0 0.0
    %2064 = vmatpush1.msra.mxu0 0.0
    %2065 = vmatprep.subr.mxu0 0.0
    %2066 = vmatpush1.msra.mxu0 0.0
    %2067 = vmatprep.subr.mxu0 0.0
    %2068 = vmatpush1.msra.mxu0 0.0
    %2069 = vmatprep.subr.mxu0 0.0
    %2070 = vmatpush1.msra.mxu0 0.0
    %2071 = vmatprep.subr.mxu0 0.0
    %2072 = vmatpush1.msra.mxu0 0.0
    %2073 = vmatprep.subr.mxu0 0.0
    %2074 = vmatpush1.msra.mxu0 0.0
    %2075 = vmatprep.subr.mxu0 0.0
    %2076 = vmatpush1.msra.mxu0 0.0
    %2077 = vmatprep.subr.mxu0 0.0
    %2078 = vmatpush1.msra.mxu0 0.0
    %2079 = vmatprep.subr.mxu0 0.0
    %2080 = vmatpush1.msra.mxu0 0.0
    %2081 = vmatprep.subr.mxu0 0.0
    %2082 = vmatpush1.msra.mxu0 0.0
    %2083 = vmatprep.subr.mxu0 0.0
    %2084 = vmatpush1.msra.mxu0 0.0
    %2085 = vmatprep.subr.mxu0 0.0
    %2086 = vmatpush1.msra.mxu0 0.0
    %2087 = vmatprep.subr.mxu0 0.0
    %2088 = vmatpush1.msra.mxu0 0.0
    %2089 = vmatprep.subr.mxu0 0.0
    %2090 = vmatpush1.msra.mxu0 0.0
    %2091 = vmatprep.subr.mxu0 0.0
    %2092 = vmatpush1.msra.mxu0 0.0
    %2093 = vmatprep.subr.mxu0 0.0
    %2094 = vmatpush1.msra.mxu0 0.0
    %2095 = vmatprep.subr.mxu0 0.0
    %2096 = vmatpush1.msra.mxu0 0.0
    %2097 = vmatprep.mubr.f32.mxu0 0.0
    %2098 = vmatmul.mubr.f32.gmra.mrb[0].mxu0 %v2031
    %v2099 = vpop.f32.mrb[0].mxu0
    %v2100 = vadd.f32 0.0, %v2099
    %v2101 = vpop.f32.mrb[0].mxu0
    %2102 = vdwg.mxu0
    %v2103 = vmul.f32 %v2100, 15.0
    %v2105 = vrot.slane %v2103, 1
    %v2107 = vmax.f32 %v2103, %v2105
    %v2108 = vmax.f32 %v2107, 0.0
    %v2109 = vsub.f32 %v2103, %v2108
    %v2110 = vmul.f32 %v2109, 1.442695
    %v2111 = vpow.pop %v2110
    %v2113 = vrot.slane %v2108, 7
    %v2115 = vsub.f32 %v2103, %v2113
    %v2116 = vmul.f32 %v2115, 1.442695
    %v2117 = vpow.pop %v2116
    %v2118 = vsub.f32 0.0, %v2108
    %v2119 = vmul.f32 %v2118, 1.442695
    %v2120 = vpow.pop %v2119
    %v2121 = vmul.f32 %v2120, 0.1
    %v2122 = vadd.f32 %v2111, %v2121
    %v2124 = vrot.slane %v2117, 1
    %v2126 = vadd.f32 %v2122, %v2124
    %v2127 = vrcp.pop %v2126
    %v2128 = vmul.f32 %v2122, %v2127
    %vm2129 = vcmp.lt.f32.partialorder %v2020, %v2128
    %v2130 = vsel %vm2129, 1, 0
    %v2131 = vcvt.s32.f32 %v2130
    %v2132 = vmul.f32 %v2131, %v2016
    %v2133 = vmul.f32 %v1818, 0.1
    %v2134 = vmul.f32 %v2016, 0.9
    %v2135 = vadd.f32 %v2133, %v2134
    %v2137 = vsel %vm87, %v2132, 0
    %2139 = vmatprep.subr.mxu0 0.0
    %2140 = vmatpush1.msra.mxu0 %v2021
    %2141 = vmatprep.subr.mxu0 0.0
    %2142 = vmatpush1.msra.mxu0 %v2022
    %2143 = vmatprep.subr.mxu0 0.0
    %2144 = vmatpush1.msra.mxu0 %v2023
    %2145 = vmatprep.subr.mxu0 0.0
    %2146 = vmatpush1.msra.mxu0 %v2024
    %2147 = vmatprep.subr.mxu0 0.0
    %2148 = vmatpush1.msra.mxu0 0.0
    %2149 = vmatprep.subr.mxu0 0.0
    %2150 = vmatpush1.msra.mxu0 0.0
    %2151 = vmatprep.subr.mxu0 0.0
    %2152 = vmatpush1.msra.mxu0 0.0
    %2153 = vmatprep.subr.mxu0 0.0
    %2154 = vmatpush1.msra.mxu0 0.0
    %2155 = vmatprep.subr.mxu0 0.0
    %2156 = vmatpush1.msra.mxu0 0.0
    %2157 = vmatprep.subr.mxu0 0.0
    %2158 = vmatpush1.msra.mxu0 0.0
    %2159 = vmatprep.subr.mxu0 0.0
    %2160 = vmatpush1.msra.mxu0 0.0
    %2161 = vmatprep.subr.mxu0 0.0
    %2162 = vmatpush1.msra.mxu0 0.0
    %2163 = vmatprep.subr.mxu0 0.0
    %2164 = vmatpush1.msra.mxu0 0.0
    %2165 = vmatprep.subr.mxu0 0.0
    %2166 = vmatpush1.msra.mxu0 0.0
    %2167 = vmatprep.subr.mxu0 0.0
    %2168 = vmatpush1.msra.mxu0 0.0
    %2169 = vmatprep.subr.mxu0 0.0
    %2170 = vmatpush1.msra.mxu0 0.0
    %2171 = vmatprep.subr.mxu0 0.0
    %2172 = vmatpush1.msra.mxu0 0.0
    %2173 = vmatprep.subr.mxu0 0.0
    %2174 = vmatpush1.msra.mxu0 0.0
    %2175 = vmatprep.subr.mxu0 0.0
    %2176 = vmatpush1.msra.mxu0 0.0
    %2177 = vmatprep.subr.mxu0 0.0
    %2178 = vmatpush1.msra.mxu0 0.0
    %2179 = vmatprep.subr.mxu0 0.0
    %2180 = vmatpush1.msra.mxu0 0.0
    %2181 = vmatprep.subr.mxu0 0.0
    %2182 = vmatpush1.msra.mxu0 0.0
    %2183 = vmatprep.subr.mxu0 0.0
    %2184 = vmatpush1.msra.mxu0 0.0
    %2185 = vmatprep.subr.mxu0 0.0
    %2186 = vmatpush1.msra.mxu0 0.0
    %2187 = vmatprep.subr.mxu0 0.0
    %2188 = vmatpush1.msra.mxu0 0.0
    %2189 = vmatprep.subr.mxu0 0.0
    %2190 = vmatpush1.msra.mxu0 0.0
    %2191 = vmatprep.subr.mxu0 0.0
    %2192 = vmatpush1.msra.mxu0 0.0
    %2193 = vmatprep.subr.mxu0 0.0
    %2194 = vmatpush1.msra.mxu0 0.0
    %2195 = vmatprep.subr.mxu0 0.0
    %2196 = vmatpush1.msra.mxu0 0.0
    %2197 = vmatprep.subr.mxu0 0.0
    %2198 = vmatpush1.msra.mxu0 0.0
    %2199 = vmatprep.subr.mxu0 0.0
    %2200 = vmatpush1.msra.mxu0 0.0
    %2201 = vmatprep.subr.mxu0 0.0
    %2202 = vmatpush1.msra.mxu0 0.0
    %2203 = vmatprep.mubr.f32.mxu0 0.0
    %2204 = vmatmul.mubr.f32.gmra.mrb[0].mxu0 %v2137
    %v2205 = vpop.f32.mrb[0].mxu0
    %v2206 = vadd.f32 0.0, %v2205
    %v2207 = vpop.f32.mrb[0].mxu0
    %2208 = vdwg.mxu0
    %s2209 = sld [smem:[#allocation2 + $0x6]]
    %v2210 = vstv %s2209
    %vm2211 = vcmp.eq.s32.totalorder %v306, %v2210
    %v2212 = vsel %vm2211, 1, 0
    %v2213 = vcvt.s32.f32 %v2212
    %v2214 = vsub.f32 %v2018, %v2206
    %v2215 = vmul.f32 %v2213, %v2214
    %v2216 = vsel %vm313, %v2215, 0.0
    %2217 = vadd.xlane.f32.xlu0 %v2216
    %v2218 = vpop.xlane.xlu0 %2217
    %s2219 = scalar_lea.vmem [#allocation12], %s2209
    %v2220 = vld [vmem:[%s2219] sm:$0x1]
    %v2221 = vmul.f32 %v2218, 0.075
    %v2222 = vmul.f32 %v2221, %v2132
    %v2223 = vadd.f32 %v2220, %v2222
    %2224 = vst.msk [vmem:[%s2219] sm:$0x1] %vm313, %v2223
    %s2225 = scalar_lea.vmem [#allocation13], %s2209
    %v2226 = vld [vmem:[%s2225] sm:$0x1]
    %v2227 = vmul.f32 %v2221, %v2135
    %v2228 = vadd.f32 %v2226, %v2227
    %2229 = vst.msk [vmem:[%s2225] sm:$0x1] %vm313, %v2228
    %v2230 = vmul.f32 %v2215, %v2132
    %v2231 = vsel %vm313, %v2230, 0.0
    %2232 = vadd.xlane.f32.xlu0 %v2231
    %v2233 = vpop.xlane.xlu0 %2232
    %v2234 = vmul.f32 %v2233, 0.075
    %v2235 = vmul.f32 %v2234, %v2132
    %v2236 = vadd.f32 %v2206, %v2235
    %v2238 = vsel %vm87, %v2236, 0
    %2240 = vmatprep.subr.mxu0 0.0
    %2241 = vmatpush1.msra.mxu0 %v100
    %2242 = vmatprep.subr.mxu0 0.0
    %2243 = vmatpush1.msra.mxu0 %v101
    %2244 = vmatprep.subr.mxu0 0.0
    %2245 = vmatpush1.msra.mxu0 %v102
    %2246 = vmatprep.subr.mxu0 0.0
    %2247 = vmatpush1.msra.mxu0 %v103
    %2248 = vmatprep.subr.mxu0 0.0
    %2249 = vmatpush1.msra.mxu0 0.0
    %2250 = vmatprep.subr.mxu0 0.0
    %2251 = vmatpush1.msra.mxu0 0.0
    %2252 = vmatprep.subr.mxu0 0.0
    %2253 = vmatpush1.msra.mxu0 0.0
    %2254 = vmatprep.subr.mxu0 0.0
    %2255 = vmatpush1.msra.mxu0 0.0
    %2256 = vmatprep.subr.mxu0 0.0
    %2257 = vmatpush1.msra.mxu0 0.0
    %2258 = vmatprep.subr.mxu0 0.0
    %2259 = vmatpush1.msra.mxu0 0.0
    %2260 = vmatprep.subr.mxu0 0.0
    %2261 = vmatpush1.msra.mxu0 0.0
    %2262 = vmatprep.subr.mxu0 0.0
    %2263 = vmatpush1.msra.mxu0 0.0
    %2264 = vmatprep.subr.mxu0 0.0
    %2265 = vmatpush1.msra.mxu0 0.0
    %2266 = vmatprep.subr.mxu0 0.0
    %2267 = vmatpush1.msra.mxu0 0.0
    %2268 = vmatprep.subr.mxu0 0.0
    %2269 = vmatpush1.msra.mxu0 0.0
    %2270 = vmatprep.subr.mxu0 0.0
    %2271 = vmatpush1.msra.mxu0 0.0
    %2272 = vmatprep.subr.mxu0 0.0
    %2273 = vmatpush1.msra.mxu0 0.0
    %2274 = vmatprep.subr.mxu0 0.0
    %2275 = vmatpush1.msra.mxu0 0.0
    %2276 = vmatprep.subr.mxu0 0.0
    %2277 = vmatpush1.msra.mxu0 0.0
    %2278 = vmatprep.subr.mxu0 0.0
    %2279 = vmatpush1.msra.mxu0 0.0
    %2280 = vmatprep.subr.mxu0 0.0
    %2281 = vmatpush1.msra.mxu0 0.0
    %2282 = vmatprep.subr.mxu0 0.0
    %2283 = vmatpush1.msra.mxu0 0.0
    %2284 = vmatprep.subr.mxu0 0.0
    %2285 = vmatpush1.msra.mxu0 0.0
    %2286 = vmatprep.subr.mxu0 0.0
    %2287 = vmatpush1.msra.mxu0 0.0
    %2288 = vmatprep.subr.mxu0 0.0
    %2289 = vmatpush1.msra.mxu0 0.0
    %2290 = vmatprep.subr.mxu0 0.0
    %2291 = vmatpush1.msra.mxu0 0.0
    %2292 = vmatprep.subr.mxu0 0.0
    %2293 = vmatpush1.msra.mxu0 0.0
    %2294 = vmatprep.subr.mxu0 0.0
    %2295 = vmatpush1.msra.mxu0 0.0
    %2296 = vmatprep.subr.mxu0 0.0
    %2297 = vmatpush1.msra.mxu0 0.0
    %2298 = vmatprep.subr.mxu0 0.0
    %2299 = vmatpush1.msra.mxu0 0.0
    %2300 = vmatprep.subr.mxu0 0.0
    %2301 = vmatpush1.msra.mxu0 0.0
    %2302 = vmatprep.subr.mxu0 0.0
    %2303 = vmatpush1.msra.mxu0 0.0
    %2304 = vmatprep.mubr.f32.mxu0 0.0
    %2305 = vmatmul.mubr.f32.gmra.mrb[0].mxu0 %v2238
    %v2306 = vpop.f32.mrb[0].mxu0
    %v2307 = vadd.f32 0.0, %v2306
    %v2308 = vpop.f32.mrb[0].mxu0
    %2309 = vdwg.mxu0
    %v2310 = vmul.f32 %v2307, 10.0
    %v2311 = vsel %vm409, %v2310, -inf
    %2312 = vmax.xlane.f32.xlu0 %v2311
    %v2313 = vpop.xlane.xlu0 %2312
    %v2314 = vsub.f32 %v2310, %v2313
    %v2315 = vmul.f32 %v2314, 1.442695
    %v2316 = vpow.pop %v2315
    %v2317 = vsel %vm409, %v2316, 0.0
    %2318 = vadd.xlane.f32.xlu0 %v2317
    %v2319 = vpop.xlane.xlu0 %2318
    %v2320 = vrcp.pop %v2319
    %v2321 = vmul.f32 %v2316, %v2320
    %v2322 = vlaneseq
    %v2323 = vshrl.u32 %v2322, 7
    %v2324 = vsub.s32 0, %v2323
    %v2325 = vrot.slane %v2132, %v2324
    %v2327 = vsel %vm123, %v2215, %v2325
    %s2328 = scalar_lea.vmem [#allocation9], 12
    %2329 = vst.msk [vmem:[%s2328] sm:$0x3] %vm427, %v2327
    %s2330 = scalar_lea.vmem [#allocation10], 6
    %2331 = vst.msk [vmem:[%s2330] sm:$0x1] %vm409, %v2321
    %s2332 = scalar_lea.vmem %s1, 7
    %v2333 = vld [vmem:[%s2332] sm:$0x1]
    %s2334 = scalar_lea.vmem %s2, 7
    %v2335 = vld [vmem:[%s2334] sm:$0x1]
    %s2336 = scalar_lea.vmem [#allocation6], 7
    %v2337 = vld [vmem:[%s2336] sm:$0x1]
    %v2338 = vld [vmem:[#allocation12] sm:$0xff]
    %v2339 = vld [vmem:[#allocation12 + $0x8] sm:$0xff]
    %v2340 = vld [vmem:[#allocation12 + $0x10] sm:$0xff]
    %v2341 = vld [vmem:[#allocation12 + $0x18] sm:$0xff]
    %v2342 = vld [vmem:[#allocation13] sm:$0xff]
    %v2343 = vld [vmem:[#allocation13 + $0x8] sm:$0xff]
    %v2344 = vld [vmem:[#allocation13 + $0x10] sm:$0xff]
    %v2345 = vld [vmem:[#allocation13 + $0x18] sm:$0xff]
    %v2346 = vsel %vm123, %v2333, %v2325
    %v2348 = vsel %vm87, %v2346, 0
    %2350 = vmatprep.subr.mxu0 0.0
    %2351 = vmatpush1.msra.mxu0 %v2342
    %2352 = vmatprep.subr.mxu0 0.0
    %2353 = vmatpush1.msra.mxu0 %v2343
    %2354 = vmatprep.subr.mxu0 0.0
    %2355 = vmatpush1.msra.mxu0 %v2344
    %2356 = vmatprep.subr.mxu0 0.0
    %2357 = vmatpush1.msra.mxu0 %v2345
    %2358 = vmatprep.subr.mxu0 0.0
    %2359 = vmatpush1.msra.mxu0 0.0
    %2360 = vmatprep.subr.mxu0 0.0
    %2361 = vmatpush1.msra.mxu0 0.0
    %2362 = vmatprep.subr.mxu0 0.0
    %2363 = vmatpush1.msra.mxu0 0.0
    %2364 = vmatprep.subr.mxu0 0.0
    %2365 = vmatpush1.msra.mxu0 0.0
    %2366 = vmatprep.subr.mxu0 0.0
    %2367 = vmatpush1.msra.mxu0 0.0
    %2368 = vmatprep.subr.mxu0 0.0
    %2369 = vmatpush1.msra.mxu0 0.0
    %2370 = vmatprep.subr.mxu0 0.0
    %2371 = vmatpush1.msra.mxu0 0.0
    %2372 = vmatprep.subr.mxu0 0.0
    %2373 = vmatpush1.msra.mxu0 0.0
    %2374 = vmatprep.subr.mxu0 0.0
    %2375 = vmatpush1.msra.mxu0 0.0
    %2376 = vmatprep.subr.mxu0 0.0
    %2377 = vmatpush1.msra.mxu0 0.0
    %2378 = vmatprep.subr.mxu0 0.0
    %2379 = vmatpush1.msra.mxu0 0.0
    %2380 = vmatprep.subr.mxu0 0.0
    %2381 = vmatpush1.msra.mxu0 0.0
    %2382 = vmatprep.subr.mxu0 0.0
    %2383 = vmatpush1.msra.mxu0 0.0
    %2384 = vmatprep.subr.mxu0 0.0
    %2385 = vmatpush1.msra.mxu0 0.0
    %2386 = vmatprep.subr.mxu0 0.0
    %2387 = vmatpush1.msra.mxu0 0.0
    %2388 = vmatprep.subr.mxu0 0.0
    %2389 = vmatpush1.msra.mxu0 0.0
    %2390 = vmatprep.subr.mxu0 0.0
    %2391 = vmatpush1.msra.mxu0 0.0
    %2392 = vmatprep.subr.mxu0 0.0
    %2393 = vmatpush1.msra.mxu0 0.0
    %2394 = vmatprep.subr.mxu0 0.0
    %2395 = vmatpush1.msra.mxu0 0.0
    %2396 = vmatprep.subr.mxu0 0.0
    %2397 = vmatpush1.msra.mxu0 0.0
    %2398 = vmatprep.subr.mxu0 0.0
    %2399 = vmatpush1.msra.mxu0 0.0
    %2400 = vmatprep.subr.mxu0 0.0
    %2401 = vmatpush1.msra.mxu0 0.0
    %2402 = vmatprep.subr.mxu0 0.0
    %2403 = vmatpush1.msra.mxu0 0.0
    %2404 = vmatprep.subr.mxu0 0.0
    %2405 = vmatpush1.msra.mxu0 0.0
    %2406 = vmatprep.subr.mxu0 0.0
    %2407 = vmatpush1.msra.mxu0 0.0
    %2408 = vmatprep.subr.mxu0 0.0
    %2409 = vmatpush1.msra.mxu0 0.0
    %2410 = vmatprep.subr.mxu0 0.0
    %2411 = vmatpush1.msra.mxu0 0.0
    %2412 = vmatprep.subr.mxu0 0.0
    %2413 = vmatpush1.msra.mxu0 0.0
    %2414 = vmatprep.mubr.f32.mxu0 0.0
    %2415 = vmatmul.mubr.f32.gmra.mrb[0].mxu0 %v2348
    %v2416 = vpop.f32.mrb[0].mxu0
    %v2417 = vadd.f32 0.0, %v2416
    %v2418 = vpop.f32.mrb[0].mxu0
    %2419 = vdwg.mxu0
    %v2420 = vmul.f32 %v2417, 15.0
    %v2422 = vrot.slane %v2420, 1
    %v2424 = vmax.f32 %v2420, %v2422
    %v2425 = vmax.f32 %v2424, 0.0
    %v2426 = vsub.f32 %v2420, %v2425
    %v2427 = vmul.f32 %v2426, 1.442695
    %v2428 = vpow.pop %v2427
    %v2430 = vrot.slane %v2425, 7
    %v2432 = vsub.f32 %v2420, %v2430
    %v2433 = vmul.f32 %v2432, 1.442695
    %v2434 = vpow.pop %v2433
    %v2435 = vsub.f32 0.0, %v2425
    %v2436 = vmul.f32 %v2435, 1.442695
    %v2437 = vpow.pop %v2436
    %v2438 = vmul.f32 %v2437, 0.1
    %v2439 = vadd.f32 %v2428, %v2438
    %v2441 = vrot.slane %v2434, 1
    %v2443 = vadd.f32 %v2439, %v2441
    %v2444 = vrcp.pop %v2443
    %v2445 = vmul.f32 %v2439, %v2444
    %vm2446 = vcmp.lt.f32.partialorder %v2337, %v2445
    %v2447 = vsel %vm2446, 1, 0
    %v2448 = vcvt.s32.f32 %v2447
    %v2449 = vmul.f32 %v2448, %v2333
    %v2450 = vmul.f32 %v2135, 0.1
    %v2451 = vmul.f32 %v2333, 0.9
    %v2452 = vadd.f32 %v2450, %v2451
    %v2454 = vsel %vm87, %v2449, 0
    %2456 = vmatprep.subr.mxu0 0.0
    %2457 = vmatpush1.msra.mxu0 %v2338
    %2458 = vmatprep.subr.mxu0 0.0
    %2459 = vmatpush1.msra.mxu0 %v2339
    %2460 = vmatprep.subr.mxu0 0.0
    %2461 = vmatpush1.msra.mxu0 %v2340
    %2462 = vmatprep.subr.mxu0 0.0
    %2463 = vmatpush1.msra.mxu0 %v2341
    %2464 = vmatprep.subr.mxu0 0.0
    %2465 = vmatpush1.msra.mxu0 0.0
    %2466 = vmatprep.subr.mxu0 0.0
    %2467 = vmatpush1.msra.mxu0 0.0
    %2468 = vmatprep.subr.mxu0 0.0
    %2469 = vmatpush1.msra.mxu0 0.0
    %2470 = vmatprep.subr.mxu0 0.0
    %2471 = vmatpush1.msra.mxu0 0.0
    %2472 = vmatprep.subr.mxu0 0.0
    %2473 = vmatpush1.msra.mxu0 0.0
    %2474 = vmatprep.subr.mxu0 0.0
    %2475 = vmatpush1.msra.mxu0 0.0
    %2476 = vmatprep.subr.mxu0 0.0
    %2477 = vmatpush1.msra.mxu0 0.0
    %2478 = vmatprep.subr.mxu0 0.0
    %2479 = vmatpush1.msra.mxu0 0.0
    %2480 = vmatprep.subr.mxu0 0.0
    %2481 = vmatpush1.msra.mxu0 0.0
    %2482 = vmatprep.subr.mxu0 0.0
    %2483 = vmatpush1.msra.mxu0 0.0
    %2484 = vmatprep.subr.mxu0 0.0
    %2485 = vmatpush1.msra.mxu0 0.0
    %2486 = vmatprep.subr.mxu0 0.0
    %2487 = vmatpush1.msra.mxu0 0.0
    %2488 = vmatprep.subr.mxu0 0.0
    %2489 = vmatpush1.msra.mxu0 0.0
    %2490 = vmatprep.subr.mxu0 0.0
    %2491 = vmatpush1.msra.mxu0 0.0
    %2492 = vmatprep.subr.mxu0 0.0
    %2493 = vmatpush1.msra.mxu0 0.0
    %2494 = vmatprep.subr.mxu0 0.0
    %2495 = vmatpush1.msra.mxu0 0.0
    %2496 = vmatprep.subr.mxu0 0.0
    %2497 = vmatpush1.msra.mxu0 0.0
    %2498 = vmatprep.subr.mxu0 0.0
    %2499 = vmatpush1.msra.mxu0 0.0
    %2500 = vmatprep.subr.mxu0 0.0
    %2501 = vmatpush1.msra.mxu0 0.0
    %2502 = vmatprep.subr.mxu0 0.0
    %2503 = vmatpush1.msra.mxu0 0.0
    %2504 = vmatprep.subr.mxu0 0.0
    %2505 = vmatpush1.msra.mxu0 0.0
    %2506 = vmatprep.subr.mxu0 0.0
    %2507 = vmatpush1.msra.mxu0 0.0
    %2508 = vmatprep.subr.mxu0 0.0
    %2509 = vmatpush1.msra.mxu0 0.0
    %2510 = vmatprep.subr.mxu0 0.0
    %2511 = vmatpush1.msra.mxu0 0.0
    %2512 = vmatprep.subr.mxu0 0.0
    %2513 = vmatpush1.msra.mxu0 0.0
    %2514 = vmatprep.subr.mxu0 0.0
    %2515 = vmatpush1.msra.mxu0 0.0
    %2516 = vmatprep.subr.mxu0 0.0
    %2517 = vmatpush1.msra.mxu0 0.0
    %2518 = vmatprep.subr.mxu0 0.0
    %2519 = vmatpush1.msra.mxu0 0.0
    %2520 = vmatprep.mubr.f32.mxu0 0.0
    %2521 = vmatmul.mubr.f32.gmra.mrb[0].mxu0 %v2454
    %v2522 = vpop.f32.mrb[0].mxu0
    %v2523 = vadd.f32 0.0, %v2522
    %v2524 = vpop.f32.mrb[0].mxu0
    %2525 = vdwg.mxu0
    %s2526 = sld [smem:[#allocation2 + $0x7]]
    %v2527 = vstv %s2526
    %vm2528 = vcmp.eq.s32.totalorder %v306, %v2527
    %v2529 = vsel %vm2528, 1, 0
    %v2530 = vcvt.s32.f32 %v2529
    %v2531 = vsub.f32 %v2335, %v2523
    %v2532 = vmul.f32 %v2530, %v2531
    %v2533 = vsel %vm313, %v2532, 0.0
    %2534 = vadd.xlane.f32.xlu0 %v2533
    %v2535 = vpop.xlane.xlu0 %2534
    %s2536 = scalar_lea.vmem [#allocation12], %s2526
    %v2537 = vld [vmem:[%s2536] sm:$0x1]
    %v2538 = vmul.f32 %v2535, 0.075
    %v2539 = vmul.f32 %v2538, %v2449
    %v2540 = vadd.f32 %v2537, %v2539
    %2541 = vst.msk [vmem:[%s2536] sm:$0x1] %vm313, %v2540
    %s2542 = scalar_lea.vmem [#allocation13], %s2526
    %v2543 = vld [vmem:[%s2542] sm:$0x1]
    %v2544 = vmul.f32 %v2538, %v2452
    %v2545 = vadd.f32 %v2543, %v2544
    %2546 = vst.msk [vmem:[%s2542] sm:$0x1] %vm313, %v2545
    %v2547 = vmul.f32 %v2532, %v2449
    %v2548 = vsel %vm313, %v2547, 0.0
    %2549 = vadd.xlane.f32.xlu0 %v2548
    %v2550 = vpop.xlane.xlu0 %2549
    %v2551 = vmul.f32 %v2550, 0.075
    %v2552 = vmul.f32 %v2551, %v2449
    %v2553 = vadd.f32 %v2523, %v2552
    %v2555 = vsel %vm87, %v2553, 0
    %2557 = vmatprep.subr.mxu0 0.0
    %2558 = vmatpush1.msra.mxu0 %v100
    %2559 = vmatprep.subr.mxu0 0.0
    %2560 = vmatpush1.msra.mxu0 %v101
    %2561 = vmatprep.subr.mxu0 0.0
    %2562 = vmatpush1.msra.mxu0 %v102
    %2563 = vmatprep.subr.mxu0 0.0
    %2564 = vmatpush1.msra.mxu0 %v103
    %2565 = vmatprep.subr.mxu0 0.0
    %2566 = vmatpush1.msra.mxu0 0.0
    %2567 = vmatprep.subr.mxu0 0.0
    %2568 = vmatpush1.msra.mxu0 0.0
    %2569 = vmatprep.subr.mxu0 0.0
    %2570 = vmatpush1.msra.mxu0 0.0
    %2571 = vmatprep.subr.mxu0 0.0
    %2572 = vmatpush1.msra.mxu0 0.0
    %2573 = vmatprep.subr.mxu0 0.0
    %2574 = vmatpush1.msra.mxu0 0.0
    %2575 = vmatprep.subr.mxu0 0.0
    %2576 = vmatpush1.msra.mxu0 0.0
    %2577 = vmatprep.subr.mxu0 0.0
    %2578 = vmatpush1.msra.mxu0 0.0
    %2579 = vmatprep.subr.mxu0 0.0
    %2580 = vmatpush1.msra.mxu0 0.0
    %2581 = vmatprep.subr.mxu0 0.0
    %2582 = vmatpush1.msra.mxu0 0.0
    %2583 = vmatprep.subr.mxu0 0.0
    %2584 = vmatpush1.msra.mxu0 0.0
    %2585 = vmatprep.subr.mxu0 0.0
    %2586 = vmatpush1.msra.mxu0 0.0
    %2587 = vmatprep.subr.mxu0 0.0
    %2588 = vmatpush1.msra.mxu0 0.0
    %2589 = vmatprep.subr.mxu0 0.0
    %2590 = vmatpush1.msra.mxu0 0.0
    %2591 = vmatprep.subr.mxu0 0.0
    %2592 = vmatpush1.msra.mxu0 0.0
    %2593 = vmatprep.subr.mxu0 0.0
    %2594 = vmatpush1.msra.mxu0 0.0
    %2595 = vmatprep.subr.mxu0 0.0
    %2596 = vmatpush1.msra.mxu0 0.0
    %2597 = vmatprep.subr.mxu0 0.0
    %2598 = vmatpush1.msra.mxu0 0.0
    %2599 = vmatprep.subr.mxu0 0.0
    %2600 = vmatpush1.msra.mxu0 0.0
    %2601 = vmatprep.subr.mxu0 0.0
    %2602 = vmatpush1.msra.mxu0 0.0
    %2603 = vmatprep.subr.mxu0 0.0
    %2604 = vmatpush1.msra.mxu0 0.0
    %2605 = vmatprep.subr.mxu0 0.0
    %2606 = vmatpush1.msra.mxu0 0.0
    %2607 = vmatprep.subr.mxu0 0.0
    %2608 = vmatpush1.msra.mxu0 0.0
    %2609 = vmatprep.subr.mxu0 0.0
    %2610 = vmatpush1.msra.mxu0 0.0
    %2611 = vmatprep.subr.mxu0 0.0
    %2612 = vmatpush1.msra.mxu0 0.0
    %2613 = vmatprep.subr.mxu0 0.0
    %2614 = vmatpush1.msra.mxu0 0.0
    %2615 = vmatprep.subr.mxu0 0.0
    %2616 = vmatpush1.msra.mxu0 0.0
    %2617 = vmatprep.subr.mxu0 0.0
    %2618 = vmatpush1.msra.mxu0 0.0
    %2619 = vmatprep.subr.mxu0 0.0
    %2620 = vmatpush1.msra.mxu0 0.0
    %2621 = vmatprep.mubr.f32.mxu0 0.0
    %2622 = vmatmul.mubr.f32.gmra.mrb[0].mxu0 %v2555
    %v2623 = vpop.f32.mrb[0].mxu0
    %v2624 = vadd.f32 0.0, %v2623
    %v2625 = vpop.f32.mrb[0].mxu0
    %2626 = vdwg.mxu0
    %v2627 = vmul.f32 %v2624, 10.0
    %v2628 = vsel %vm409, %v2627, -inf
    %2629 = vmax.xlane.f32.xlu0 %v2628
    %v2630 = vpop.xlane.xlu0 %2629
    %v2631 = vsub.f32 %v2627, %v2630
    %v2632 = vmul.f32 %v2631, 1.442695
    %v2633 = vpow.pop %v2632
    %v2634 = vsel %vm409, %v2633, 0.0
    %2635 = vadd.xlane.f32.xlu0 %v2634
    %v2636 = vpop.xlane.xlu0 %2635
    %v2637 = vrcp.pop %v2636
    %v2638 = vmul.f32 %v2633, %v2637
    %v2639 = vlaneseq
    %v2640 = vshrl.u32 %v2639, 7
    %v2641 = vsub.s32 0, %v2640
    %v2642 = vrot.slane %v2449, %v2641
    %v2644 = vsel %vm123, %v2532, %v2642
    %s2645 = scalar_lea.vmem [#allocation9], 14
    %2646 = vst.msk [vmem:[%s2645] sm:$0x3] %vm427, %v2644
    %s2647 = scalar_lea.vmem [#allocation10], 7
    %2648 = vst.msk [vmem:[%s2647] sm:$0x1] %vm409, %v2638
    %2649 = vst.msk [vmem:[#allocation15] sm:$0x1] %vm313, %v2449
    %2650 = vst.msk [vmem:[#allocation16] sm:$0x1] %vm313, %v2452
    // Predicated region
    $region50: #{tpu_custom_call.1} parent=1 // pred_check
      _
    $region51: #{tpu_custom_call.1} parent=1 // pred_check_branch
      %2652 = sbr.rel (0) target = $region53
    $region52: #{tpu_custom_call.1} parent=1 // pred_region
      %s2654 = ssub.s32 256, 256
      %2655 = vsyncadd [#allocation4], %s2654
      %s2656 = sshll.u32 [#allocation9], 4
      %s2657 = int_to_ptr.vmem [resolvable:$true] %s2656
      %2662 = dma.vmem_to_hbm [thread:$0]  %s2657, 256, %s9, [#allocation4], 32, 32, 2
    $region53: #{tpu_custom_call.1} parent=1 // pred_fallthru
      _
    // Predicated region
    $region54: #{tpu_custom_call.1} parent=1 // pred_check
      _
    $region55: #{tpu_custom_call.1} parent=1 // pred_check_branch
      %2664 = sbr.rel (0) target = $region57
    $region56: #{tpu_custom_call.1} parent=1 // pred_region
      %s2666 = ssub.s32 128, 128
      %2667 = vsyncadd [#allocation11], %s2666
      %s2668 = sshll.u32 [#allocation10], 4
      %s2669 = int_to_ptr.vmem [resolvable:$true] %s2668
      %2674 = dma.vmem_to_hbm [thread:$0]  %s2669, 128, %s10, [#allocation11], 16, 16, 1
    $region57: #{tpu_custom_call.1} parent=1 // pred_fallthru
      _
    // Predicated region
    $region58: #{tpu_custom_call.1} parent=1 // pred_check
      _
    $region59: #{tpu_custom_call.1} parent=1 // pred_check_branch
      %2676 = sbr.rel (0) target = $region61
    $region60: #{tpu_custom_call.1} parent=1 // pred_region
      %s2678 = ssub.s32 512, 512
      %2679 = vsyncadd [#allocation11], %s2678
      %s2680 = sshll.u32 [#allocation12], 4
      %s2681 = int_to_ptr.vmem [resolvable:$true] %s2680
      %2686 = dma.vmem_to_hbm [thread:$0]  %s2681, 512, %s11, [#allocation11], 128, 128, 8
    $region61: #{tpu_custom_call.1} parent=1 // pred_fallthru
      _
    // Predicated region
    $region62: #{tpu_custom_call.1} parent=1 // pred_check
      _
    $region63: #{tpu_custom_call.1} parent=1 // pred_check_branch
      %2688 = sbr.rel (0) target = $region65
    $region64: #{tpu_custom_call.1} parent=1 // pred_region
      %s2690 = ssub.s32 512, 512
      %2691 = vsyncadd [#allocation14], %s2690
      %s2692 = sshll.u32 [#allocation13], 4
      %s2693 = int_to_ptr.vmem [resolvable:$true] %s2692
      %2698 = dma.vmem_to_hbm [thread:$0]  %s2693, 512, %s12, [#allocation14], 128, 128, 8
    $region65: #{tpu_custom_call.1} parent=1 // pred_fallthru
      _
    // Predicated region
    $region66: #{tpu_custom_call.1} parent=1 // pred_check
      _
    $region67: #{tpu_custom_call.1} parent=1 // pred_check_branch
      %2700 = sbr.rel (0) target = $region69
    $region68: #{tpu_custom_call.1} parent=1 // pred_region
      %s2702 = ssub.s32 16, 16
      %2703 = vsyncadd [#allocation14], %s2702
      %s2705 = sshll.u32 [#allocation15], 4
      %s2706 = int_to_ptr.vmem [resolvable:$true] %s2705
      %2708 = dma.vmem_to_hbm [thread:$0]  %s2706, 16, %s13, [#allocation14]
    $region69: #{tpu_custom_call.1} parent=1 // pred_fallthru
      _
    // Predicated region
    $region70: #{tpu_custom_call.1} parent=1 // pred_check
      _
    $region71: #{tpu_custom_call.1} parent=1 // pred_check_branch
      %2710 = sbr.rel (0) target = $region73
    $region72: #{tpu_custom_call.1} parent=1 // pred_region
      %s2712 = ssub.s32 16, 16
      %2713 = vsyncadd [#allocation17], %s2712
      %s2715 = sshll.u32 [#allocation16], 4
      %s2716 = int_to_ptr.vmem [resolvable:$true] %s2715
      %2718 = dma.vmem_to_hbm [thread:$0]  %s2716, 16, %s14, [#allocation17]
    $region73: #{tpu_custom_call.1} parent=1 // pred_fallthru
      _
    // Predicated region
    $region74: #{tpu_custom_call.1} parent=1 // pred_check
      _
    $region75: #{tpu_custom_call.1} parent=1 // pred_check_branch
      %2720 = sbr.rel (0) target = $region77
    $region76: #{tpu_custom_call.1} parent=1 // pred_region
      %2721 = dma.done [#allocation4], 256
    $region77: #{tpu_custom_call.1} parent=1 // pred_fallthru
      _
    // Predicated region
    $region78: #{tpu_custom_call.1} parent=1 // pred_check
      _
    $region79: #{tpu_custom_call.1} parent=1 // pred_check_branch
      %2723 = sbr.rel (0) target = $region81
    $region80: #{tpu_custom_call.1} parent=1 // pred_region
      %2724 = dma.done [#allocation11], 128
    $region81: #{tpu_custom_call.1} parent=1 // pred_fallthru
      _
    // Predicated region
    $region82: #{tpu_custom_call.1} parent=1 // pred_check
      _
    $region83: #{tpu_custom_call.1} parent=1 // pred_check_branch
      %2726 = sbr.rel (0) target = $region85
    $region84: #{tpu_custom_call.1} parent=1 // pred_region
      %2727 = dma.done [#allocation11], 512
    $region85: #{tpu_custom_call.1} parent=1 // pred_fallthru
      _
    // Predicated region
    $region86: #{tpu_custom_call.1} parent=1 // pred_check
      _
    $region87: #{tpu_custom_call.1} parent=1 // pred_check_branch
      %2729 = sbr.rel (0) target = $region89
    $region88: #{tpu_custom_call.1} parent=1 // pred_region
      %2730 = dma.done [#allocation14], 512
    $region89: #{tpu_custom_call.1} parent=1 // pred_fallthru
      _
    // Predicated region
    $region90: #{tpu_custom_call.1} parent=1 // pred_check
      _
    $region91: #{tpu_custom_call.1} parent=1 // pred_check_branch
      %2732 = sbr.rel (0) target = $region93
    $region92: #{tpu_custom_call.1} parent=1 // pred_region
      %2733 = dma.done [#allocation14], 16
    $region93: #{tpu_custom_call.1} parent=1 // pred_fallthru
      _
    // Predicated region
    $region94: #{tpu_custom_call.1} parent=1 // pred_check
      _
    $region95: #{tpu_custom_call.1} parent=1 // pred_check_branch
      %2735 = sbr.rel (0) target = $region97
    $region96: #{tpu_custom_call.1} parent=1 // pred_region
      %2736 = dma.done [#allocation17], 16
    $region97: #{tpu_custom_call.1} parent=1 // pred_fallthru
      _
    %2737 = vsyncpa [#allocation3], 1
    %2738 = vsyncpa [#allocation8], 1
    %2739 = vsyncpa [#allocation4], 1
    %2740 = vsyncpa [#allocation11], 1
    %2741 = vsyncpa [#allocation14], 1
    %2742 = vsyncpa [#allocation17], 1
    %2743 = vsyncpa [#allocation5], 1

</llo_original>
